<compile_context>
chip_gen: v7x
topology: tpu7x:2x2x1
jax: 0.10.0
libtpu: 0.0.40
codegen_flags: <defaults>
</compile_context>

<pallas_src>
import jax
import jax.numpy as jnp
from jax.experimental import pallas as pl
from jax.experimental.pallas import tpu as pltpu


def _round_up(x, m):
    return ((x + m - 1) // m) * m


def _leaky_relu(x, negative_slope=0.2):
    return jnp.where(x >= 0, x, negative_slope * x)


def _discriminator_kernel(x_ref,                    # (k_tile, B_tile)  bf16
                          w1_ref, b1_ref,           # (d1, k_tile) bf16, (d1, 1) f32
                          w2_ref, b2_ref,           # (d2, d1) bf16,     (d2, 1) f32
                          w3_ref, b3_ref,           # (d3, d2) bf16,     (d3, 1) f32
                          w4_ref, b4_ref,           # (1, d3)  bf16,     (1, 1)  f32
                          m1_ref, m2_ref, m3_ref,   # pre-scaled dropout masks, f32
                          o_ref,                    # (1, B_tile) f32
                          acc_ref):                 # (d1, B_tile) f32 scratch
    k = pl.program_id(1)

    @pl.when(k == 0)
    def _init():
        acc_ref[...] = jnp.zeros_like(acc_ref)

    # Layer 1 partial product over the K (input-feature) grid axis.
    acc_ref[...] += jnp.dot(w1_ref[...], x_ref[...],
                            preferred_element_type=jnp.float32)

    @pl.when(k == pl.num_programs(1) - 1)
    def _finalize():
        # fc1 + leaky_relu + dropout  (all elementwise math in f32)
        h = acc_ref[...] + b1_ref[...]
        h = _leaky_relu(h, 0.2) * m1_ref[...]

        # fc2 + leaky_relu + dropout
        h = jnp.dot(w2_ref[...], h.astype(jnp.bfloat16),
                    preferred_element_type=jnp.float32) + b2_ref[...]
        h = _leaky_relu(h, 0.2) * m2_ref[...]

        # fc3 + leaky_relu + dropout
        h = jnp.dot(w3_ref[...], h.astype(jnp.bfloat16),
                    preferred_element_type=jnp.float32) + b3_ref[...]
        h = _leaky_relu(h, 0.2) * m3_ref[...]

        # fc4 + sigmoid  (lane-dense (1, B_tile) store)
        logits = jnp.dot(w4_ref[...], h.astype(jnp.bfloat16),
                         preferred_element_type=jnp.float32) + b4_ref[...]
        o_ref[...] = jax.nn.sigmoid(logits).astype(o_ref.dtype)


def discriminator_forward(img, params, masks, *, b_tile=128, k_tile=512):
    """img: (B, C, H, W) f32; params: torch-layout (out,in) weights + (out,) biases;
    masks: tuple of 3 pre-scaled dropout masks shaped (B, d1), (B, d2), (B, d3)."""
    B = img.shape[0]
    x = img.reshape(B, -1)                       # same flattening as torch .view(B, -1)
    in_dim = x.shape[1]

    w1, w2, w3, w4 = params["w1"], params["w2"], params["w3"], params["w4"]
    b1, b2, b3, b4 = params["b1"], params["b2"], params["b3"], params["b4"]
    d1, d2, d3 = w1.shape[0], w2.shape[0], w3.shape[0]

    # ---- tile sizes & padding ------------------------------------------------
    k_tile = min(k_tile, _round_up(in_dim, 128))
    in_pad = _round_up(in_dim, k_tile)
    b_pad = _round_up(B, b_tile)

    # Batch-on-lanes: x^T is (in_dim, B).  bf16 operands for the MXU.
    xt = jnp.pad(x.T.astype(jnp.bfloat16),
                 ((0, in_pad - in_dim), (0, b_pad - B)))
    w1p = jnp.pad(w1.astype(jnp.bfloat16), ((0, 0), (0, in_pad - in_dim)))
    w2c = w2.astype(jnp.bfloat16)
    w3c = w3.astype(jnp.bfloat16)
    w4c = w4.astype(jnp.bfloat16)
    b1c = b1.reshape(d1, 1).astype(jnp.float32)
    b2c = b2.reshape(d2, 1).astype(jnp.float32)
    b3c = b3.reshape(d3, 1).astype(jnp.float32)
    b4c = b4.reshape(1, 1).astype(jnp.float32)
    m1 = jnp.pad(masks[0].T.astype(jnp.float32), ((0, 0), (0, b_pad - B)))
    m2 = jnp.pad(masks[1].T.astype(jnp.float32), ((0, 0), (0, b_pad - B)))
    m3 = jnp.pad(masks[2].T.astype(jnp.float32), ((0, 0), (0, b_pad - B)))

    grid = (b_pad // b_tile, in_pad // k_tile)

    x_map = lambda b, k: (k, b)
    w1_map = lambda b, k: (0, k)
    const_map = lambda b, k: (0, 0)
    batch_map = lambda b, k: (0, b)

    out = pl.pallas_call(
        _discriminator_kernel,
        out_shape=jax.ShapeDtypeStruct((1, b_pad), jnp.float32),
        grid=grid,
        in_specs=[
            pl.BlockSpec((k_tile, b_tile), x_map),     # x^T
            pl.BlockSpec((d1, k_tile), w1_map),        # w1 (K-tiled)
            pl.BlockSpec((d1, 1), const_map),          # b1
            pl.BlockSpec((d2, d1), const_map),         # w2
            pl.BlockSpec((d2, 1), const_map),          # b2
            pl.BlockSpec((d3, d2), const_map),         # w3
            pl.BlockSpec((d3, 1), const_map),          # b3
            pl.BlockSpec((1, d3), const_map),          # w4
            pl.BlockSpec((1, 1), const_map),           # b4
            pl.BlockSpec((d1, b_tile), batch_map),     # dropout mask 1
            pl.BlockSpec((d2, b_tile), batch_map),     # dropout mask 2
            pl.BlockSpec((d3, b_tile), batch_map),     # dropout mask 3
        ],
        out_specs=pl.BlockSpec((1, b_tile), batch_map),
        scratch_shapes=[pltpu.VMEM((d1, b_tile), jnp.float32)],
        compiler_params=pltpu.CompilerParams(
            dimension_semantics=("parallel", "arbitrary")),
    )(xt, w1p, b1c, w2c, b2c, w3c, b3c, w4c, b4c, m1, m2, m3)

    # (1, b_pad) lane-dense result -> (B, 1) like the torch module.
    return out[:, :B].T


def make_dropout_masks(key, batch, dims, p=0.3):
    """Training-mode F.dropout masks: keep w.p. (1-p), scale kept by 1/(1-p)."""
    keys = jax.random.split(key, len(dims))
    return tuple(
        jax.random.bernoulli(k, 1.0 - p, (batch, d)).astype(jnp.float32)
        * (1.0 / (1.0 - p))
        for k, d in zip(keys, dims))


def init_params(key, in_dim, hidden_dim):
    """nn.Linear default init: U(-1/sqrt(fan_in), +); torch (out, in) layout."""
    dims = [(in_dim, hidden_dim),
            (hidden_dim, hidden_dim // 2),
            (hidden_dim // 2, hidden_dim // 4),
            (hidden_dim // 4, 1)]
    params = {}
    for i, (fan_in, fan_out) in enumerate(dims, start=1):
        key, kw, kb = jax.random.split(key, 3)
        bound = 1.0 / (fan_in ** 0.5)
        params[f"w{i}"] = jax.random.uniform(
            kw, (fan_out, fan_in), jnp.float32, -bound, bound)
        params[f"b{i}"] = jax.random.uniform(
            kb, (fan_out,), jnp.float32, -bound, bound)
    return params


def reference_forward(img, params, masks):
    """Pure-JAX reference with identical bf16-operand / f32-accumulate math."""
    B = img.shape[0]
    x = img.reshape(B, -1)

    def dense(h, w, b):
        return jnp.dot(h.astype(jnp.bfloat16), w.T.astype(jnp.bfloat16),
                       preferred_element_type=jnp.float32) + b

    h = _leaky_relu(dense(x, params["w1"], params["b1"]), 0.2) * masks[0]
    h = _leaky_relu(dense(h, params["w2"], params["b2"]), 0.2) * masks[1]
    h = _leaky_relu(dense(h, params["w3"], params["b3"]), 0.2) * masks[2]
    return jax.nn.sigmoid(dense(h, params["w4"], params["b4"]))


if __name__ == "__main__":
    key = jax.random.PRNGKey(0)

    # small shapes consistent with the module
    B = 2
    img_shape = (4, 16, 16)            # (C, H, W) -> in_dim = 1024
    hidden_dim = 512                   # fc: 1024 -> 512 -> 256 -> 128 -> 1
    in_dim = img_shape[0] * img_shape[1] * img_shape[2]

    k_img, k_params, k_drop = jax.random.split(key, 3)
    img = jax.random.normal(k_img, (B,) + img_shape, dtype=jnp.float32)
    params = init_params(k_params, in_dim, hidden_dim)
    masks = make_dropout_masks(
        k_drop, B, (hidden_dim, hidden_dim // 2, hidden_dim // 4), p=0.3)

    out = discriminator_forward(img, params, masks)
    out = jax.block_until_ready(out)
    ref = reference_forward(img, params, masks)

    assert out.shape == (B, 1)
    assert bool(jnp.all((out >= 0.0) & (out <= 1.0)))
    assert bool(jnp.allclose(out, ref, atol=2e-3, rtol=2e-3))
    print("KERNEL_OK")
</pallas_src>

<mosaic_0001>
module attributes {stable_mosaic.version = 11 : i64} {
  func.func @_discriminator_kernel(%arg0: i32, %arg1: i32, %arg2: memref<512x128xbf16, #tpu.memory_space<vmem>>, %arg3: memref<512x512xbf16, #tpu.memory_space<vmem>>, %arg4: memref<512x1xf32, #tpu.memory_space<vmem>>, %arg5: memref<256x512xbf16, #tpu.memory_space<vmem>>, %arg6: memref<256x1xf32, #tpu.memory_space<vmem>>, %arg7: memref<128x256xbf16, #tpu.memory_space<vmem>>, %arg8: memref<128x1xf32, #tpu.memory_space<vmem>>, %arg9: memref<1x128xbf16, #tpu.memory_space<vmem>>, %arg10: memref<1x1xf32, #tpu.memory_space<vmem>>, %arg11: memref<512x128xf32, #tpu.memory_space<vmem>>, %arg12: memref<256x128xf32, #tpu.memory_space<vmem>>, %arg13: memref<128x128xf32, #tpu.memory_space<vmem>>, %arg14: memref<1x128xf32, #tpu.memory_space<vmem>>, %arg15: memref<512x128xf32, #tpu.memory_space<vmem>>) attributes {dimension_semantics = [#tpu.dimension_semantics<parallel>, #tpu.dimension_semantics<arbitrary>], iteration_bounds = array<i64: 1, 2>, scalar_prefetch = 0 : i64, scratch_operands = 1 : i64, tpu.core_type = #tpu.core_type<tc>, window_params = [{transform_indices = @transform_0, window_bounds = array<i64: 512, 128>}, {transform_indices = @transform_1, window_bounds = array<i64: 512, 512>}, {pipeline_mode = #tpu.pipeline_mode<synchronous>, transform_indices = @transform_2, window_bounds = array<i64: 512, 1>}, {pipeline_mode = #tpu.pipeline_mode<synchronous>, transform_indices = @transform_3, window_bounds = array<i64: 256, 512>}, {pipeline_mode = #tpu.pipeline_mode<synchronous>, transform_indices = @transform_4, window_bounds = array<i64: 256, 1>}, {pipeline_mode = #tpu.pipeline_mode<synchronous>, transform_indices = @transform_5, window_bounds = array<i64: 128, 256>}, {pipeline_mode = #tpu.pipeline_mode<synchronous>, transform_indices = @transform_6, window_bounds = array<i64: 128, 1>}, {pipeline_mode = #tpu.pipeline_mode<synchronous>, transform_indices = @transform_7, window_bounds = array<i64: 1, 128>}, {pipeline_mode = #tpu.pipeline_mode<synchronous>, transform_indices = @transform_8, window_bounds = array<i64: 1, 1>}, {transform_indices = @transform_9, window_bounds = array<i64: 512, 128>}, {transform_indices = @transform_10, window_bounds = array<i64: 256, 128>}, {transform_indices = @transform_11, window_bounds = array<i64: 128, 128>}, {transform_indices = @transform_12, window_bounds = array<i64: 1, 128>}]} {
    %c0_i32 = arith.constant 0 : i32
    %0 = arith.cmpi eq, %arg1, %c0_i32 : i32
    %1 = arith.extui %0 : i1 to i32
    %c0_i32_0 = arith.constant 0 : i32
    %2 = arith.cmpi ne, %1, %c0_i32_0 : i32
    scf.if %2 {
      %cst_9 = arith.constant 0.000000e+00 : f32
      %12 = vector.broadcast %cst_9 : f32 to vector<512x128xf32>
      %c0_10 = arith.constant 0 : index
      %c0_11 = arith.constant 0 : index
      %13 = vector.load %arg15[%c0_10, %c0_11] : memref<512x128xf32, #tpu.memory_space<vmem>>, vector<512x128xf32>
      tpu.vector_store %arg15[%c0_10, %c0_11], %12 {strides = array<i32>} : memref<512x128xf32, #tpu.memory_space<vmem>>, vector<512x128xf32>,
    } else {
    }
    %c0 = arith.constant 0 : index
    %c0_1 = arith.constant 0 : index
    %3 = vector.load %arg15[%c0, %c0_1] : memref<512x128xf32, #tpu.memory_space<vmem>>, vector<512x128xf32>
    %c0_2 = arith.constant 0 : index
    %c0_3 = arith.constant 0 : index
    %4 = vector.load %arg3[%c0_2, %c0_3] : memref<512x512xbf16, #tpu.memory_space<vmem>>, vector<512x512xbf16>
    %c0_4 = arith.constant 0 : index
    %c0_5 = arith.constant 0 : index
    %5 = vector.load %arg2[%c0_4, %c0_5] : memref<512x128xbf16, #tpu.memory_space<vmem>>, vector<512x128xbf16>
    %cst = arith.constant dense<0.000000e+00> : vector<512x128xf32>
    %6 = tpu.matmul %4, %5, %cst {dimension_numbers = #tpu.dot_dimension_numbers<[1], [0], [0], [1], [0, 0, 1, 1], [], []>} : vector<512x512xbf16>, vector<512x128xbf16>, vector<512x128xf32> -> vector<512x128xf32>
    %7 = arith.addf %3, %6 : vector<512x128xf32>
    %c0_6 = arith.constant 0 : index
    %c0_7 = arith.constant 0 : index
    %8 = vector.load %arg15[%c0_6, %c0_7] : memref<512x128xf32, #tpu.memory_space<vmem>>, vector<512x128xf32>
    tpu.vector_store %arg15[%c0_6, %c0_7], %7 {strides = array<i32>} : memref<512x128xf32, #tpu.memory_space<vmem>>, vector<512x128xf32>,
    %c1_i32 = arith.constant 1 : i32
    %9 = arith.cmpi eq, %arg1, %c1_i32 : i32
    %10 = arith.extui %9 : i1 to i32
    %c0_i32_8 = arith.constant 0 : i32
    %11 = arith.cmpi ne, %10, %c0_i32_8 : i32
    scf.if %11 {
      %c0_9 = arith.constant 0 : index
      %c0_10 = arith.constant 0 : index
      %12 = vector.load %arg15[%c0_9, %c0_10] : memref<512x128xf32, #tpu.memory_space<vmem>>, vector<512x128xf32>
      %c0_11 = arith.constant 0 : index
      %c0_12 = arith.constant 0 : index
      %13 = vector.load %arg4[%c0_11, %c0_12] : memref<512x1xf32, #tpu.memory_space<vmem>>, vector<512x1xf32>
      %14 = vector.broadcast %13 : vector<512x1xf32> to vector<512x128xf32>
      %15 = arith.addf %12, %14 : vector<512x128xf32>
      %cst_13 = arith.constant 0.000000e+00 : f32
      %16 = vector.broadcast %cst_13 : f32 to vector<512x128xf32>
      %17 = arith.cmpf oge, %15, %16 : vector<512x128xf32>
      %cst_14 = arith.constant 2.000000e-01 : f32
      %18 = vector.broadcast %cst_14 : f32 to vector<512x128xf32>
      %19 = arith.mulf %18, %15 : vector<512x128xf32>
      %20 = arith.select %17, %15, %19 : vector<512x128xi1>, vector<512x128xf32>
      %c0_15 = arith.constant 0 : index
      %c0_16 = arith.constant 0 : index
      %21 = vector.load %arg11[%c0_15, %c0_16] : memref<512x128xf32, #tpu.memory_space<vmem>>, vector<512x128xf32>
      %22 = arith.mulf %20, %21 : vector<512x128xf32>
      %c0_17 = arith.constant 0 : index
      %c0_18 = arith.constant 0 : index
      %23 = vector.load %arg5[%c0_17, %c0_18] : memref<256x512xbf16, #tpu.memory_space<vmem>>, vector<256x512xbf16>
      %24 = arith.truncf %22 : vector<512x128xf32> to vector<512x128xbf16>
      %cst_19 = arith.constant dense<0.000000e+00> : vector<256x128xf32>
      %25 = tpu.matmul %23, %24, %cst_19 {dimension_numbers = #tpu.dot_dimension_numbers<[1], [0], [0], [1], [0, 0, 1, 1], [], []>} : vector<256x512xbf16>, vector<512x128xbf16>, vector<256x128xf32> -> vector<256x128xf32>
      %c0_20 = arith.constant 0 : index
      %c0_21 = arith.constant 0 : index
      %26 = vector.load %arg6[%c0_20, %c0_21] : memref<256x1xf32, #tpu.memory_space<vmem>>, vector<256x1xf32>
      %27 = vector.broadcast %26 : vector<256x1xf32> to vector<256x128xf32>
      %28 = arith.addf %25, %27 : vector<256x128xf32>
      %cst_22 = arith.constant 0.000000e+00 : f32
      %29 = vector.broadcast %cst_22 : f32 to vector<256x128xf32>
      %30 = arith.cmpf oge, %28, %29 : vector<256x128xf32>
      %cst_23 = arith.constant 2.000000e-01 : f32
      %31 = vector.broadcast %cst_23 : f32 to vector<256x128xf32>
      %32 = arith.mulf %31, %28 : vector<256x128xf32>
      %33 = arith.select %30, %28, %32 : vector<256x128xi1>, vector<256x128xf32>
      %c0_24 = arith.constant 0 : index
      %c0_25 = arith.constant 0 : index
      %34 = vector.load %arg12[%c0_24, %c0_25] : memref<256x128xf32, #tpu.memory_space<vmem>>, vector<256x128xf32>
      %35 = arith.mulf %33, %34 : vector<256x128xf32>
      %c0_26 = arith.constant 0 : index
      %c0_27 = arith.constant 0 : index
      %36 = vector.load %arg7[%c0_26, %c0_27] : memref<128x256xbf16, #tpu.memory_space<vmem>>, vector<128x256xbf16>
      %37 = arith.truncf %35 : vector<256x128xf32> to vector<256x128xbf16>
      %cst_28 = arith.constant dense<0.000000e+00> : vector<128x128xf32>
      %38 = tpu.matmul %36, %37, %cst_28 {dimension_numbers = #tpu.dot_dimension_numbers<[1], [0], [0], [1], [0, 0, 1, 1], [], []>} : vector<128x256xbf16>, vector<256x128xbf16>, vector<128x128xf32> -> vector<128x128xf32>
      %c0_29 = arith.constant 0 : index
      %c0_30 = arith.constant 0 : index
      %39 = vector.load %arg8[%c0_29, %c0_30] : memref<128x1xf32, #tpu.memory_space<vmem>>, vector<128x1xf32>
      %40 = vector.broadcast %39 : vector<128x1xf32> to vector<128x128xf32>
      %41 = arith.addf %38, %40 : vector<128x128xf32>
      %cst_31 = arith.constant 0.000000e+00 : f32
      %42 = vector.broadcast %cst_31 : f32 to vector<128x128xf32>
      %43 = arith.cmpf oge, %41, %42 : vector<128x128xf32>
      %cst_32 = arith.constant 2.000000e-01 : f32
      %44 = vector.broadcast %cst_32 : f32 to vector<128x128xf32>
      %45 = arith.mulf %44, %41 : vector<128x128xf32>
      %46 = arith.select %43, %41, %45 : vector<128x128xi1>, vector<128x128xf32>
      %c0_33 = arith.constant 0 : index
      %c0_34 = arith.constant 0 : index
      %47 = vector.load %arg13[%c0_33, %c0_34] : memref<128x128xf32, #tpu.memory_space<vmem>>, vector<128x128xf32>
      %48 = arith.mulf %46, %47 : vector<128x128xf32>
      %c0_35 = arith.constant 0 : index
      %c0_36 = arith.constant 0 : index
      %49 = vector.load %arg9[%c0_35, %c0_36] : memref<1x128xbf16, #tpu.memory_space<vmem>>, vector<1x128xbf16>
      %50 = arith.truncf %48 : vector<128x128xf32> to vector<128x128xbf16>
      %cst_37 = arith.constant dense<0.000000e+00> : vector<1x128xf32>
      %51 = tpu.matmul %49, %50, %cst_37 {dimension_numbers = #tpu.dot_dimension_numbers<[1], [0], [0], [1], [0, 0, 1, 1], [], []>} : vector<1x128xbf16>, vector<128x128xbf16>, vector<1x128xf32> -> vector<1x128xf32>
      %c0_38 = arith.constant 0 : index
      %c0_39 = arith.constant 0 : index
      %52 = vector.load %arg10[%c0_38, %c0_39] : memref<1x1xf32, #tpu.memory_space<vmem>>, vector<1x1xf32>
      %53 = vector.broadcast %52 : vector<1x1xf32> to vector<1x128xf32>
      %54 = arith.addf %51, %53 : vector<1x128xf32>
      %55 = arith.negf %54 : vector<1x128xf32>
      %56 = math.exp %55 : vector<1x128xf32>
      %cst_40 = arith.constant 1.000000e+00 : f32
      %57 = vector.broadcast %cst_40 : f32 to vector<1x128xf32>
      %58 = arith.addf %57, %56 : vector<1x128xf32>
      %59 = arith.divf %57, %58 : vector<1x128xf32>
      %c0_41 = arith.constant 0 : index
      %c0_42 = arith.constant 0 : index
      %60 = vector.load %arg14[%c0_41, %c0_42] : memref<1x128xf32, #tpu.memory_space<vmem>>, vector<1x128xf32>
      tpu.vector_store %arg14[%c0_41, %c0_42], %59 {strides = array<i32>} : memref<1x128xf32, #tpu.memory_space<vmem>>, vector<1x128xf32>,
    } else {
    }
    return
  }
  func.func @transform_0(%arg0: i32, %arg1: i32) -> (i32, i32) {
    %c0_i32 = arith.constant 0 : i32
    return %arg1, %arg0 : i32, i32
  }
  func.func @transform_1(%arg0: i32, %arg1: i32) -> (i32, i32) {
    %c0_i32 = arith.constant 0 : i32
    %c0_i32_0 = arith.constant 0 : i32
    return %c0_i32, %arg1 : i32, i32
  }
  func.func @transform_2(%arg0: i32, %arg1: i32) -> (i32, i32) {
    %c0_i32 = arith.constant 0 : i32
    %c0_i32_0 = arith.constant 0 : i32
    %c0_i32_1 = arith.constant 0 : i32
    return %c0_i32, %c0_i32_0 : i32, i32
  }
  func.func @transform_3(%arg0: i32, %arg1: i32) -> (i32, i32) {
    %c0_i32 = arith.constant 0 : i32
    %c0_i32_0 = arith.constant 0 : i32
    %c0_i32_1 = arith.constant 0 : i32
    return %c0_i32, %c0_i32_0 : i32, i32
  }
  func.func @transform_4(%arg0: i32, %arg1: i32) -> (i32, i32) {
    %c0_i32 = arith.constant 0 : i32
    %c0_i32_0 = arith.constant 0 : i32
    %c0_i32_1 = arith.constant 0 : i32
    return %c0_i32, %c0_i32_0 : i32, i32
  }
  func.func @transform_5(%arg0: i32, %arg1: i32) -> (i32, i32) {
    %c0_i32 = arith.constant 0 : i32
    %c0_i32_0 = arith.constant 0 : i32
    %c0_i32_1 = arith.constant 0 : i32
    return %c0_i32, %c0_i32_0 : i32, i32
  }
  func.func @transform_6(%arg0: i32, %arg1: i32) -> (i32, i32) {
    %c0_i32 = arith.constant 0 : i32
    %c0_i32_0 = arith.constant 0 : i32
    %c0_i32_1 = arith.constant 0 : i32
    return %c0_i32, %c0_i32_0 : i32, i32
  }
  func.func @transform_7(%arg0: i32, %arg1: i32) -> (i32, i32) {
    %c0_i32 = arith.constant 0 : i32
    %c0_i32_0 = arith.constant 0 : i32
    %c0_i32_1 = arith.constant 0 : i32
    return %c0_i32, %c0_i32_0 : i32, i32
  }
  func.func @transform_8(%arg0: i32, %arg1: i32) -> (i32, i32) {
    %c0_i32 = arith.constant 0 : i32
    %c0_i32_0 = arith.constant 0 : i32
    %c0_i32_1 = arith.constant 0 : i32
    return %c0_i32, %c0_i32_0 : i32, i32
  }
  func.func @transform_9(%arg0: i32, %arg1: i32) -> (i32, i32) {
    %c0_i32 = arith.constant 0 : i32
    %c0_i32_0 = arith.constant 0 : i32
    return %c0_i32, %arg0 : i32, i32
  }
  func.func @transform_10(%arg0: i32, %arg1: i32) -> (i32, i32) {
    %c0_i32 = arith.constant 0 : i32
    %c0_i32_0 = arith.constant 0 : i32
    return %c0_i32, %arg0 : i32, i32
  }
  func.func @transform_11(%arg0: i32, %arg1: i32) -> (i32, i32) {
    %c0_i32 = arith.constant 0 : i32
    %c0_i32_0 = arith.constant 0 : i32
    return %c0_i32, %arg0 : i32, i32
  }
  func.func @transform_12(%arg0: i32, %arg1: i32) -> (i32, i32) {
    %c0_i32 = arith.constant 0 : i32
    %c0_i32_0 = arith.constant 0 : i32
    return %c0_i32, %arg0 : i32, i32
  }
}

</mosaic_0001>

<llo_original>
// kernel: tpu_custom_call.1
$region0: #{tpu_custom_call.1}
  #allocation0 [shape = 'u32[]', space=smem, size = 0x4, offset = 0x4, fixed_abs, tag = 'smem constant byte address 0x4 - core index']
  #allocation1 [shape = 'u32[144,128]{1,0:T(1,128)}', space=vmem, size = 0x12000, scoped, tag = 'internal scratch']
  #allocation2 [shape = 'f32[512,128]{1,0:T(8,128)}', space=vmem, size = 0x40000, scoped, tag = 'scratch operand']
  #allocation3 [shape = 'f32[1,1]{1,0:T(1,128)S(1)}', space=vmem, size = 0x200, scoped, tag = 'scoped memory for tpu_custom_call.1']
  %s0 = inlined_call_operand.vmem [shape: bf16[1024,128], index: 0, kind: input, shape index: {}]
  %s1 = inlined_call_operand.hbm [shape: bf16[512,1024], index: 1, kind: input, shape index: {}]
  %s2 = inlined_call_operand.vmem [shape: f32[512,1], index: 2, kind: input, shape index: {}]
  %s3 = inlined_call_operand.hbm [shape: bf16[256,512], index: 3, kind: input, shape index: {}]
  %s4 = inlined_call_operand.vmem [shape: f32[256,1], index: 4, kind: input, shape index: {}]
  %s5 = inlined_call_operand.vmem [shape: bf16[128,256], index: 5, kind: input, shape index: {}]
  %s6 = inlined_call_operand.vmem [shape: f32[128,1], index: 6, kind: input, shape index: {}]
  %s7 = inlined_call_operand.vmem [shape: bf16[1,128], index: 7, kind: input, shape index: {}]
  %s8 = inlined_call_operand.<no memory space> [shape: f32[1,1], index: 8, kind: input, shape index: {}]
  %s9 = inlined_call_operand.hbm [shape: f32[512,128], index: 9, kind: input, shape index: {}]
  %s10 = inlined_call_operand.vmem [shape: f32[256,128], index: 10, kind: input, shape index: {}]
  %s11 = inlined_call_operand.hbm [shape: f32[128,128], index: 11, kind: input, shape index: {}]
  %s12 = inlined_call_operand.hbm [shape: f32[1,128], index: 12, kind: output, shape index: {}]
  %s13 = sld [smem:[#allocation0]]
  $region105: #{tpu_custom_call.1} parent=0
    _
  %s15 = ssub.s32 1, %s13
  %s16 = scalar_select 0, %s15, %s13
  %v17 = vstv %s8
  %18 = vst [vmem:[#allocation3] sm:$0x1] %v17
  $region1: #{tpu_custom_call.1} parent=0
    #allocation4 [shape = 'u8[1048576]{0}', space=vmem, size = 0x100000, scoped, tag = 'input window, operand 1']
    #allocation5 [shape = 's32[2]{0}', space=sflag, size = 0x8, scoped, tag = 'scoped memory for tpu_custom_call.1']
    #allocation6 [shape = 's32[2]{0}', space=sflag, size = 0x8, scoped, tag = 'scoped memory for tpu_custom_call.1']
    #allocation7 [shape = 'u8[262144]{0}', space=vmem, size = 0x40000, scoped, tag = 'input window, operand 3, single buffered']
    #allocation8 [shape = 's32[1]{0}', space=sflag, size = 0x4, scoped, tag = 'scoped memory for tpu_custom_call.1']
    #allocation9 [shape = 'u8[262144]{0}', space=vmem, size = 0x40000, scoped, tag = 'input window, operand 9, single buffered']
    #allocation10 [shape = 'u8[65536]{0}', space=vmem, size = 0x10000, scoped, tag = 'input window, operand 11, single buffered']
    #allocation11 [shape = 's32[1]{0}', space=sflag, size = 0x4, scoped, tag = 'scoped memory for tpu_custom_call.1']
    #allocation12 [shape = 'u8[512]{0}', space=vmem, size = 0x400, scoped, tag = 'output window, operand 0, single buffered']
    %19 = vsyncpa [#allocation5], 0
    %s20 = scalar_lea.sflag [#allocation5], 1
    %21 = vsyncpa %s20, 0
    %22 = vsyncpa [#allocation8], 0
    %23 = vsyncpa [#allocation11], 0
    %24 = vsyncpa [#allocation6], 0
    loop: start=0, step=1, limit=4
    $region2: #{tpu_custom_call.1} parent=1 // loop_pre_header
      _
    $region3: #{tpu_custom_call.1} parent=1 // loop_header
      %s26 = sphi 0, %s30
      %p27 = scmp.ge.s32.totalorder %s26, 4
      %s33 = sphi 0, %s45
      %s34 = sphi 0, %s41
      %s35 = sphi 0, %s33
      %s36 = sphi 0, %s34
      %s37 = sphi 0, %s35
      %s38 = sphi 0, %s36
      %s50 = sphi 0, %s52
      %s53 = sphi 0, %s50
      %s54 = sphi 0, %s53
      %s70 = sphi 0, %s54
      %s76 = sphi 0, %s78
      %s79 = sphi 0, %s76
      %s80 = sphi 0, %s79
      %s96 = sphi 0, %s80
      %s100 = sphi 0, %s100
      %s102 = sphi 0, %s100
      %s103 = sphi 0, %s102
      %s117 = sphi 0, %s103
      %s121 = sphi 0, %s121
      %s123 = sphi 0, %s121
      %s124 = sphi 0, %s123
      %s138 = sphi 0, %s124
      %s142 = sphi 0, %s142
      %s144 = sphi 0, %s142
      %s145 = sphi 0, %s144
      %s159 = sphi 0, %s145
      %s163 = sphi 0, %s163
      %s165 = sphi 0, %s163
      %s166 = sphi 0, %s165
      %s180 = sphi 0, %s166
      %s184 = sphi 0, %s184
      %s186 = sphi 0, %s184
      %s187 = sphi 0, %s186
      %s201 = sphi 0, %s187
      %s205 = sphi 0, %s205
      %s207 = sphi 0, %s205
      %s208 = sphi 0, %s207
      %s222 = sphi 0, %s208
      %s226 = sphi 0, %s226
      %s228 = sphi 0, %s226
      %s229 = sphi 0, %s228
      %s243 = sphi 0, %s229
      %s249 = sphi 0, %s251
      %s252 = sphi 0, %s249
      %s253 = sphi 0, %s252
      %s269 = sphi 0, %s253
      %s275 = sphi 0, %s277
      %s278 = sphi 0, %s275
      %s279 = sphi 0, %s278
      %s295 = sphi 0, %s279
      %s301 = sphi 0, %s303
      %s304 = sphi 0, %s301
      %s305 = sphi 0, %s304
      %s321 = sphi 0, %s305
      %s327 = sphi 0, %s329
      %s330 = sphi 0, %s327
      %s331 = sphi 0, %s330
      %s347 = sphi 0, %s331
    $region4: #{tpu_custom_call.1} parent=1 // loop_header_branch
      %29 = sbr.rel (%p27) target = $region8
    $region5: #{tpu_custom_call.1} parent=1 // loop_body
      %s31 = ssub.s32 %s26, 1
      %s32 = ssub.s32 %s26, 2
      %s39 = sadd.s32 1, %s34
      %p40 = scmp.ge.s32.totalorder %s39, 2
      %s41 = scalar_select %p40, 0, %s39
      %s42 = sadd.s32 1, %s33
      %s43 = scalar_select %p40, %s42, %s33
      %p44 = scmp.ge.s32.totalorder %s43, 1
      %s45 = scalar_select %p44, 0, %s43
      %s46 = ssub.s32 %s34, %s41
      %s47 = ssub.s32 %s33, %s45
      %s48 = sor.u32 %s46, %s47
      %p49 = scmp.eq.s32.totalorder %s48, 0
      %s51 = sadd.s32 %s50, 1
      %s52 = scalar_select %p49, %s50, %s51
      %p55 = pneg %p49
      %p56 = scmp.eq.s32.totalorder %s26, 1
      %p57 = por %p55, %p56
      %p58 = scmp.ne.s32.totalorder %s50, %s53
      %p59 = scmp.eq.s32.totalorder %s26, 0
      %p60 = por %p58, %p59
      %p61 = scmp.ne.s32.totalorder %s50, %s53
      %p62 = scmp.eq.s32.totalorder %s31, 1
      %p63 = por %p61, %p62
      %p64 = scmp.ne.s32.totalorder %s53, %s54
      %p65 = scmp.eq.s32.totalorder %s31, 0
      %p66 = por %p64, %p65
      %p67 = scmp.ne.s32.totalorder %s53, %s54
      %p68 = scmp.eq.s32.totalorder %s32, 1
      %p69 = por %p67, %p68
      %p71 = scmp.ne.s32.totalorder %s54, %s70
      %p72 = scmp.eq.s32.totalorder %s32, 0
      %p73 = por %p71, %p72
      %s74 = ssub.s32 %s34, %s41
      %p75 = scmp.eq.s32.totalorder %s74, 0
      %s77 = sadd.s32 %s76, 1
      %s78 = scalar_select %p75, %s76, %s77
      %p81 = pneg %p75
      %p82 = scmp.eq.s32.totalorder %s26, 1
      %p83 = por %p81, %p82
      %p84 = scmp.ne.s32.totalorder %s76, %s79
      %p85 = scmp.eq.s32.totalorder %s26, 0
      %p86 = por %p84, %p85
      %p87 = scmp.ne.s32.totalorder %s76, %s79
      %p88 = scmp.eq.s32.totalorder %s31, 1
      %p89 = por %p87, %p88
      %p90 = scmp.ne.s32.totalorder %s79, %s80
      %p91 = scmp.eq.s32.totalorder %s31, 0
      %p92 = por %p90, %p91
      %p93 = scmp.ne.s32.totalorder %s79, %s80
      %p94 = scmp.eq.s32.totalorder %s32, 1
      %p95 = por %p93, %p94
      %p97 = scmp.ne.s32.totalorder %s80, %s96
      %p98 = scmp.eq.s32.totalorder %s32, 0
      %p99 = por %p97, %p98
      %s101 = sadd.s32 %s100, 1
      %p104 = scmp.eq.s32.totalorder %s26, 1
      %p105 = scmp.ne.s32.totalorder %s100, %s102
      %p106 = scmp.eq.s32.totalorder %s26, 0
      %p107 = por %p105, %p106
      %p108 = scmp.ne.s32.totalorder %s100, %s102
      %p109 = scmp.eq.s32.totalorder %s31, 1
      %p110 = por %p108, %p109
      %p111 = scmp.ne.s32.totalorder %s102, %s103
      %p112 = scmp.eq.s32.totalorder %s31, 0
      %p113 = por %p111, %p112
      %p114 = scmp.ne.s32.totalorder %s102, %s103
      %p115 = scmp.eq.s32.totalorder %s32, 1
      %p116 = por %p114, %p115
      %p118 = scmp.ne.s32.totalorder %s103, %s117
      %p119 = scmp.eq.s32.totalorder %s32, 0
      %p120 = por %p118, %p119
      %s122 = sadd.s32 %s121, 1
      %p125 = scmp.eq.s32.totalorder %s26, 1
      %p126 = scmp.ne.s32.totalorder %s121, %s123
      %p127 = scmp.eq.s32.totalorder %s26, 0
      %p128 = por %p126, %p127
      %p129 = scmp.ne.s32.totalorder %s121, %s123
      %p130 = scmp.eq.s32.totalorder %s31, 1
      %p131 = por %p129, %p130
      %p132 = scmp.ne.s32.totalorder %s123, %s124
      %p133 = scmp.eq.s32.totalorder %s31, 0
      %p134 = por %p132, %p133
      %p135 = scmp.ne.s32.totalorder %s123, %s124
      %p136 = scmp.eq.s32.totalorder %s32, 1
      %p137 = por %p135, %p136
      %p139 = scmp.ne.s32.totalorder %s124, %s138
      %p140 = scmp.eq.s32.totalorder %s32, 0
      %p141 = por %p139, %p140
      %s143 = sadd.s32 %s142, 1
      %p146 = scmp.eq.s32.totalorder %s26, 1
      %p147 = scmp.ne.s32.totalorder %s142, %s144
      %p148 = scmp.eq.s32.totalorder %s26, 0
      %p149 = por %p147, %p148
      %p150 = scmp.ne.s32.totalorder %s142, %s144
      %p151 = scmp.eq.s32.totalorder %s31, 1
      %p152 = por %p150, %p151
      %p153 = scmp.ne.s32.totalorder %s144, %s145
      %p154 = scmp.eq.s32.totalorder %s31, 0
      %p155 = por %p153, %p154
      %p156 = scmp.ne.s32.totalorder %s144, %s145
      %p157 = scmp.eq.s32.totalorder %s32, 1
      %p158 = por %p156, %p157
      %p160 = scmp.ne.s32.totalorder %s145, %s159
      %p161 = scmp.eq.s32.totalorder %s32, 0
      %p162 = por %p160, %p161
      %s164 = sadd.s32 %s163, 1
      %p167 = scmp.eq.s32.totalorder %s26, 1
      %p168 = scmp.ne.s32.totalorder %s163, %s165
      %p169 = scmp.eq.s32.totalorder %s26, 0
      %p170 = por %p168, %p169
      %p171 = scmp.ne.s32.totalorder %s163, %s165
      %p172 = scmp.eq.s32.totalorder %s31, 1
      %p173 = por %p171, %p172
      %p174 = scmp.ne.s32.totalorder %s165, %s166
      %p175 = scmp.eq.s32.totalorder %s31, 0
      %p176 = por %p174, %p175
      %p177 = scmp.ne.s32.totalorder %s165, %s166
      %p178 = scmp.eq.s32.totalorder %s32, 1
      %p179 = por %p177, %p178
      %p181 = scmp.ne.s32.totalorder %s166, %s180
      %p182 = scmp.eq.s32.totalorder %s32, 0
      %p183 = por %p181, %p182
      %s185 = sadd.s32 %s184, 1
      %p188 = scmp.eq.s32.totalorder %s26, 1
      %p189 = scmp.ne.s32.totalorder %s184, %s186
      %p190 = scmp.eq.s32.totalorder %s26, 0
      %p191 = por %p189, %p190
      %p192 = scmp.ne.s32.totalorder %s184, %s186
      %p193 = scmp.eq.s32.totalorder %s31, 1
      %p194 = por %p192, %p193
      %p195 = scmp.ne.s32.totalorder %s186, %s187
      %p196 = scmp.eq.s32.totalorder %s31, 0
      %p197 = por %p195, %p196
      %p198 = scmp.ne.s32.totalorder %s186, %s187
      %p199 = scmp.eq.s32.totalorder %s32, 1
      %p200 = por %p198, %p199
      %p202 = scmp.ne.s32.totalorder %s187, %s201
      %p203 = scmp.eq.s32.totalorder %s32, 0
      %p204 = por %p202, %p203
      %s206 = sadd.s32 %s205, 1
      %p209 = scmp.eq.s32.totalorder %s26, 1
      %p210 = scmp.ne.s32.totalorder %s205, %s207
      %p211 = scmp.eq.s32.totalorder %s26, 0
      %p212 = por %p210, %p211
      %p213 = scmp.ne.s32.totalorder %s205, %s207
      %p214 = scmp.eq.s32.totalorder %s31, 1
      %p215 = por %p213, %p214
      %p216 = scmp.ne.s32.totalorder %s207, %s208
      %p217 = scmp.eq.s32.totalorder %s31, 0
      %p218 = por %p216, %p217
      %p219 = scmp.ne.s32.totalorder %s207, %s208
      %p220 = scmp.eq.s32.totalorder %s32, 1
      %p221 = por %p219, %p220
      %p223 = scmp.ne.s32.totalorder %s208, %s222
      %p224 = scmp.eq.s32.totalorder %s32, 0
      %p225 = por %p223, %p224
      %s227 = sadd.s32 %s226, 1
      %p230 = scmp.eq.s32.totalorder %s26, 1
      %p231 = scmp.ne.s32.totalorder %s226, %s228
      %p232 = scmp.eq.s32.totalorder %s26, 0
      %p233 = por %p231, %p232
      %p234 = scmp.ne.s32.totalorder %s226, %s228
      %p235 = scmp.eq.s32.totalorder %s31, 1
      %p236 = por %p234, %p235
      %p237 = scmp.ne.s32.totalorder %s228, %s229
      %p238 = scmp.eq.s32.totalorder %s31, 0
      %p239 = por %p237, %p238
      %p240 = scmp.ne.s32.totalorder %s228, %s229
      %p241 = scmp.eq.s32.totalorder %s32, 1
      %p242 = por %p240, %p241
      %p244 = scmp.ne.s32.totalorder %s229, %s243
      %p245 = scmp.eq.s32.totalorder %s32, 0
      %p246 = por %p244, %p245
      %s247 = ssub.s32 %s33, %s45
      %p248 = scmp.eq.s32.totalorder %s247, 0
      %s250 = sadd.s32 %s249, 1
      %s251 = scalar_select %p248, %s249, %s250
      %p254 = pneg %p248
      %p255 = scmp.eq.s32.totalorder %s26, 1
      %p256 = por %p254, %p255
      %p257 = scmp.ne.s32.totalorder %s249, %s252
      %p258 = scmp.eq.s32.totalorder %s26, 0
      %p259 = por %p257, %p258
      %p260 = scmp.ne.s32.totalorder %s249, %s252
      %p261 = scmp.eq.s32.totalorder %s31, 1
      %p262 = por %p260, %p261
      %p263 = scmp.ne.s32.totalorder %s252, %s253
      %p264 = scmp.eq.s32.totalorder %s31, 0
      %p265 = por %p263, %p264
      %p266 = scmp.ne.s32.totalorder %s252, %s253
      %p267 = scmp.eq.s32.totalorder %s32, 1
      %p268 = por %p266, %p267
      %p270 = scmp.ne.s32.totalorder %s253, %s269
      %p271 = scmp.eq.s32.totalorder %s32, 0
      %p272 = por %p270, %p271
      %s273 = ssub.s32 %s33, %s45
      %p274 = scmp.eq.s32.totalorder %s273, 0
      %s276 = sadd.s32 %s275, 1
      %s277 = scalar_select %p274, %s275, %s276
      %p280 = pneg %p274
      %p281 = scmp.eq.s32.totalorder %s26, 1
      %p282 = por %p280, %p281
      %p283 = scmp.ne.s32.totalorder %s275, %s278
      %p284 = scmp.eq.s32.totalorder %s26, 0
      %p285 = por %p283, %p284
      %p286 = scmp.ne.s32.totalorder %s275, %s278
      %p287 = scmp.eq.s32.totalorder %s31, 1
      %p288 = por %p286, %p287
      %p289 = scmp.ne.s32.totalorder %s278, %s279
      %p290 = scmp.eq.s32.totalorder %s31, 0
      %p291 = por %p289, %p290
      %p292 = scmp.ne.s32.totalorder %s278, %s279
      %p293 = scmp.eq.s32.totalorder %s32, 1
      %p294 = por %p292, %p293
      %p296 = scmp.ne.s32.totalorder %s279, %s295
      %p297 = scmp.eq.s32.totalorder %s32, 0
      %p298 = por %p296, %p297
      %s299 = ssub.s32 %s33, %s45
      %p300 = scmp.eq.s32.totalorder %s299, 0
      %s302 = sadd.s32 %s301, 1
      %s303 = scalar_select %p300, %s301, %s302
      %p306 = pneg %p300
      %p307 = scmp.eq.s32.totalorder %s26, 1
      %p308 = por %p306, %p307
      %p309 = scmp.ne.s32.totalorder %s301, %s304
      %p310 = scmp.eq.s32.totalorder %s26, 0
      %p311 = por %p309, %p310
      %p312 = scmp.ne.s32.totalorder %s301, %s304
      %p313 = scmp.eq.s32.totalorder %s31, 1
      %p314 = por %p312, %p313
      %p315 = scmp.ne.s32.totalorder %s304, %s305
      %p316 = scmp.eq.s32.totalorder %s31, 0
      %p317 = por %p315, %p316
      %p318 = scmp.ne.s32.totalorder %s304, %s305
      %p319 = scmp.eq.s32.totalorder %s32, 1
      %p320 = por %p318, %p319
      %p322 = scmp.ne.s32.totalorder %s305, %s321
      %p323 = scmp.eq.s32.totalorder %s32, 0
      %p324 = por %p322, %p323
      %s325 = ssub.s32 %s33, %s45
      %p326 = scmp.eq.s32.totalorder %s325, 0
      %s328 = sadd.s32 %s327, 1
      %s329 = scalar_select %p326, %s327, %s328
      %p332 = pneg %p326
      %p333 = scmp.eq.s32.totalorder %s26, 1
      %p334 = por %p332, %p333
      %p335 = scmp.ne.s32.totalorder %s327, %s330
      %p336 = scmp.eq.s32.totalorder %s26, 0
      %p337 = por %p335, %p336
      %p338 = scmp.ne.s32.totalorder %s327, %s330
      %p339 = scmp.eq.s32.totalorder %s31, 1
      %p340 = por %p338, %p339
      %p341 = scmp.ne.s32.totalorder %s330, %s331
      %p342 = scmp.eq.s32.totalorder %s31, 0
      %p343 = por %p341, %p342
      %p344 = scmp.ne.s32.totalorder %s330, %s331
      %p345 = scmp.eq.s32.totalorder %s32, 1
      %p346 = por %p344, %p345
      %p348 = scmp.ne.s32.totalorder %s331, %s347
      %p349 = scmp.eq.s32.totalorder %s32, 0
      %p350 = por %p348, %p349
      %p351 = scmp.le.s32.totalorder 1, %s26
      %p352 = scmp.lt.s32.totalorder %s26, 3
      %p353 = pnand %p351, %p352
      %p354 = pneg %p353
      // Predicated region
      $region9: #{tpu_custom_call.1} parent=5 // pred_check
        _
      $region10: #{tpu_custom_call.1} parent=5 // pred_check_branch
        %356 = sbr.rel (%p353) target = $region12
      $region11: #{tpu_custom_call.1} parent=5 // pred_region
        %s357 = ssub.s32 %s26, 1
        // Predicated region
        $region13: #{tpu_custom_call.1} parent=11 // pred_check
          %p358 = pneg %p113
        $region14: #{tpu_custom_call.1} parent=11 // pred_check_branch
          %360 = sbr.rel (%p358) target = $region16
        $region15: #{tpu_custom_call.1} parent=11 // pred_region
          _
        $region16: #{tpu_custom_call.1} parent=11 // pred_fallthru
          _
        // Predicated region
        $region17: #{tpu_custom_call.1} parent=11 // pred_check
          %p361 = pneg %p134
        $region18: #{tpu_custom_call.1} parent=11 // pred_check_branch
          %363 = sbr.rel (%p361) target = $region20
        $region19: #{tpu_custom_call.1} parent=11 // pred_region
          %s365 = ssub.s32 8192, 8192
          %366 = vsyncadd [#allocation8], %s365
          %s367 = sshll.u32 [#allocation7], 4
          %s368 = int_to_ptr.vmem [resolvable:$true] %s367
          %373 = dma.hbm_to_vmem [thread:$0]  %s3, 8192, %s368, [#allocation8], 256, 256, 16
        $region20: #{tpu_custom_call.1} parent=11 // pred_fallthru
          _
        // Predicated region
        $region21: #{tpu_custom_call.1} parent=11 // pred_check
          %p374 = pneg %p155
        $region22: #{tpu_custom_call.1} parent=11 // pred_check_branch
          %376 = sbr.rel (%p374) target = $region24
        $region23: #{tpu_custom_call.1} parent=11 // pred_region
          _
        $region24: #{tpu_custom_call.1} parent=11 // pred_fallthru
          _
        // Predicated region
        $region25: #{tpu_custom_call.1} parent=11 // pred_check
          %p377 = pneg %p176
        $region26: #{tpu_custom_call.1} parent=11 // pred_check_branch
          %379 = sbr.rel (%p377) target = $region28
        $region27: #{tpu_custom_call.1} parent=11 // pred_region
          _
        $region28: #{tpu_custom_call.1} parent=11 // pred_fallthru
          _
        // Predicated region
        $region29: #{tpu_custom_call.1} parent=11 // pred_check
          %p380 = pneg %p197
        $region30: #{tpu_custom_call.1} parent=11 // pred_check_branch
          %382 = sbr.rel (%p380) target = $region32
        $region31: #{tpu_custom_call.1} parent=11 // pred_region
          _
        $region32: #{tpu_custom_call.1} parent=11 // pred_fallthru
          _
        // Predicated region
        $region33: #{tpu_custom_call.1} parent=11 // pred_check
          %p383 = pneg %p218
        $region34: #{tpu_custom_call.1} parent=11 // pred_check_branch
          %385 = sbr.rel (%p383) target = $region36
        $region35: #{tpu_custom_call.1} parent=11 // pred_region
          _
        $region36: #{tpu_custom_call.1} parent=11 // pred_fallthru
          _
        // Predicated region
        $region37: #{tpu_custom_call.1} parent=11 // pred_check
          %p386 = pneg %p239
        $region38: #{tpu_custom_call.1} parent=11 // pred_check_branch
          %388 = sbr.rel (%p386) target = $region40
        $region39: #{tpu_custom_call.1} parent=11 // pred_region
          _
        $region40: #{tpu_custom_call.1} parent=11 // pred_fallthru
          _
        // Predicated region
        $region41: #{tpu_custom_call.1} parent=11 // pred_check
          %p389 = pneg %p265
        $region42: #{tpu_custom_call.1} parent=11 // pred_check_branch
          %391 = sbr.rel (%p389) target = $region44
        $region43: #{tpu_custom_call.1} parent=11 // pred_region
          %s393 = ssub.s32 8192, 8192
          %394 = vsyncadd [#allocation8], %s393
          %s395 = smul.addr %s35, 128
          %s396 = scalar_lea.hbm %s9, %s395
          %s397 = sshll.u32 [#allocation9], 4
          %s398 = int_to_ptr.vmem [resolvable:$true] %s397
          %403 = dma.hbm_to_vmem [thread:$0]  %s396, 8192, %s398, [#allocation8], 128, 128, 8
        $region44: #{tpu_custom_call.1} parent=11 // pred_fallthru
          _
        // Predicated region
        $region45: #{tpu_custom_call.1} parent=11 // pred_check
          %p404 = pneg %p291
        $region46: #{tpu_custom_call.1} parent=11 // pred_check_branch
          %406 = sbr.rel (%p404) target = $region48
        $region47: #{tpu_custom_call.1} parent=11 // pred_region
          %p407 = scmp.lt.s32.totalorder %s35, 0
          %s408 = scalar_select %p407, %s35, 0
          %s409 = smul.addr %s408, 8
          %s410 = scalar_lea.vmem %s10, %s409
        $region48: #{tpu_custom_call.1} parent=11 // pred_fallthru
          _
        // Predicated region
        $region49: #{tpu_custom_call.1} parent=11 // pred_check
          %p411 = pneg %p317
        $region50: #{tpu_custom_call.1} parent=11 // pred_check_branch
          %413 = sbr.rel (%p411) target = $region52
        $region51: #{tpu_custom_call.1} parent=11 // pred_region
          %s415 = ssub.s32 2048, 2048
          %416 = vsyncadd [#allocation11], %s415
          %s417 = smul.addr %s35, 128
          %s418 = scalar_lea.hbm %s11, %s417
          %s419 = sshll.u32 [#allocation10], 4
          %s420 = int_to_ptr.vmem [resolvable:$true] %s419
          %425 = dma.hbm_to_vmem [thread:$0]  %s418, 2048, %s420, [#allocation11], 128, 128, 8
        $region52: #{tpu_custom_call.1} parent=11 // pred_fallthru
          _
      $region12: #{tpu_custom_call.1} parent=5 // pred_fallthru
        _
      %p426 = scmp.lt.s32.totalorder %s26, 2
      // Predicated region
      $region53: #{tpu_custom_call.1} parent=5 // pred_check
        %p427 = pneg %p426
      $region54: #{tpu_custom_call.1} parent=5 // pred_check_branch
        %429 = sbr.rel (%p427) target = $region56
      $region55: #{tpu_custom_call.1} parent=5 // pred_region
        // Predicated region
        $region57: #{tpu_custom_call.1} parent=55 // pred_check
          %p430 = pneg %p60
        $region58: #{tpu_custom_call.1} parent=55 // pred_check_branch
          %432 = sbr.rel (%p430) target = $region60
        $region59: #{tpu_custom_call.1} parent=55 // pred_region
          %s433 = smul.u32 64, %s34
          %p434 = scmp.lt.s32.totalorder %s433, 127
          %s435 = scalar_select %p434, %s433, 127
          %p436 = scmp.lt.s32.totalorder %s33, 0
          %s437 = scalar_select %p436, %s33, 0
          %s438 = sadd.s32 %s437, %s435
          %s439 = smul.addr %s438, 4
          %s440 = scalar_lea.vmem %s0, %s439
          %s441 = smul.u32 64, %s34
        $region60: #{tpu_custom_call.1} parent=55 // pred_fallthru
          _
        // Predicated region
        $region61: #{tpu_custom_call.1} parent=55 // pred_check
          %p442 = pneg %p86
        $region62: #{tpu_custom_call.1} parent=55 // pred_check_branch
          %444 = sbr.rel (%p442) target = $region64
        $region63: #{tpu_custom_call.1} parent=55 // pred_region
          %s445 = sand.u32 %s76, 1
          %s446 = scalar_lea.sflag [#allocation5], %s445
          %s447 = sand.u32 %s76, 1
          %s448 = smul.addr %s447, 1024
          %s449 = scalar_lea.vmem [#allocation4], %s448
          %s450 = smul.u32 4, %s34
          %s452 = ssub.s32 16384, 16384
          %453 = vsyncadd %s446, %s452
          %s454 = smul.addr %s450, 64
          %s455 = scalar_lea.hbm %s1, %s454
          %s456 = sshll.u32 %s449, 4
          %s457 = int_to_ptr.vmem [resolvable:$true] %s456
          %462 = dma.hbm_to_vmem [thread:$0]  %s455, 16384, %s457, %s446, 512, 256, 16
        $region64: #{tpu_custom_call.1} parent=55 // pred_fallthru
          _
      $region56: #{tpu_custom_call.1} parent=5 // pred_fallthru
        _
      %p463 = scmp.le.s32.totalorder 1, %s26
      %p464 = scmp.lt.s32.totalorder %s26, 3
      %p465 = pnand %p463, %p464
      %p466 = pneg %p465
      // Predicated region
      $region65: #{tpu_custom_call.1} parent=5 // pred_check
        _
      $region66: #{tpu_custom_call.1} parent=5 // pred_check_branch
        %468 = sbr.rel (%p465) target = $region68
      $region67: #{tpu_custom_call.1} parent=5 // pred_region
        %s469 = ssub.s32 %s26, 1
        %s470 = sand.u32 %s79, 1
        %s471 = scalar_lea.sflag [#allocation5], %s470
        %s472 = sand.u32 %s79, 1
        %s473 = smul.addr %s472, 1024
        %s474 = scalar_lea.vmem [#allocation4], %s473
        // Predicated region
        $region69: #{tpu_custom_call.1} parent=67 // pred_check
          %p475 = pneg %p92
        $region70: #{tpu_custom_call.1} parent=67 // pred_check_branch
          %477 = sbr.rel (%p475) target = $region72
        $region71: #{tpu_custom_call.1} parent=67 // pred_region
          %478 = dma.done %s471, 16384
        $region72: #{tpu_custom_call.1} parent=67 // pred_fallthru
          _
        // Predicated region
        $region73: #{tpu_custom_call.1} parent=67 // pred_check
          %p479 = pneg %p134
        $region74: #{tpu_custom_call.1} parent=67 // pred_check_branch
          %481 = sbr.rel (%p479) target = $region76
        $region75: #{tpu_custom_call.1} parent=67 // pred_region
          %482 = dma.done [#allocation8], 8192
        $region76: #{tpu_custom_call.1} parent=67 // pred_fallthru
          _
        // Predicated region
        $region77: #{tpu_custom_call.1} parent=67 // pred_check
          %p483 = pneg %p265
        $region78: #{tpu_custom_call.1} parent=67 // pred_check_branch
          %485 = sbr.rel (%p483) target = $region80
        $region79: #{tpu_custom_call.1} parent=67 // pred_region
          %486 = dma.done [#allocation8], 8192
        $region80: #{tpu_custom_call.1} parent=67 // pred_fallthru
          _
        // Predicated region
        $region81: #{tpu_custom_call.1} parent=67 // pred_check
          %p487 = pneg %p317
        $region82: #{tpu_custom_call.1} parent=67 // pred_check_branch
          %489 = sbr.rel (%p487) target = $region84
        $region83: #{tpu_custom_call.1} parent=67 // pred_region
          %490 = dma.done [#allocation11], 2048
        $region84: #{tpu_custom_call.1} parent=67 // pred_fallthru
          _
        %s491 = smul.u32 64, %s36
        %p492 = scmp.lt.s32.totalorder %s491, 127
        %s493 = scalar_select %p492, %s491, 127
        %p494 = scmp.lt.s32.totalorder %s35, 0
        %s495 = scalar_select %p494, %s35, 0
        %s496 = sadd.s32 %s495, %s493
        %s497 = smul.addr %s496, 4
        %s498 = scalar_lea.vmem %s0, %s497
        %p499 = pneg %p66
        %p500 = pneg %p63
        %s501 = sand.u32 %s79, 1
        %s502 = scalar_lea.sflag [#allocation5], %s501
        %s503 = sand.u32 %s79, 1
        %s504 = smul.addr %s503, 1024
        %s505 = scalar_lea.vmem [#allocation4], %s504
        %p506 = pneg %p92
        %p507 = pneg %p89
        %p508 = pneg %p113
        %p509 = pneg %p110
        %p510 = pneg %p134
        %p511 = pneg %p131
        %p512 = pneg %p155
        %p513 = pneg %p152
        %p514 = pneg %p176
        %p515 = pneg %p173
        %p516 = pneg %p197
        %p517 = pneg %p194
        %p518 = pneg %p218
        %p519 = pneg %p215
        %p520 = pneg %p239
        %p521 = pneg %p236
        %p522 = pneg %p265
        %p523 = pneg %p262
        %p524 = scmp.lt.s32.totalorder %s35, 0
        %s525 = scalar_select %p524, %s35, 0
        %s526 = smul.addr %s525, 8
        %s527 = scalar_lea.vmem %s10, %s526
        %p528 = pneg %p291
        %p529 = pneg %p288
        %p530 = pneg %p317
        %p531 = pneg %p314
        %p532 = pneg %p343
        %p533 = pneg %p340
        %s534 = smul.u32 64, %s36
        %p535 = scmp.lt.s32.totalorder %s534, 127
        %s536 = scalar_select %p535, %s534, 127
        %p537 = scmp.lt.s32.totalorder %s35, 0
        %s538 = scalar_select %p537, %s35, 0
        %s539 = sadd.s32 %s538, %s536
        %s540 = smul.addr %s539, 4
        %s541 = scalar_lea.vmem %s0, %s540
        %s542 = smul.u32 64, %s36
        %s543 = smul.u32 4, %s36
        %p544 = scmp.lt.s32.totalorder %s35, 0
        %s545 = scalar_select %p544, %s35, 0
        %s546 = smul.addr %s545, 8
        %s547 = scalar_lea.vmem %s10, %s546
        %p549 = scmp.eq.s32.totalorder %s36, 0
        // Predicated region
        $region85: #{tpu_custom_call.1} parent=67 // pred_check
          %p550 = pneg %p549
        $region86: #{tpu_custom_call.1} parent=67 // pred_check_branch
          %552 = sbr.rel (%p550) target = $region88
        $region87: #{tpu_custom_call.1} parent=67 // pred_region
          %553 = vst [vmem:[#allocation2] sm:$0xff] 0.0
          %554 = vst [vmem:[#allocation2 + $0x8] sm:$0xff] 0.0
          %555 = vst [vmem:[#allocation2 + $0x10] sm:$0xff] 0.0
          %556 = vst [vmem:[#allocation2 + $0x18] sm:$0xff] 0.0
          %557 = vst [vmem:[#allocation2 + $0x20] sm:$0xff] 0.0
          %558 = vst [vmem:[#allocation2 + $0x28] sm:$0xff] 0.0
          %559 = vst [vmem:[#allocation2 + $0x30] sm:$0xff] 0.0
          %560 = vst [vmem:[#allocation2 + $0x38] sm:$0xff] 0.0
          %561 = vst [vmem:[#allocation2 + $0x40] sm:$0xff] 0.0
          %562 = vst [vmem:[#allocation2 + $0x48] sm:$0xff] 0.0
          %563 = vst [vmem:[#allocation2 + $0x50] sm:$0xff] 0.0
          %564 = vst [vmem:[#allocation2 + $0x58] sm:$0xff] 0.0
          %565 = vst [vmem:[#allocation2 + $0x60] sm:$0xff] 0.0
          %566 = vst [vmem:[#allocation2 + $0x68] sm:$0xff] 0.0
          %567 = vst [vmem:[#allocation2 + $0x70] sm:$0xff] 0.0
          %568 = vst [vmem:[#allocation2 + $0x78] sm:$0xff] 0.0
          %569 = vst [vmem:[#allocation2 + $0x80] sm:$0xff] 0.0
          %570 = vst [vmem:[#allocation2 + $0x88] sm:$0xff] 0.0
          %571 = vst [vmem:[#allocation2 + $0x90] sm:$0xff] 0.0
          %572 = vst [vmem:[#allocation2 + $0x98] sm:$0xff] 0.0
          %573 = vst [vmem:[#allocation2 + $0xa0] sm:$0xff] 0.0
          %574 = vst [vmem:[#allocation2 + $0xa8] sm:$0xff] 0.0
          %575 = vst [vmem:[#allocation2 + $0xb0] sm:$0xff] 0.0
          %576 = vst [vmem:[#allocation2 + $0xb8] sm:$0xff] 0.0
          %577 = vst [vmem:[#allocation2 + $0xc0] sm:$0xff] 0.0
          %578 = vst [vmem:[#allocation2 + $0xc8] sm:$0xff] 0.0
          %579 = vst [vmem:[#allocation2 + $0xd0] sm:$0xff] 0.0
          %580 = vst [vmem:[#allocation2 + $0xd8] sm:$0xff] 0.0
          %581 = vst [vmem:[#allocation2 + $0xe0] sm:$0xff] 0.0
          %582 = vst [vmem:[#allocation2 + $0xe8] sm:$0xff] 0.0
          %583 = vst [vmem:[#allocation2 + $0xf0] sm:$0xff] 0.0
          %584 = vst [vmem:[#allocation2 + $0xf8] sm:$0xff] 0.0
          %585 = vst [vmem:[#allocation2 + $0x100] sm:$0xff] 0.0
          %586 = vst [vmem:[#allocation2 + $0x108] sm:$0xff] 0.0
          %587 = vst [vmem:[#allocation2 + $0x110] sm:$0xff] 0.0
          %588 = vst [vmem:[#allocation2 + $0x118] sm:$0xff] 0.0
          %589 = vst [vmem:[#allocation2 + $0x120] sm:$0xff] 0.0
          %590 = vst [vmem:[#allocation2 + $0x128] sm:$0xff] 0.0
          %591 = vst [vmem:[#allocation2 + $0x130] sm:$0xff] 0.0
          %592 = vst [vmem:[#allocation2 + $0x138] sm:$0xff] 0.0
          %593 = vst [vmem:[#allocation2 + $0x140] sm:$0xff] 0.0
          %594 = vst [vmem:[#allocation2 + $0x148] sm:$0xff] 0.0
          %595 = vst [vmem:[#allocation2 + $0x150] sm:$0xff] 0.0
          %596 = vst [vmem:[#allocation2 + $0x158] sm:$0xff] 0.0
          %597 = vst [vmem:[#allocation2 + $0x160] sm:$0xff] 0.0
          %598 = vst [vmem:[#allocation2 + $0x168] sm:$0xff] 0.0
          %599 = vst [vmem:[#allocation2 + $0x170] sm:$0xff] 0.0
          %600 = vst [vmem:[#allocation2 + $0x178] sm:$0xff] 0.0
          %601 = vst [vmem:[#allocation2 + $0x180] sm:$0xff] 0.0
          %602 = vst [vmem:[#allocation2 + $0x188] sm:$0xff] 0.0
          %603 = vst [vmem:[#allocation2 + $0x190] sm:$0xff] 0.0
          %604 = vst [vmem:[#allocation2 + $0x198] sm:$0xff] 0.0
          %605 = vst [vmem:[#allocation2 + $0x1a0] sm:$0xff] 0.0
          %606 = vst [vmem:[#allocation2 + $0x1a8] sm:$0xff] 0.0
          %607 = vst [vmem:[#allocation2 + $0x1b0] sm:$0xff] 0.0
          %608 = vst [vmem:[#allocation2 + $0x1b8] sm:$0xff] 0.0
          %609 = vst [vmem:[#allocation2 + $0x1c0] sm:$0xff] 0.0
          %610 = vst [vmem:[#allocation2 + $0x1c8] sm:$0xff] 0.0
          %611 = vst [vmem:[#allocation2 + $0x1d0] sm:$0xff] 0.0
          %612 = vst [vmem:[#allocation2 + $0x1d8] sm:$0xff] 0.0
          %613 = vst [vmem:[#allocation2 + $0x1e0] sm:$0xff] 0.0
          %614 = vst [vmem:[#allocation2 + $0x1e8] sm:$0xff] 0.0
          %615 = vst [vmem:[#allocation2 + $0x1f0] sm:$0xff] 0.0
          %616 = vst [vmem:[#allocation2 + $0x1f8] sm:$0xff] 0.0
        $region88: #{tpu_custom_call.1} parent=67 // pred_fallthru
          _
        %v617 = vld [vmem:[#allocation2] sm:$0xff]
        %v618 = vld [vmem:[#allocation2 + $0x8] sm:$0xff]
        %v619 = vld [vmem:[#allocation2 + $0x10] sm:$0xff]
        %v620 = vld [vmem:[#allocation2 + $0x18] sm:$0xff]
        %v621 = vld [vmem:[#allocation2 + $0x20] sm:$0xff]
        %v622 = vld [vmem:[#allocation2 + $0x28] sm:$0xff]
        %v623 = vld [vmem:[#allocation2 + $0x30] sm:$0xff]
        %v624 = vld [vmem:[#allocation2 + $0x38] sm:$0xff]
        %v625 = vld [vmem:[#allocation2 + $0x40] sm:$0xff]
        %v626 = vld [vmem:[#allocation2 + $0x48] sm:$0xff]
        %v627 = vld [vmem:[#allocation2 + $0x50] sm:$0xff]
        %v628 = vld [vmem:[#allocation2 + $0x58] sm:$0xff]
        %v629 = vld [vmem:[#allocation2 + $0x60] sm:$0xff]
        %v630 = vld [vmem:[#allocation2 + $0x68] sm:$0xff]
        %v631 = vld [vmem:[#allocation2 + $0x70] sm:$0xff]
        %v632 = vld [vmem:[#allocation2 + $0x78] sm:$0xff]
        %v633 = vld [vmem:[#allocation2 + $0x80] sm:$0xff]
        %v634 = vld [vmem:[#allocation2 + $0x88] sm:$0xff]
        %v635 = vld [vmem:[#allocation2 + $0x90] sm:$0xff]
        %v636 = vld [vmem:[#allocation2 + $0x98] sm:$0xff]
        %v637 = vld [vmem:[#allocation2 + $0xa0] sm:$0xff]
        %v638 = vld [vmem:[#allocation2 + $0xa8] sm:$0xff]
        %v639 = vld [vmem:[#allocation2 + $0xb0] sm:$0xff]
        %v640 = vld [vmem:[#allocation2 + $0xb8] sm:$0xff]
        %v641 = vld [vmem:[#allocation2 + $0xc0] sm:$0xff]
        %v642 = vld [vmem:[#allocation2 + $0xc8] sm:$0xff]
        %v643 = vld [vmem:[#allocation2 + $0xd0] sm:$0xff]
        %v644 = vld [vmem:[#allocation2 + $0xd8] sm:$0xff]
        %v645 = vld [vmem:[#allocation2 + $0xe0] sm:$0xff]
        %v646 = vld [vmem:[#allocation2 + $0xe8] sm:$0xff]
        %v647 = vld [vmem:[#allocation2 + $0xf0] sm:$0xff]
        %v648 = vld [vmem:[#allocation2 + $0xf8] sm:$0xff]
        %v649 = vld [vmem:[#allocation2 + $0x100] sm:$0xff]
        %v650 = vld [vmem:[#allocation2 + $0x108] sm:$0xff]
        %v651 = vld [vmem:[#allocation2 + $0x110] sm:$0xff]
        %v652 = vld [vmem:[#allocation2 + $0x118] sm:$0xff]
        %v653 = vld [vmem:[#allocation2 + $0x120] sm:$0xff]
        %v654 = vld [vmem:[#allocation2 + $0x128] sm:$0xff]
        %v655 = vld [vmem:[#allocation2 + $0x130] sm:$0xff]
        %v656 = vld [vmem:[#allocation2 + $0x138] sm:$0xff]
        %v657 = vld [vmem:[#allocation2 + $0x140] sm:$0xff]
        %v658 = vld [vmem:[#allocation2 + $0x148] sm:$0xff]
        %v659 = vld [vmem:[#allocation2 + $0x150] sm:$0xff]
        %v660 = vld [vmem:[#allocation2 + $0x158] sm:$0xff]
        %v661 = vld [vmem:[#allocation2 + $0x160] sm:$0xff]
        %v662 = vld [vmem:[#allocation2 + $0x168] sm:$0xff]
        %v663 = vld [vmem:[#allocation2 + $0x170] sm:$0xff]
        %v664 = vld [vmem:[#allocation2 + $0x178] sm:$0xff]
        %v665 = vld [vmem:[#allocation2 + $0x180] sm:$0xff]
        %v666 = vld [vmem:[#allocation2 + $0x188] sm:$0xff]
        %v667 = vld [vmem:[#allocation2 + $0x190] sm:$0xff]
        %v668 = vld [vmem:[#allocation2 + $0x198] sm:$0xff]
        %v669 = vld [vmem:[#allocation2 + $0x1a0] sm:$0xff]
        %v670 = vld [vmem:[#allocation2 + $0x1a8] sm:$0xff]
        %v671 = vld [vmem:[#allocation2 + $0x1b0] sm:$0xff]
        %v672 = vld [vmem:[#allocation2 + $0x1b8] sm:$0xff]
        %v673 = vld [vmem:[#allocation2 + $0x1c0] sm:$0xff]
        %v674 = vld [vmem:[#allocation2 + $0x1c8] sm:$0xff]
        %v675 = vld [vmem:[#allocation2 + $0x1d0] sm:$0xff]
        %v676 = vld [vmem:[#allocation2 + $0x1d8] sm:$0xff]
        %v677 = vld [vmem:[#allocation2 + $0x1e0] sm:$0xff]
        %v678 = vld [vmem:[#allocation2 + $0x1e8] sm:$0xff]
        %v679 = vld [vmem:[#allocation2 + $0x1f0] sm:$0xff]
        %v680 = vld [vmem:[#allocation2 + $0x1f8] sm:$0xff]
        %v681 = vld [vmem:[%s474] sm:$0xff]
        %v682 = vld [vmem:[%s474 + $0x8] sm:$0xff]
        %v683 = vld [vmem:[%s474 + $0x10] sm:$0xff]
        %v684 = vld [vmem:[%s474 + $0x18] sm:$0xff]
        %v685 = vld [vmem:[%s474 + $0x20] sm:$0xff]
        %v686 = vld [vmem:[%s474 + $0x28] sm:$0xff]
        %v687 = vld [vmem:[%s474 + $0x30] sm:$0xff]
        %v688 = vld [vmem:[%s474 + $0x38] sm:$0xff]
        %v689 = vld [vmem:[%s474 + $0x40] sm:$0xff]
        %v690 = vld [vmem:[%s474 + $0x48] sm:$0xff]
        %v691 = vld [vmem:[%s474 + $0x50] sm:$0xff]
        %v692 = vld [vmem:[%s474 + $0x58] sm:$0xff]
        %v693 = vld [vmem:[%s474 + $0x60] sm:$0xff]
        %v694 = vld [vmem:[%s474 + $0x68] sm:$0xff]
        %v695 = vld [vmem:[%s474 + $0x70] sm:$0xff]
        %v696 = vld [vmem:[%s474 + $0x78] sm:$0xff]
        %v697 = vld [vmem:[%s474 + $0x80] sm:$0xff]
        %v698 = vld [vmem:[%s474 + $0x88] sm:$0xff]
        %v699 = vld [vmem:[%s474 + $0x90] sm:$0xff]
        %v700 = vld [vmem:[%s474 + $0x98] sm:$0xff]
        %v701 = vld [vmem:[%s474 + $0xa0] sm:$0xff]
        %v702 = vld [vmem:[%s474 + $0xa8] sm:$0xff]
        %v703 = vld [vmem:[%s474 + $0xb0] sm:$0xff]
        %v704 = vld [vmem:[%s474 + $0xb8] sm:$0xff]
        %v705 = vld [vmem:[%s474 + $0xc0] sm:$0xff]
        %v706 = vld [vmem:[%s474 + $0xc8] sm:$0xff]
        %v707 = vld [vmem:[%s474 + $0xd0] sm:$0xff]
        %v708 = vld [vmem:[%s474 + $0xd8] sm:$0xff]
        %v709 = vld [vmem:[%s474 + $0xe0] sm:$0xff]
        %v710 = vld [vmem:[%s474 + $0xe8] sm:$0xff]
        %v711 = vld [vmem:[%s474 + $0xf0] sm:$0xff]
        %v712 = vld [vmem:[%s474 + $0xf8] sm:$0xff]
        %v713 = vld [vmem:[%s474 + $0x100] sm:$0xff]
        %v714 = vld [vmem:[%s474 + $0x108] sm:$0xff]
        %v715 = vld [vmem:[%s474 + $0x110] sm:$0xff]
        %v716 = vld [vmem:[%s474 + $0x118] sm:$0xff]
        %v717 = vld [vmem:[%s474 + $0x120] sm:$0xff]
        %v718 = vld [vmem:[%s474 + $0x128] sm:$0xff]
        %v719 = vld [vmem:[%s474 + $0x130] sm:$0xff]
        %v720 = vld [vmem:[%s474 + $0x138] sm:$0xff]
        %v721 = vld [vmem:[%s474 + $0x140] sm:$0xff]
        %v722 = vld [vmem:[%s474 + $0x148] sm:$0xff]
        %v723 = vld [vmem:[%s474 + $0x150] sm:$0xff]
        %v724 = vld [vmem:[%s474 + $0x158] sm:$0xff]
        %v725 = vld [vmem:[%s474 + $0x160] sm:$0xff]
        %v726 = vld [vmem:[%s474 + $0x168] sm:$0xff]
        %v727 = vld [vmem:[%s474 + $0x170] sm:$0xff]
        %v728 = vld [vmem:[%s474 + $0x178] sm:$0xff]
        %v729 = vld [vmem:[%s474 + $0x180] sm:$0xff]
        %v730 = vld [vmem:[%s474 + $0x188] sm:$0xff]
        %v731 = vld [vmem:[%s474 + $0x190] sm:$0xff]
        %v732 = vld [vmem:[%s474 + $0x198] sm:$0xff]
        %v733 = vld [vmem:[%s474 + $0x1a0] sm:$0xff]
        %v734 = vld [vmem:[%s474 + $0x1a8] sm:$0xff]
        %v735 = vld [vmem:[%s474 + $0x1b0] sm:$0xff]
        %v736 = vld [vmem:[%s474 + $0x1b8] sm:$0xff]
        %v737 = vld [vmem:[%s474 + $0x1c0] sm:$0xff]
        %v738 = vld [vmem:[%s474 + $0x1c8] sm:$0xff]
        %v739 = vld [vmem:[%s474 + $0x1d0] sm:$0xff]
        %v740 = vld [vmem:[%s474 + $0x1d8] sm:$0xff]
        %v741 = vld [vmem:[%s474 + $0x1e0] sm:$0xff]
        %v742 = vld [vmem:[%s474 + $0x1e8] sm:$0xff]
        %v743 = vld [vmem:[%s474 + $0x1f0] sm:$0xff]
        %v744 = vld [vmem:[%s474 + $0x1f8] sm:$0xff]
        %v745 = vld [vmem:[%s474 + $0x200] sm:$0xff]
        %v746 = vld [vmem:[%s474 + $0x208] sm:$0xff]
        %v747 = vld [vmem:[%s474 + $0x210] sm:$0xff]
        %v748 = vld [vmem:[%s474 + $0x218] sm:$0xff]
        %v749 = vld [vmem:[%s474 + $0x220] sm:$0xff]
        %v750 = vld [vmem:[%s474 + $0x228] sm:$0xff]
        %v751 = vld [vmem:[%s474 + $0x230] sm:$0xff]
        %v752 = vld [vmem:[%s474 + $0x238] sm:$0xff]
        %v753 = vld [vmem:[%s474 + $0x240] sm:$0xff]
        %v754 = vld [vmem:[%s474 + $0x248] sm:$0xff]
        %v755 = vld [vmem:[%s474 + $0x250] sm:$0xff]
        %v756 = vld [vmem:[%s474 + $0x258] sm:$0xff]
        %v757 = vld [vmem:[%s474 + $0x260] sm:$0xff]
        %v758 = vld [vmem:[%s474 + $0x268] sm:$0xff]
        %v759 = vld [vmem:[%s474 + $0x270] sm:$0xff]
        %v760 = vld [vmem:[%s474 + $0x278] sm:$0xff]
        %v761 = vld [vmem:[%s474 + $0x280] sm:$0xff]
        %v762 = vld [vmem:[%s474 + $0x288] sm:$0xff]
        %v763 = vld [vmem:[%s474 + $0x290] sm:$0xff]
        %v764 = vld [vmem:[%s474 + $0x298] sm:$0xff]
        %v765 = vld [vmem:[%s474 + $0x2a0] sm:$0xff]
        %v766 = vld [vmem:[%s474 + $0x2a8] sm:$0xff]
        %v767 = vld [vmem:[%s474 + $0x2b0] sm:$0xff]
        %v768 = vld [vmem:[%s474 + $0x2b8] sm:$0xff]
        %v769 = vld [vmem:[%s474 + $0x2c0] sm:$0xff]
        %v770 = vld [vmem:[%s474 + $0x2c8] sm:$0xff]
        %v771 = vld [vmem:[%s474 + $0x2d0] sm:$0xff]
        %v772 = vld [vmem:[%s474 + $0x2d8] sm:$0xff]
        %v773 = vld [vmem:[%s474 + $0x2e0] sm:$0xff]
        %v774 = vld [vmem:[%s474 + $0x2e8] sm:$0xff]
        %v775 = vld [vmem:[%s474 + $0x2f0] sm:$0xff]
        %v776 = vld [vmem:[%s474 + $0x2f8] sm:$0xff]
        %v777 = vld [vmem:[%s474 + $0x300] sm:$0xff]
        %v778 = vld [vmem:[%s474 + $0x308] sm:$0xff]
        %v779 = vld [vmem:[%s474 + $0x310] sm:$0xff]
        %v780 = vld [vmem:[%s474 + $0x318] sm:$0xff]
        %v781 = vld [vmem:[%s474 + $0x320] sm:$0xff]
        %v782 = vld [vmem:[%s474 + $0x328] sm:$0xff]
        %v783 = vld [vmem:[%s474 + $0x330] sm:$0xff]
        %v784 = vld [vmem:[%s474 + $0x338] sm:$0xff]
        %v785 = vld [vmem:[%s474 + $0x340] sm:$0xff]
        %v786 = vld [vmem:[%s474 + $0x348] sm:$0xff]
        %v787 = vld [vmem:[%s474 + $0x350] sm:$0xff]
        %v788 = vld [vmem:[%s474 + $0x358] sm:$0xff]
        %v789 = vld [vmem:[%s474 + $0x360] sm:$0xff]
        %v790 = vld [vmem:[%s474 + $0x368] sm:$0xff]
        %v791 = vld [vmem:[%s474 + $0x370] sm:$0xff]
        %v792 = vld [vmem:[%s474 + $0x378] sm:$0xff]
        %v793 = vld [vmem:[%s474 + $0x380] sm:$0xff]
        %v794 = vld [vmem:[%s474 + $0x388] sm:$0xff]
        %v795 = vld [vmem:[%s474 + $0x390] sm:$0xff]
        %v796 = vld [vmem:[%s474 + $0x398] sm:$0xff]
        %v797 = vld [vmem:[%s474 + $0x3a0] sm:$0xff]
        %v798 = vld [vmem:[%s474 + $0x3a8] sm:$0xff]
        %v799 = vld [vmem:[%s474 + $0x3b0] sm:$0xff]
        %v800 = vld [vmem:[%s474 + $0x3b8] sm:$0xff]
        %v801 = vld [vmem:[%s474 + $0x3c0] sm:$0xff]
        %v802 = vld [vmem:[%s474 + $0x3c8] sm:$0xff]
        %v803 = vld [vmem:[%s474 + $0x3d0] sm:$0xff]
        %v804 = vld [vmem:[%s474 + $0x3d8] sm:$0xff]
        %v805 = vld [vmem:[%s474 + $0x3e0] sm:$0xff]
        %v806 = vld [vmem:[%s474 + $0x3e8] sm:$0xff]
        %v807 = vld [vmem:[%s474 + $0x3f0] sm:$0xff]
        %v808 = vld [vmem:[%s474 + $0x3f8] sm:$0xff]
        %v809 = vld [vmem:[%s541] sm:$0xf]
        %v810 = vld [vmem:[%s541 + $0x4] sm:$0xf]
        %v811 = vld [vmem:[%s541 + $0x8] sm:$0xf]
        %v812 = vld [vmem:[%s541 + $0xc] sm:$0xf]
        %v813 = vld [vmem:[%s541 + $0x10] sm:$0xf]
        %v814 = vld [vmem:[%s541 + $0x14] sm:$0xf]
        %v815 = vld [vmem:[%s541 + $0x18] sm:$0xf]
        %v816 = vld [vmem:[%s541 + $0x1c] sm:$0xf]
        %v817 = vld [vmem:[%s541 + $0x20] sm:$0xf]
        %v818 = vld [vmem:[%s541 + $0x24] sm:$0xf]
        %v819 = vld [vmem:[%s541 + $0x28] sm:$0xf]
        %v820 = vld [vmem:[%s541 + $0x2c] sm:$0xf]
        %v821 = vld [vmem:[%s541 + $0x30] sm:$0xf]
        %v822 = vld [vmem:[%s541 + $0x34] sm:$0xf]
        %v823 = vld [vmem:[%s541 + $0x38] sm:$0xf]
        %v824 = vld [vmem:[%s541 + $0x3c] sm:$0xf]
        %v825 = vld [vmem:[%s541 + $0x40] sm:$0xf]
        %v826 = vld [vmem:[%s541 + $0x44] sm:$0xf]
        %v827 = vld [vmem:[%s541 + $0x48] sm:$0xf]
        %v828 = vld [vmem:[%s541 + $0x4c] sm:$0xf]
        %v829 = vld [vmem:[%s541 + $0x50] sm:$0xf]
        %v830 = vld [vmem:[%s541 + $0x54] sm:$0xf]
        %v831 = vld [vmem:[%s541 + $0x58] sm:$0xf]
        %v832 = vld [vmem:[%s541 + $0x5c] sm:$0xf]
        %v833 = vld [vmem:[%s541 + $0x60] sm:$0xf]
        %v834 = vld [vmem:[%s541 + $0x64] sm:$0xf]
        %v835 = vld [vmem:[%s541 + $0x68] sm:$0xf]
        %v836 = vld [vmem:[%s541 + $0x6c] sm:$0xf]
        %v837 = vld [vmem:[%s541 + $0x70] sm:$0xf]
        %v838 = vld [vmem:[%s541 + $0x74] sm:$0xf]
        %v839 = vld [vmem:[%s541 + $0x78] sm:$0xf]
        %v840 = vld [vmem:[%s541 + $0x7c] sm:$0xf]
        %v841 = vld [vmem:[%s541 + $0x80] sm:$0xf]
        %v842 = vld [vmem:[%s541 + $0x84] sm:$0xf]
        %v843 = vld [vmem:[%s541 + $0x88] sm:$0xf]
        %v844 = vld [vmem:[%s541 + $0x8c] sm:$0xf]
        %v845 = vld [vmem:[%s541 + $0x90] sm:$0xf]
        %v846 = vld [vmem:[%s541 + $0x94] sm:$0xf]
        %v847 = vld [vmem:[%s541 + $0x98] sm:$0xf]
        %v848 = vld [vmem:[%s541 + $0x9c] sm:$0xf]
        %v849 = vld [vmem:[%s541 + $0xa0] sm:$0xf]
        %v850 = vld [vmem:[%s541 + $0xa4] sm:$0xf]
        %v851 = vld [vmem:[%s541 + $0xa8] sm:$0xf]
        %v852 = vld [vmem:[%s541 + $0xac] sm:$0xf]
        %v853 = vld [vmem:[%s541 + $0xb0] sm:$0xf]
        %v854 = vld [vmem:[%s541 + $0xb4] sm:$0xf]
        %v855 = vld [vmem:[%s541 + $0xb8] sm:$0xf]
        %v856 = vld [vmem:[%s541 + $0xbc] sm:$0xf]
        %v857 = vld [vmem:[%s541 + $0xc0] sm:$0xf]
        %v858 = vld [vmem:[%s541 + $0xc4] sm:$0xf]
        %v859 = vld [vmem:[%s541 + $0xc8] sm:$0xf]
        %v860 = vld [vmem:[%s541 + $0xcc] sm:$0xf]
        %v861 = vld [vmem:[%s541 + $0xd0] sm:$0xf]
        %v862 = vld [vmem:[%s541 + $0xd4] sm:$0xf]
        %v863 = vld [vmem:[%s541 + $0xd8] sm:$0xf]
        %v864 = vld [vmem:[%s541 + $0xdc] sm:$0xf]
        %v865 = vld [vmem:[%s541 + $0xe0] sm:$0xf]
        %v866 = vld [vmem:[%s541 + $0xe4] sm:$0xf]
        %v867 = vld [vmem:[%s541 + $0xe8] sm:$0xf]
        %v868 = vld [vmem:[%s541 + $0xec] sm:$0xf]
        %v869 = vld [vmem:[%s541 + $0xf0] sm:$0xf]
        %v870 = vld [vmem:[%s541 + $0xf4] sm:$0xf]
        %v871 = vld [vmem:[%s541 + $0xf8] sm:$0xf]
        %v872 = vld [vmem:[%s541 + $0xfc] sm:$0xf]
        %v1001 = vunpack.c.l.b16 %v681
        %v1002 = vunpack.c.h.b16 %v681
        %v1003 = vunpack.c.l.b16 %v682
        %v1004 = vunpack.c.h.b16 %v682
        %v1005 = vunpack.c.l.b16 %v683
        %v1006 = vunpack.c.h.b16 %v683
        %v1007 = vunpack.c.l.b16 %v684
        %v1008 = vunpack.c.h.b16 %v684
        %v1009 = vunpack.c.l.b16 %v685
        %v1010 = vunpack.c.h.b16 %v685
        %v1011 = vunpack.c.l.b16 %v686
        %v1012 = vunpack.c.h.b16 %v686
        %v1013 = vunpack.c.l.b16 %v687
        %v1014 = vunpack.c.h.b16 %v687
        %v1015 = vunpack.c.l.b16 %v688
        %v1016 = vunpack.c.h.b16 %v688
        %v1017 = vunpack.c.l.b16 %v689
        %v1018 = vunpack.c.h.b16 %v689
        %v1019 = vunpack.c.l.b16 %v690
        %v1020 = vunpack.c.h.b16 %v690
        %v1021 = vunpack.c.l.b16 %v691
        %v1022 = vunpack.c.h.b16 %v691
        %v1023 = vunpack.c.l.b16 %v692
        %v1024 = vunpack.c.h.b16 %v692
        %v1025 = vunpack.c.l.b16 %v693
        %v1026 = vunpack.c.h.b16 %v693
        %v1027 = vunpack.c.l.b16 %v694
        %v1028 = vunpack.c.h.b16 %v694
        %v1029 = vunpack.c.l.b16 %v695
        %v1030 = vunpack.c.h.b16 %v695
        %v1031 = vunpack.c.l.b16 %v696
        %v1032 = vunpack.c.h.b16 %v696
        %v1033 = vunpack.c.l.b16 %v697
        %v1034 = vunpack.c.h.b16 %v697
        %v1035 = vunpack.c.l.b16 %v698
        %v1036 = vunpack.c.h.b16 %v698
        %v1037 = vunpack.c.l.b16 %v699
        %v1038 = vunpack.c.h.b16 %v699
        %v1039 = vunpack.c.l.b16 %v700
        %v1040 = vunpack.c.h.b16 %v700
        %v1041 = vunpack.c.l.b16 %v701
        %v1042 = vunpack.c.h.b16 %v701
        %v1043 = vunpack.c.l.b16 %v702
        %v1044 = vunpack.c.h.b16 %v702
        %v1045 = vunpack.c.l.b16 %v703
        %v1046 = vunpack.c.h.b16 %v703
        %v1047 = vunpack.c.l.b16 %v704
        %v1048 = vunpack.c.h.b16 %v704
        %v1049 = vunpack.c.l.b16 %v705
        %v1050 = vunpack.c.h.b16 %v705
        %v1051 = vunpack.c.l.b16 %v706
        %v1052 = vunpack.c.h.b16 %v706
        %v1053 = vunpack.c.l.b16 %v707
        %v1054 = vunpack.c.h.b16 %v707
        %v1055 = vunpack.c.l.b16 %v708
        %v1056 = vunpack.c.h.b16 %v708
        %v1057 = vunpack.c.l.b16 %v709
        %v1058 = vunpack.c.h.b16 %v709
        %v1059 = vunpack.c.l.b16 %v710
        %v1060 = vunpack.c.h.b16 %v710
        %v1061 = vunpack.c.l.b16 %v711
        %v1062 = vunpack.c.h.b16 %v711
        %v1063 = vunpack.c.l.b16 %v712
        %v1064 = vunpack.c.h.b16 %v712
        %v1065 = vunpack.c.l.b16 %v713
        %v1066 = vunpack.c.h.b16 %v713
        %v1067 = vunpack.c.l.b16 %v714
        %v1068 = vunpack.c.h.b16 %v714
        %v1069 = vunpack.c.l.b16 %v715
        %v1070 = vunpack.c.h.b16 %v715
        %v1071 = vunpack.c.l.b16 %v716
        %v1072 = vunpack.c.h.b16 %v716
        %v1073 = vunpack.c.l.b16 %v717
        %v1074 = vunpack.c.h.b16 %v717
        %v1075 = vunpack.c.l.b16 %v718
        %v1076 = vunpack.c.h.b16 %v718
        %v1077 = vunpack.c.l.b16 %v719
        %v1078 = vunpack.c.h.b16 %v719
        %v1079 = vunpack.c.l.b16 %v720
        %v1080 = vunpack.c.h.b16 %v720
        %v1081 = vunpack.c.l.b16 %v721
        %v1082 = vunpack.c.h.b16 %v721
        %v1083 = vunpack.c.l.b16 %v722
        %v1084 = vunpack.c.h.b16 %v722
        %v1085 = vunpack.c.l.b16 %v723
        %v1086 = vunpack.c.h.b16 %v723
        %v1087 = vunpack.c.l.b16 %v724
        %v1088 = vunpack.c.h.b16 %v724
        %v1089 = vunpack.c.l.b16 %v725
        %v1090 = vunpack.c.h.b16 %v725
        %v1091 = vunpack.c.l.b16 %v726
        %v1092 = vunpack.c.h.b16 %v726
        %v1093 = vunpack.c.l.b16 %v727
        %v1094 = vunpack.c.h.b16 %v727
        %v1095 = vunpack.c.l.b16 %v728
        %v1096 = vunpack.c.h.b16 %v728
        %v1097 = vunpack.c.l.b16 %v729
        %v1098 = vunpack.c.h.b16 %v729
        %v1099 = vunpack.c.l.b16 %v730
        %v1100 = vunpack.c.h.b16 %v730
        %v1101 = vunpack.c.l.b16 %v731
        %v1102 = vunpack.c.h.b16 %v731
        %v1103 = vunpack.c.l.b16 %v732
        %v1104 = vunpack.c.h.b16 %v732
        %v1105 = vunpack.c.l.b16 %v733
        %v1106 = vunpack.c.h.b16 %v733
        %v1107 = vunpack.c.l.b16 %v734
        %v1108 = vunpack.c.h.b16 %v734
        %v1109 = vunpack.c.l.b16 %v735
        %v1110 = vunpack.c.h.b16 %v735
        %v1111 = vunpack.c.l.b16 %v736
        %v1112 = vunpack.c.h.b16 %v736
        %v1113 = vunpack.c.l.b16 %v737
        %v1114 = vunpack.c.h.b16 %v737
        %v1115 = vunpack.c.l.b16 %v738
        %v1116 = vunpack.c.h.b16 %v738
        %v1117 = vunpack.c.l.b16 %v739
        %v1118 = vunpack.c.h.b16 %v739
        %v1119 = vunpack.c.l.b16 %v740
        %v1120 = vunpack.c.h.b16 %v740
        %v1121 = vunpack.c.l.b16 %v741
        %v1122 = vunpack.c.h.b16 %v741
        %v1123 = vunpack.c.l.b16 %v742
        %v1124 = vunpack.c.h.b16 %v742
        %v1125 = vunpack.c.l.b16 %v743
        %v1126 = vunpack.c.h.b16 %v743
        %v1127 = vunpack.c.l.b16 %v744
        %v1128 = vunpack.c.h.b16 %v744
        %v1129 = vunpack.c.l.b16 %v745
        %v1130 = vunpack.c.h.b16 %v745
        %v1131 = vunpack.c.l.b16 %v746
        %v1132 = vunpack.c.h.b16 %v746
        %v1133 = vunpack.c.l.b16 %v747
        %v1134 = vunpack.c.h.b16 %v747
        %v1135 = vunpack.c.l.b16 %v748
        %v1136 = vunpack.c.h.b16 %v748
        %v1137 = vunpack.c.l.b16 %v749
        %v1138 = vunpack.c.h.b16 %v749
        %v1139 = vunpack.c.l.b16 %v750
        %v1140 = vunpack.c.h.b16 %v750
        %v1141 = vunpack.c.l.b16 %v751
        %v1142 = vunpack.c.h.b16 %v751
        %v1143 = vunpack.c.l.b16 %v752
        %v1144 = vunpack.c.h.b16 %v752
        %v1145 = vunpack.c.l.b16 %v753
        %v1146 = vunpack.c.h.b16 %v753
        %v1147 = vunpack.c.l.b16 %v754
        %v1148 = vunpack.c.h.b16 %v754
        %v1149 = vunpack.c.l.b16 %v755
        %v1150 = vunpack.c.h.b16 %v755
        %v1151 = vunpack.c.l.b16 %v756
        %v1152 = vunpack.c.h.b16 %v756
        %v1153 = vunpack.c.l.b16 %v757
        %v1154 = vunpack.c.h.b16 %v757
        %v1155 = vunpack.c.l.b16 %v758
        %v1156 = vunpack.c.h.b16 %v758
        %v1157 = vunpack.c.l.b16 %v759
        %v1158 = vunpack.c.h.b16 %v759
        %v1159 = vunpack.c.l.b16 %v760
        %v1160 = vunpack.c.h.b16 %v760
        %v1161 = vunpack.c.l.b16 %v761
        %v1162 = vunpack.c.h.b16 %v761
        %v1163 = vunpack.c.l.b16 %v762
        %v1164 = vunpack.c.h.b16 %v762
        %v1165 = vunpack.c.l.b16 %v763
        %v1166 = vunpack.c.h.b16 %v763
        %v1167 = vunpack.c.l.b16 %v764
        %v1168 = vunpack.c.h.b16 %v764
        %v1169 = vunpack.c.l.b16 %v765
        %v1170 = vunpack.c.h.b16 %v765
        %v1171 = vunpack.c.l.b16 %v766
        %v1172 = vunpack.c.h.b16 %v766
        %v1173 = vunpack.c.l.b16 %v767
        %v1174 = vunpack.c.h.b16 %v767
        %v1175 = vunpack.c.l.b16 %v768
        %v1176 = vunpack.c.h.b16 %v768
        %v1177 = vunpack.c.l.b16 %v769
        %v1178 = vunpack.c.h.b16 %v769
        %v1179 = vunpack.c.l.b16 %v770
        %v1180 = vunpack.c.h.b16 %v770
        %v1181 = vunpack.c.l.b16 %v771
        %v1182 = vunpack.c.h.b16 %v771
        %v1183 = vunpack.c.l.b16 %v772
        %v1184 = vunpack.c.h.b16 %v772
        %v1185 = vunpack.c.l.b16 %v773
        %v1186 = vunpack.c.h.b16 %v773
        %v1187 = vunpack.c.l.b16 %v774
        %v1188 = vunpack.c.h.b16 %v774
        %v1189 = vunpack.c.l.b16 %v775
        %v1190 = vunpack.c.h.b16 %v775
        %v1191 = vunpack.c.l.b16 %v776
        %v1192 = vunpack.c.h.b16 %v776
        %v1193 = vunpack.c.l.b16 %v777
        %v1194 = vunpack.c.h.b16 %v777
        %v1195 = vunpack.c.l.b16 %v778
        %v1196 = vunpack.c.h.b16 %v778
        %v1197 = vunpack.c.l.b16 %v779
        %v1198 = vunpack.c.h.b16 %v779
        %v1199 = vunpack.c.l.b16 %v780
        %v1200 = vunpack.c.h.b16 %v780
        %v1201 = vunpack.c.l.b16 %v781
        %v1202 = vunpack.c.h.b16 %v781
        %v1203 = vunpack.c.l.b16 %v782
        %v1204 = vunpack.c.h.b16 %v782
        %v1205 = vunpack.c.l.b16 %v783
        %v1206 = vunpack.c.h.b16 %v783
        %v1207 = vunpack.c.l.b16 %v784
        %v1208 = vunpack.c.h.b16 %v784
        %v1209 = vunpack.c.l.b16 %v785
        %v1210 = vunpack.c.h.b16 %v785
        %v1211 = vunpack.c.l.b16 %v786
        %v1212 = vunpack.c.h.b16 %v786
        %v1213 = vunpack.c.l.b16 %v787
        %v1214 = vunpack.c.h.b16 %v787
        %v1215 = vunpack.c.l.b16 %v788
        %v1216 = vunpack.c.h.b16 %v788
        %v1217 = vunpack.c.l.b16 %v789
        %v1218 = vunpack.c.h.b16 %v789
        %v1219 = vunpack.c.l.b16 %v790
        %v1220 = vunpack.c.h.b16 %v790
        %v1221 = vunpack.c.l.b16 %v791
        %v1222 = vunpack.c.h.b16 %v791
        %v1223 = vunpack.c.l.b16 %v792
        %v1224 = vunpack.c.h.b16 %v792
        %v1225 = vunpack.c.l.b16 %v793
        %v1226 = vunpack.c.h.b16 %v793
        %v1227 = vunpack.c.l.b16 %v794
        %v1228 = vunpack.c.h.b16 %v794
        %v1229 = vunpack.c.l.b16 %v795
        %v1230 = vunpack.c.h.b16 %v795
        %v1231 = vunpack.c.l.b16 %v796
        %v1232 = vunpack.c.h.b16 %v796
        %v1233 = vunpack.c.l.b16 %v797
        %v1234 = vunpack.c.h.b16 %v797
        %v1235 = vunpack.c.l.b16 %v798
        %v1236 = vunpack.c.h.b16 %v798
        %v1237 = vunpack.c.l.b16 %v799
        %v1238 = vunpack.c.h.b16 %v799
        %v1239 = vunpack.c.l.b16 %v800
        %v1240 = vunpack.c.h.b16 %v800
        %v1241 = vunpack.c.l.b16 %v801
        %v1242 = vunpack.c.h.b16 %v801
        %v1243 = vunpack.c.l.b16 %v802
        %v1244 = vunpack.c.h.b16 %v802
        %v1245 = vunpack.c.l.b16 %v803
        %v1246 = vunpack.c.h.b16 %v803
        %v1247 = vunpack.c.l.b16 %v804
        %v1248 = vunpack.c.h.b16 %v804
        %v1249 = vunpack.c.l.b16 %v805
        %v1250 = vunpack.c.h.b16 %v805
        %v1251 = vunpack.c.l.b16 %v806
        %v1252 = vunpack.c.h.b16 %v806
        %v1253 = vunpack.c.l.b16 %v807
        %v1254 = vunpack.c.h.b16 %v807
        %v1255 = vunpack.c.l.b16 %v808
        %v1256 = vunpack.c.h.b16 %v808
        %v1257 = vpack.c.b16 %v1005, %v1001
        %v1258 = vpack.c.b16 %v1006, %v1002
        %v1259 = vpack.c.b16 %v1007, %v1003
        %v1260 = vpack.c.b16 %v1008, %v1004
        %v1261 = vpack.c.b16 %v1013, %v1009
        %v1262 = vpack.c.b16 %v1014, %v1010
        %v1263 = vpack.c.b16 %v1015, %v1011
        %v1264 = vpack.c.b16 %v1016, %v1012
        %v1265 = vpack.c.b16 %v1021, %v1017
        %v1266 = vpack.c.b16 %v1022, %v1018
        %v1267 = vpack.c.b16 %v1023, %v1019
        %v1268 = vpack.c.b16 %v1024, %v1020
        %v1269 = vpack.c.b16 %v1029, %v1025
        %v1270 = vpack.c.b16 %v1030, %v1026
        %v1271 = vpack.c.b16 %v1031, %v1027
        %v1272 = vpack.c.b16 %v1032, %v1028
        %v1273 = vpack.c.b16 %v1037, %v1033
        %v1274 = vpack.c.b16 %v1038, %v1034
        %v1275 = vpack.c.b16 %v1039, %v1035
        %v1276 = vpack.c.b16 %v1040, %v1036
        %v1277 = vpack.c.b16 %v1045, %v1041
        %v1278 = vpack.c.b16 %v1046, %v1042
        %v1279 = vpack.c.b16 %v1047, %v1043
        %v1280 = vpack.c.b16 %v1048, %v1044
        %v1281 = vpack.c.b16 %v1053, %v1049
        %v1282 = vpack.c.b16 %v1054, %v1050
        %v1283 = vpack.c.b16 %v1055, %v1051
        %v1284 = vpack.c.b16 %v1056, %v1052
        %v1285 = vpack.c.b16 %v1061, %v1057
        %v1286 = vpack.c.b16 %v1062, %v1058
        %v1287 = vpack.c.b16 %v1063, %v1059
        %v1288 = vpack.c.b16 %v1064, %v1060
        %v1289 = vpack.c.b16 %v1069, %v1065
        %v1290 = vpack.c.b16 %v1070, %v1066
        %v1291 = vpack.c.b16 %v1071, %v1067
        %v1292 = vpack.c.b16 %v1072, %v1068
        %v1293 = vpack.c.b16 %v1077, %v1073
        %v1294 = vpack.c.b16 %v1078, %v1074
        %v1295 = vpack.c.b16 %v1079, %v1075
        %v1296 = vpack.c.b16 %v1080, %v1076
        %v1297 = vpack.c.b16 %v1085, %v1081
        %v1298 = vpack.c.b16 %v1086, %v1082
        %v1299 = vpack.c.b16 %v1087, %v1083
        %v1300 = vpack.c.b16 %v1088, %v1084
        %v1301 = vpack.c.b16 %v1093, %v1089
        %v1302 = vpack.c.b16 %v1094, %v1090
        %v1303 = vpack.c.b16 %v1095, %v1091
        %v1304 = vpack.c.b16 %v1096, %v1092
        %v1305 = vpack.c.b16 %v1101, %v1097
        %v1306 = vpack.c.b16 %v1102, %v1098
        %v1307 = vpack.c.b16 %v1103, %v1099
        %v1308 = vpack.c.b16 %v1104, %v1100
        %v1309 = vpack.c.b16 %v1109, %v1105
        %v1310 = vpack.c.b16 %v1110, %v1106
        %v1311 = vpack.c.b16 %v1111, %v1107
        %v1312 = vpack.c.b16 %v1112, %v1108
        %v1313 = vpack.c.b16 %v1117, %v1113
        %v1314 = vpack.c.b16 %v1118, %v1114
        %v1315 = vpack.c.b16 %v1119, %v1115
        %v1316 = vpack.c.b16 %v1120, %v1116
        %v1317 = vpack.c.b16 %v1125, %v1121
        %v1318 = vpack.c.b16 %v1126, %v1122
        %v1319 = vpack.c.b16 %v1127, %v1123
        %v1320 = vpack.c.b16 %v1128, %v1124
        %v1321 = vpack.c.b16 %v1133, %v1129
        %v1322 = vpack.c.b16 %v1134, %v1130
        %v1323 = vpack.c.b16 %v1135, %v1131
        %v1324 = vpack.c.b16 %v1136, %v1132
        %v1325 = vpack.c.b16 %v1141, %v1137
        %v1326 = vpack.c.b16 %v1142, %v1138
        %v1327 = vpack.c.b16 %v1143, %v1139
        %v1328 = vpack.c.b16 %v1144, %v1140
        %v1329 = vpack.c.b16 %v1149, %v1145
        %v1330 = vpack.c.b16 %v1150, %v1146
        %v1331 = vpack.c.b16 %v1151, %v1147
        %v1332 = vpack.c.b16 %v1152, %v1148
        %v1333 = vpack.c.b16 %v1157, %v1153
        %v1334 = vpack.c.b16 %v1158, %v1154
        %v1335 = vpack.c.b16 %v1159, %v1155
        %v1336 = vpack.c.b16 %v1160, %v1156
        %v1337 = vpack.c.b16 %v1165, %v1161
        %v1338 = vpack.c.b16 %v1166, %v1162
        %v1339 = vpack.c.b16 %v1167, %v1163
        %v1340 = vpack.c.b16 %v1168, %v1164
        %v1341 = vpack.c.b16 %v1173, %v1169
        %v1342 = vpack.c.b16 %v1174, %v1170
        %v1343 = vpack.c.b16 %v1175, %v1171
        %v1344 = vpack.c.b16 %v1176, %v1172
        %v1345 = vpack.c.b16 %v1181, %v1177
        %v1346 = vpack.c.b16 %v1182, %v1178
        %v1347 = vpack.c.b16 %v1183, %v1179
        %v1348 = vpack.c.b16 %v1184, %v1180
        %v1349 = vpack.c.b16 %v1189, %v1185
        %v1350 = vpack.c.b16 %v1190, %v1186
        %v1351 = vpack.c.b16 %v1191, %v1187
        %v1352 = vpack.c.b16 %v1192, %v1188
        %v1353 = vpack.c.b16 %v1197, %v1193
        %v1354 = vpack.c.b16 %v1198, %v1194
        %v1355 = vpack.c.b16 %v1199, %v1195
        %v1356 = vpack.c.b16 %v1200, %v1196
        %v1357 = vpack.c.b16 %v1205, %v1201
        %v1358 = vpack.c.b16 %v1206, %v1202
        %v1359 = vpack.c.b16 %v1207, %v1203
        %v1360 = vpack.c.b16 %v1208, %v1204
        %v1361 = vpack.c.b16 %v1213, %v1209
        %v1362 = vpack.c.b16 %v1214, %v1210
        %v1363 = vpack.c.b16 %v1215, %v1211
        %v1364 = vpack.c.b16 %v1216, %v1212
        %v1365 = vpack.c.b16 %v1221, %v1217
        %v1366 = vpack.c.b16 %v1222, %v1218
        %v1367 = vpack.c.b16 %v1223, %v1219
        %v1368 = vpack.c.b16 %v1224, %v1220
        %v1369 = vpack.c.b16 %v1229, %v1225
        %v1370 = vpack.c.b16 %v1230, %v1226
        %v1371 = vpack.c.b16 %v1231, %v1227
        %v1372 = vpack.c.b16 %v1232, %v1228
        %v1373 = vpack.c.b16 %v1237, %v1233
        %v1374 = vpack.c.b16 %v1238, %v1234
        %v1375 = vpack.c.b16 %v1239, %v1235
        %v1376 = vpack.c.b16 %v1240, %v1236
        %v1377 = vpack.c.b16 %v1245, %v1241
        %v1378 = vpack.c.b16 %v1246, %v1242
        %v1379 = vpack.c.b16 %v1247, %v1243
        %v1380 = vpack.c.b16 %v1248, %v1244
        %v1381 = vpack.c.b16 %v1253, %v1249
        %v1382 = vpack.c.b16 %v1254, %v1250
        %v1383 = vpack.c.b16 %v1255, %v1251
        %v1384 = vpack.c.b16 %v1256, %v1252
        %v1577 = vunpack.c.l.b16 %v809
        %v1578 = vunpack.c.l.b16 %v810
        %v1579 = vunpack.c.l.b16 %v811
        %v1580 = vunpack.c.l.b16 %v812
        %v1581 = vunpack.c.l.b16 %v813
        %v1582 = vunpack.c.l.b16 %v814
        %v1583 = vunpack.c.l.b16 %v815
        %v1584 = vunpack.c.l.b16 %v816
        %v1585 = vunpack.c.l.b16 %v817
        %v1586 = vunpack.c.l.b16 %v818
        %v1587 = vunpack.c.l.b16 %v819
        %v1588 = vunpack.c.l.b16 %v820
        %v1589 = vunpack.c.l.b16 %v821
        %v1590 = vunpack.c.l.b16 %v822
        %v1591 = vunpack.c.l.b16 %v823
        %v1592 = vunpack.c.l.b16 %v824
        %v1593 = vunpack.c.l.b16 %v825
        %v1594 = vunpack.c.l.b16 %v826
        %v1595 = vunpack.c.l.b16 %v827
        %v1596 = vunpack.c.l.b16 %v828
        %v1597 = vunpack.c.l.b16 %v829
        %v1598 = vunpack.c.l.b16 %v830
        %v1599 = vunpack.c.l.b16 %v831
        %v1600 = vunpack.c.l.b16 %v832
        %v1601 = vunpack.c.l.b16 %v833
        %v1602 = vunpack.c.l.b16 %v834
        %v1603 = vunpack.c.l.b16 %v835
        %v1604 = vunpack.c.l.b16 %v836
        %v1605 = vunpack.c.l.b16 %v837
        %v1606 = vunpack.c.l.b16 %v838
        %v1607 = vunpack.c.l.b16 %v839
        %v1608 = vunpack.c.l.b16 %v840
        %v1609 = vunpack.c.l.b16 %v841
        %v1610 = vunpack.c.l.b16 %v842
        %v1611 = vunpack.c.l.b16 %v843
        %v1612 = vunpack.c.l.b16 %v844
        %v1613 = vunpack.c.l.b16 %v845
        %v1614 = vunpack.c.l.b16 %v846
        %v1615 = vunpack.c.l.b16 %v847
        %v1616 = vunpack.c.l.b16 %v848
        %v1617 = vunpack.c.l.b16 %v849
        %v1618 = vunpack.c.l.b16 %v850
        %v1619 = vunpack.c.l.b16 %v851
        %v1620 = vunpack.c.l.b16 %v852
        %v1621 = vunpack.c.l.b16 %v853
        %v1622 = vunpack.c.l.b16 %v854
        %v1623 = vunpack.c.l.b16 %v855
        %v1624 = vunpack.c.l.b16 %v856
        %v1625 = vunpack.c.l.b16 %v857
        %v1626 = vunpack.c.l.b16 %v858
        %v1627 = vunpack.c.l.b16 %v859
        %v1628 = vunpack.c.l.b16 %v860
        %v1629 = vunpack.c.l.b16 %v861
        %v1630 = vunpack.c.l.b16 %v862
        %v1631 = vunpack.c.l.b16 %v863
        %v1632 = vunpack.c.l.b16 %v864
        %v1633 = vunpack.c.l.b16 %v865
        %v1634 = vunpack.c.l.b16 %v866
        %v1635 = vunpack.c.l.b16 %v867
        %v1636 = vunpack.c.l.b16 %v868
        %v1637 = vunpack.c.l.b16 %v869
        %v1638 = vunpack.c.l.b16 %v870
        %v1639 = vunpack.c.l.b16 %v871
        %v1640 = vunpack.c.l.b16 %v872
        %v1641 = vpack.c.b16 %v1578, %v1577
        %v1642 = vpack.c.b16 %v1580, %v1579
        %v1643 = vpack.c.b16 %v1582, %v1581
        %v1644 = vpack.c.b16 %v1584, %v1583
        %v1645 = vpack.c.b16 %v1586, %v1585
        %v1646 = vpack.c.b16 %v1588, %v1587
        %v1647 = vpack.c.b16 %v1590, %v1589
        %v1648 = vpack.c.b16 %v1592, %v1591
        %v1649 = vpack.c.b16 %v1594, %v1593
        %v1650 = vpack.c.b16 %v1596, %v1595
        %v1651 = vpack.c.b16 %v1598, %v1597
        %v1652 = vpack.c.b16 %v1600, %v1599
        %v1653 = vpack.c.b16 %v1602, %v1601
        %v1654 = vpack.c.b16 %v1604, %v1603
        %v1655 = vpack.c.b16 %v1606, %v1605
        %v1656 = vpack.c.b16 %v1608, %v1607
        %v1657 = vpack.c.b16 %v1610, %v1609
        %v1658 = vpack.c.b16 %v1612, %v1611
        %v1659 = vpack.c.b16 %v1614, %v1613
        %v1660 = vpack.c.b16 %v1616, %v1615
        %v1661 = vpack.c.b16 %v1618, %v1617
        %v1662 = vpack.c.b16 %v1620, %v1619
        %v1663 = vpack.c.b16 %v1622, %v1621
        %v1664 = vpack.c.b16 %v1624, %v1623
        %v1665 = vpack.c.b16 %v1626, %v1625
        %v1666 = vpack.c.b16 %v1628, %v1627
        %v1667 = vpack.c.b16 %v1630, %v1629
        %v1668 = vpack.c.b16 %v1632, %v1631
        %v1669 = vpack.c.b16 %v1634, %v1633
        %v1670 = vpack.c.b16 %v1636, %v1635
        %v1671 = vpack.c.b16 %v1638, %v1637
        %v1672 = vpack.c.b16 %v1640, %v1639
        %1705 = vmatprep.subr.bf16.mxu0 0
        %1706 = vmatpush1.bf16.msra.mxu0 %v1641
        %1707 = vmatprep.subr.bf16.mxu0 0
        %1708 = vmatpush1.bf16.msra.mxu0 %v1642
        %1709 = vmatprep.subr.bf16.mxu0 0
        %1710 = vmatpush1.bf16.msra.mxu0 %v1643
        %1711 = vmatprep.subr.bf16.mxu0 0
        %1712 = vmatpush1.bf16.msra.mxu0 %v1644
        %1713 = vmatprep.subr.bf16.mxu0 0
        %1714 = vmatpush1.bf16.msra.mxu0 %v1645
        %1715 = vmatprep.subr.bf16.mxu0 0
        %1716 = vmatpush1.bf16.msra.mxu0 %v1646
        %1717 = vmatprep.subr.bf16.mxu0 0
        %1718 = vmatpush1.bf16.msra.mxu0 %v1647
        %1719 = vmatprep.subr.bf16.mxu0 0
        %1720 = vmatpush1.bf16.msra.mxu0 %v1648
        %1721 = vmatprep.subr.bf16.mxu0 0
        %1722 = vmatpush1.bf16.msra.mxu0 %v1649
        %1723 = vmatprep.subr.bf16.mxu0 0
        %1724 = vmatpush1.bf16.msra.mxu0 %v1650
        %1725 = vmatprep.subr.bf16.mxu0 0
        %1726 = vmatpush1.bf16.msra.mxu0 %v1651
        %1727 = vmatprep.subr.bf16.mxu0 0
        %1728 = vmatpush1.bf16.msra.mxu0 %v1652
        %1729 = vmatprep.subr.bf16.mxu0 0
        %1730 = vmatpush1.bf16.msra.mxu0 %v1653
        %1731 = vmatprep.subr.bf16.mxu0 0
        %1732 = vmatpush1.bf16.msra.mxu0 %v1654
        %1733 = vmatprep.subr.bf16.mxu0 0
        %1734 = vmatpush1.bf16.msra.mxu0 %v1655
        %1735 = vmatprep.subr.bf16.mxu0 0
        %1736 = vmatpush1.bf16.msra.mxu0 %v1656
        %1737 = vmatprep.mubr.bf16.mxu0 %v1258
        %1738 = vmatmul.mubr.bf16.gmra.mrb[0].mxu0 %v1257
        %v1739 = vpop.f32.mrb[0].mxu0
        %v1740 = vadd.f32 0.0, %v1739
        %v1741 = vpop.f32.mrb[0].mxu0
        %v1742 = vpop.f32.mrb[0].mxu0
        %v1743 = vadd.f32 0.0, %v1742
        %v1744 = vpop.f32.mrb[0].mxu0
        %1745 = vmatprep.mubr.bf16.mxu0 %v1262
        %1746 = vmatmul.mubr.bf16.gmra.mrb[0].mxu0 %v1261
        %v1747 = vpop.f32.mrb[0].mxu0
        %v1748 = vadd.f32 0.0, %v1747
        %v1749 = vpop.f32.mrb[0].mxu0
        %v1750 = vpop.f32.mrb[0].mxu0
        %v1751 = vadd.f32 0.0, %v1750
        %v1752 = vpop.f32.mrb[0].mxu0
        %1753 = vmatprep.mubr.bf16.mxu0 %v1266
        %1754 = vmatmul.mubr.bf16.gmra.mrb[0].mxu0 %v1265
        %v1755 = vpop.f32.mrb[0].mxu0
        %v1756 = vadd.f32 0.0, %v1755
        %v1757 = vpop.f32.mrb[0].mxu0
        %v1758 = vpop.f32.mrb[0].mxu0
        %v1759 = vadd.f32 0.0, %v1758
        %v1760 = vpop.f32.mrb[0].mxu0
        %1761 = vmatprep.mubr.bf16.mxu0 %v1270
        %1762 = vmatmul.mubr.bf16.gmra.mrb[0].mxu0 %v1269
        %v1763 = vpop.f32.mrb[0].mxu0
        %v1764 = vadd.f32 0.0, %v1763
        %v1765 = vpop.f32.mrb[0].mxu0
        %v1766 = vpop.f32.mrb[0].mxu0
        %v1767 = vadd.f32 0.0, %v1766
        %v1768 = vpop.f32.mrb[0].mxu0
        %1769 = vmatprep.mubr.bf16.mxu0 %v1274
        %1770 = vmatmul.mubr.bf16.gmra.mrb[0].mxu0 %v1273
        %v1771 = vpop.f32.mrb[0].mxu0
        %v1772 = vadd.f32 0.0, %v1771
        %v1773 = vpop.f32.mrb[0].mxu0
        %v1774 = vpop.f32.mrb[0].mxu0
        %v1775 = vadd.f32 0.0, %v1774
        %v1776 = vpop.f32.mrb[0].mxu0
        %1777 = vmatprep.mubr.bf16.mxu0 %v1278
        %1778 = vmatmul.mubr.bf16.gmra.mrb[0].mxu0 %v1277
        %v1779 = vpop.f32.mrb[0].mxu0
        %v1780 = vadd.f32 0.0, %v1779
        %v1781 = vpop.f32.mrb[0].mxu0
        %v1782 = vpop.f32.mrb[0].mxu0
        %v1783 = vadd.f32 0.0, %v1782
        %v1784 = vpop.f32.mrb[0].mxu0
        %1785 = vmatprep.mubr.bf16.mxu0 %v1282
        %1786 = vmatmul.mubr.bf16.gmra.mrb[0].mxu0 %v1281
        %v1787 = vpop.f32.mrb[0].mxu0
        %v1788 = vadd.f32 0.0, %v1787
        %v1789 = vpop.f32.mrb[0].mxu0
        %v1790 = vpop.f32.mrb[0].mxu0
        %v1791 = vadd.f32 0.0, %v1790
        %v1792 = vpop.f32.mrb[0].mxu0
        %1793 = vmatprep.mubr.bf16.mxu0 %v1286
        %1794 = vmatmul.mubr.bf16.gmra.mrb[0].mxu0 %v1285
        %v1795 = vpop.f32.mrb[0].mxu0
        %v1796 = vadd.f32 0.0, %v1795
        %v1797 = vpop.f32.mrb[0].mxu0
        %v1798 = vpop.f32.mrb[0].mxu0
        %v1799 = vadd.f32 0.0, %v1798
        %v1800 = vpop.f32.mrb[0].mxu0
        %1801 = vmatprep.mubr.bf16.mxu0 %v1290
        %1802 = vmatmul.mubr.bf16.gmra.mrb[0].mxu0 %v1289
        %v1803 = vpop.f32.mrb[0].mxu0
        %v1804 = vadd.f32 0.0, %v1803
        %v1805 = vpop.f32.mrb[0].mxu0
        %v1806 = vpop.f32.mrb[0].mxu0
        %v1807 = vadd.f32 0.0, %v1806
        %v1808 = vpop.f32.mrb[0].mxu0
        %1809 = vmatprep.mubr.bf16.mxu0 %v1294
        %1810 = vmatmul.mubr.bf16.gmra.mrb[0].mxu0 %v1293
        %v1811 = vpop.f32.mrb[0].mxu0
        %v1812 = vadd.f32 0.0, %v1811
        %v1813 = vpop.f32.mrb[0].mxu0
        %v1814 = vpop.f32.mrb[0].mxu0
        %v1815 = vadd.f32 0.0, %v1814
        %v1816 = vpop.f32.mrb[0].mxu0
        %1817 = vmatprep.mubr.bf16.mxu0 %v1298
        %1818 = vmatmul.mubr.bf16.gmra.mrb[0].mxu0 %v1297
        %v1819 = vpop.f32.mrb[0].mxu0
        %v1820 = vadd.f32 0.0, %v1819
        %v1821 = vpop.f32.mrb[0].mxu0
        %v1822 = vpop.f32.mrb[0].mxu0
        %v1823 = vadd.f32 0.0, %v1822
        %v1824 = vpop.f32.mrb[0].mxu0
        %1825 = vmatprep.mubr.bf16.mxu0 %v1302
        %1826 = vmatmul.mubr.bf16.gmra.mrb[0].mxu0 %v1301
        %v1827 = vpop.f32.mrb[0].mxu0
        %v1828 = vadd.f32 0.0, %v1827
        %v1829 = vpop.f32.mrb[0].mxu0
        %v1830 = vpop.f32.mrb[0].mxu0
        %v1831 = vadd.f32 0.0, %v1830
        %v1832 = vpop.f32.mrb[0].mxu0
        %1833 = vmatprep.mubr.bf16.mxu0 %v1306
        %1834 = vmatmul.mubr.bf16.gmra.mrb[0].mxu0 %v1305
        %v1835 = vpop.f32.mrb[0].mxu0
        %v1836 = vadd.f32 0.0, %v1835
        %v1837 = vpop.f32.mrb[0].mxu0
        %v1838 = vpop.f32.mrb[0].mxu0
        %v1839 = vadd.f32 0.0, %v1838
        %v1840 = vpop.f32.mrb[0].mxu0
        %1841 = vmatprep.mubr.bf16.mxu0 %v1310
        %1842 = vmatmul.mubr.bf16.gmra.mrb[0].mxu0 %v1309
        %v1843 = vpop.f32.mrb[0].mxu0
        %v1844 = vadd.f32 0.0, %v1843
        %v1845 = vpop.f32.mrb[0].mxu0
        %v1846 = vpop.f32.mrb[0].mxu0
        %v1847 = vadd.f32 0.0, %v1846
        %v1848 = vpop.f32.mrb[0].mxu0
        %1849 = vmatprep.mubr.bf16.mxu0 %v1314
        %1850 = vmatmul.mubr.bf16.gmra.mrb[0].mxu0 %v1313
        %v1851 = vpop.f32.mrb[0].mxu0
        %v1852 = vadd.f32 0.0, %v1851
        %v1853 = vpop.f32.mrb[0].mxu0
        %v1854 = vpop.f32.mrb[0].mxu0
        %v1855 = vadd.f32 0.0, %v1854
        %v1856 = vpop.f32.mrb[0].mxu0
        %1857 = vmatprep.mubr.bf16.mxu0 %v1318
        %1858 = vmatmul.mubr.bf16.gmra.mrb[0].mxu0 %v1317
        %v1859 = vpop.f32.mrb[0].mxu0
        %v1860 = vadd.f32 0.0, %v1859
        %v1861 = vpop.f32.mrb[0].mxu0
        %v1862 = vpop.f32.mrb[0].mxu0
        %v1863 = vadd.f32 0.0, %v1862
        %v1864 = vpop.f32.mrb[0].mxu0
        %1865 = vmatprep.mubr.bf16.mxu0 %v1322
        %1866 = vmatmul.mubr.bf16.gmra.mrb[0].mxu0 %v1321
        %v1867 = vpop.f32.mrb[0].mxu0
        %v1868 = vadd.f32 0.0, %v1867
        %v1869 = vpop.f32.mrb[0].mxu0
        %v1870 = vpop.f32.mrb[0].mxu0
        %v1871 = vadd.f32 0.0, %v1870
        %v1872 = vpop.f32.mrb[0].mxu0
        %1873 = vmatprep.mubr.bf16.mxu0 %v1326
        %1874 = vmatmul.mubr.bf16.gmra.mrb[0].mxu0 %v1325
        %v1875 = vpop.f32.mrb[0].mxu0
        %v1876 = vadd.f32 0.0, %v1875
        %v1877 = vpop.f32.mrb[0].mxu0
        %v1878 = vpop.f32.mrb[0].mxu0
        %v1879 = vadd.f32 0.0, %v1878
        %v1880 = vpop.f32.mrb[0].mxu0
        %1881 = vmatprep.mubr.bf16.mxu0 %v1330
        %1882 = vmatmul.mubr.bf16.gmra.mrb[0].mxu0 %v1329
        %v1883 = vpop.f32.mrb[0].mxu0
        %v1884 = vadd.f32 0.0, %v1883
        %v1885 = vpop.f32.mrb[0].mxu0
        %v1886 = vpop.f32.mrb[0].mxu0
        %v1887 = vadd.f32 0.0, %v1886
        %v1888 = vpop.f32.mrb[0].mxu0
        %1889 = vmatprep.mubr.bf16.mxu0 %v1334
        %1890 = vmatmul.mubr.bf16.gmra.mrb[0].mxu0 %v1333
        %v1891 = vpop.f32.mrb[0].mxu0
        %v1892 = vadd.f32 0.0, %v1891
        %v1893 = vpop.f32.mrb[0].mxu0
        %v1894 = vpop.f32.mrb[0].mxu0
        %v1895 = vadd.f32 0.0, %v1894
        %v1896 = vpop.f32.mrb[0].mxu0
        %1897 = vmatprep.mubr.bf16.mxu0 %v1338
        %1898 = vmatmul.mubr.bf16.gmra.mrb[0].mxu0 %v1337
        %v1899 = vpop.f32.mrb[0].mxu0
        %v1900 = vadd.f32 0.0, %v1899
        %v1901 = vpop.f32.mrb[0].mxu0
        %v1902 = vpop.f32.mrb[0].mxu0
        %v1903 = vadd.f32 0.0, %v1902
        %v1904 = vpop.f32.mrb[0].mxu0
        %1905 = vmatprep.mubr.bf16.mxu0 %v1342
        %1906 = vmatmul.mubr.bf16.gmra.mrb[0].mxu0 %v1341
        %v1907 = vpop.f32.mrb[0].mxu0
        %v1908 = vadd.f32 0.0, %v1907
        %v1909 = vpop.f32.mrb[0].mxu0
        %v1910 = vpop.f32.mrb[0].mxu0
        %v1911 = vadd.f32 0.0, %v1910
        %v1912 = vpop.f32.mrb[0].mxu0
        %1913 = vmatprep.mubr.bf16.mxu0 %v1346
        %1914 = vmatmul.mubr.bf16.gmra.mrb[0].mxu0 %v1345
        %v1915 = vpop.f32.mrb[0].mxu0
        %v1916 = vadd.f32 0.0, %v1915
        %v1917 = vpop.f32.mrb[0].mxu0
        %v1918 = vpop.f32.mrb[0].mxu0
        %v1919 = vadd.f32 0.0, %v1918
        %v1920 = vpop.f32.mrb[0].mxu0
        %1921 = vmatprep.mubr.bf16.mxu0 %v1350
        %1922 = vmatmul.mubr.bf16.gmra.mrb[0].mxu0 %v1349
        %v1923 = vpop.f32.mrb[0].mxu0
        %v1924 = vadd.f32 0.0, %v1923
        %v1925 = vpop.f32.mrb[0].mxu0
        %v1926 = vpop.f32.mrb[0].mxu0
        %v1927 = vadd.f32 0.0, %v1926
        %v1928 = vpop.f32.mrb[0].mxu0
        %1929 = vmatprep.mubr.bf16.mxu0 %v1354
        %1930 = vmatmul.mubr.bf16.gmra.mrb[0].mxu0 %v1353
        %v1931 = vpop.f32.mrb[0].mxu0
        %v1932 = vadd.f32 0.0, %v1931
        %v1933 = vpop.f32.mrb[0].mxu0
        %v1934 = vpop.f32.mrb[0].mxu0
        %v1935 = vadd.f32 0.0, %v1934
        %v1936 = vpop.f32.mrb[0].mxu0
        %1937 = vmatprep.mubr.bf16.mxu0 %v1358
        %1938 = vmatmul.mubr.bf16.gmra.mrb[0].mxu0 %v1357
        %v1939 = vpop.f32.mrb[0].mxu0
        %v1940 = vadd.f32 0.0, %v1939
        %v1941 = vpop.f32.mrb[0].mxu0
        %v1942 = vpop.f32.mrb[0].mxu0
        %v1943 = vadd.f32 0.0, %v1942
        %v1944 = vpop.f32.mrb[0].mxu0
        %1945 = vmatprep.mubr.bf16.mxu0 %v1362
        %1946 = vmatmul.mubr.bf16.gmra.mrb[0].mxu0 %v1361
        %v1947 = vpop.f32.mrb[0].mxu0
        %v1948 = vadd.f32 0.0, %v1947
        %v1949 = vpop.f32.mrb[0].mxu0
        %v1950 = vpop.f32.mrb[0].mxu0
        %v1951 = vadd.f32 0.0, %v1950
        %v1952 = vpop.f32.mrb[0].mxu0
        %1953 = vmatprep.mubr.bf16.mxu0 %v1366
        %1954 = vmatmul.mubr.bf16.gmra.mrb[0].mxu0 %v1365
        %v1955 = vpop.f32.mrb[0].mxu0
        %v1956 = vadd.f32 0.0, %v1955
        %v1957 = vpop.f32.mrb[0].mxu0
        %v1958 = vpop.f32.mrb[0].mxu0
        %v1959 = vadd.f32 0.0, %v1958
        %v1960 = vpop.f32.mrb[0].mxu0
        %1961 = vmatprep.mubr.bf16.mxu0 %v1370
        %1962 = vmatmul.mubr.bf16.gmra.mrb[0].mxu0 %v1369
        %v1963 = vpop.f32.mrb[0].mxu0
        %v1964 = vadd.f32 0.0, %v1963
        %v1965 = vpop.f32.mrb[0].mxu0
        %v1966 = vpop.f32.mrb[0].mxu0
        %v1967 = vadd.f32 0.0, %v1966
        %v1968 = vpop.f32.mrb[0].mxu0
        %1969 = vmatprep.mubr.bf16.mxu0 %v1374
        %1970 = vmatmul.mubr.bf16.gmra.mrb[0].mxu0 %v1373
        %v1971 = vpop.f32.mrb[0].mxu0
        %v1972 = vadd.f32 0.0, %v1971
        %v1973 = vpop.f32.mrb[0].mxu0
        %v1974 = vpop.f32.mrb[0].mxu0
        %v1975 = vadd.f32 0.0, %v1974
        %v1976 = vpop.f32.mrb[0].mxu0
        %1977 = vmatprep.mubr.bf16.mxu0 %v1378
        %1978 = vmatmul.mubr.bf16.gmra.mrb[0].mxu0 %v1377
        %v1979 = vpop.f32.mrb[0].mxu0
        %v1980 = vadd.f32 0.0, %v1979
        %v1981 = vpop.f32.mrb[0].mxu0
        %v1982 = vpop.f32.mrb[0].mxu0
        %v1983 = vadd.f32 0.0, %v1982
        %v1984 = vpop.f32.mrb[0].mxu0
        %1985 = vmatprep.mubr.bf16.mxu0 %v1382
        %1986 = vmatmul.mubr.bf16.gmra.mrb[0].mxu0 %v1381
        %v1987 = vpop.f32.mrb[0].mxu0
        %v1988 = vadd.f32 0.0, %v1987
        %v1989 = vpop.f32.mrb[0].mxu0
        %v1990 = vpop.f32.mrb[0].mxu0
        %v1991 = vadd.f32 0.0, %v1990
        %v1992 = vpop.f32.mrb[0].mxu0
        %1993 = vdwg.mxu0
        %1994 = vmatprep.subr.bf16.mxu0 0
        %1995 = vmatpush1.bf16.msra.mxu0 %v1657
        %1996 = vmatprep.subr.bf16.mxu0 0
        %1997 = vmatpush1.bf16.msra.mxu0 %v1658
        %1998 = vmatprep.subr.bf16.mxu0 0
        %1999 = vmatpush1.bf16.msra.mxu0 %v1659
        %2000 = vmatprep.subr.bf16.mxu0 0
        %2001 = vmatpush1.bf16.msra.mxu0 %v1660
        %2002 = vmatprep.subr.bf16.mxu0 0
        %2003 = vmatpush1.bf16.msra.mxu0 %v1661
        %2004 = vmatprep.subr.bf16.mxu0 0
        %2005 = vmatpush1.bf16.msra.mxu0 %v1662
        %2006 = vmatprep.subr.bf16.mxu0 0
        %2007 = vmatpush1.bf16.msra.mxu0 %v1663
        %2008 = vmatprep.subr.bf16.mxu0 0
        %2009 = vmatpush1.bf16.msra.mxu0 %v1664
        %2010 = vmatprep.subr.bf16.mxu0 0
        %2011 = vmatpush1.bf16.msra.mxu0 %v1665
        %2012 = vmatprep.subr.bf16.mxu0 0
        %2013 = vmatpush1.bf16.msra.mxu0 %v1666
        %2014 = vmatprep.subr.bf16.mxu0 0
        %2015 = vmatpush1.bf16.msra.mxu0 %v1667
        %2016 = vmatprep.subr.bf16.mxu0 0
        %2017 = vmatpush1.bf16.msra.mxu0 %v1668
        %2018 = vmatprep.subr.bf16.mxu0 0
        %2019 = vmatpush1.bf16.msra.mxu0 %v1669
        %2020 = vmatprep.subr.bf16.mxu0 0
        %2021 = vmatpush1.bf16.msra.mxu0 %v1670
        %2022 = vmatprep.subr.bf16.mxu0 0
        %2023 = vmatpush1.bf16.msra.mxu0 %v1671
        %2024 = vmatprep.subr.bf16.mxu0 0
        %2025 = vmatpush1.bf16.msra.mxu0 %v1672
        %2026 = vmatprep.mubr.bf16.mxu0 %v1260
        %2027 = vmatmul.mubr.bf16.gmra.mrb[0].mxu0 %v1259
        %v2028 = vpop.f32.mrb[0].mxu0
        %v2029 = vadd.f32 %v1740, %v2028
        %v2030 = vpop.f32.mrb[0].mxu0
        %v2031 = vpop.f32.mrb[0].mxu0
        %v2032 = vadd.f32 %v1743, %v2031
        %v2033 = vpop.f32.mrb[0].mxu0
        %2034 = vmatprep.mubr.bf16.mxu0 %v1264
        %2035 = vmatmul.mubr.bf16.gmra.mrb[0].mxu0 %v1263
        %v2036 = vpop.f32.mrb[0].mxu0
        %v2037 = vadd.f32 %v1748, %v2036
        %v2038 = vpop.f32.mrb[0].mxu0
        %v2039 = vpop.f32.mrb[0].mxu0
        %v2040 = vadd.f32 %v1751, %v2039
        %v2041 = vpop.f32.mrb[0].mxu0
        %2042 = vmatprep.mubr.bf16.mxu0 %v1268
        %2043 = vmatmul.mubr.bf16.gmra.mrb[0].mxu0 %v1267
        %v2044 = vpop.f32.mrb[0].mxu0
        %v2045 = vadd.f32 %v1756, %v2044
        %v2046 = vpop.f32.mrb[0].mxu0
        %v2047 = vpop.f32.mrb[0].mxu0
        %v2048 = vadd.f32 %v1759, %v2047
        %v2049 = vpop.f32.mrb[0].mxu0
        %2050 = vmatprep.mubr.bf16.mxu0 %v1272
        %2051 = vmatmul.mubr.bf16.gmra.mrb[0].mxu0 %v1271
        %v2052 = vpop.f32.mrb[0].mxu0
        %v2053 = vadd.f32 %v1764, %v2052
        %v2054 = vpop.f32.mrb[0].mxu0
        %v2055 = vpop.f32.mrb[0].mxu0
        %v2056 = vadd.f32 %v1767, %v2055
        %v2057 = vpop.f32.mrb[0].mxu0
        %2058 = vmatprep.mubr.bf16.mxu0 %v1276
        %2059 = vmatmul.mubr.bf16.gmra.mrb[0].mxu0 %v1275
        %v2060 = vpop.f32.mrb[0].mxu0
        %v2061 = vadd.f32 %v1772, %v2060
        %v2062 = vpop.f32.mrb[0].mxu0
        %v2063 = vpop.f32.mrb[0].mxu0
        %v2064 = vadd.f32 %v1775, %v2063
        %v2065 = vpop.f32.mrb[0].mxu0
        %2066 = vmatprep.mubr.bf16.mxu0 %v1280
        %2067 = vmatmul.mubr.bf16.gmra.mrb[0].mxu0 %v1279
        %v2068 = vpop.f32.mrb[0].mxu0
        %v2069 = vadd.f32 %v1780, %v2068
        %v2070 = vpop.f32.mrb[0].mxu0
        %v2071 = vpop.f32.mrb[0].mxu0
        %v2072 = vadd.f32 %v1783, %v2071
        %v2073 = vpop.f32.mrb[0].mxu0
        %2074 = vmatprep.mubr.bf16.mxu0 %v1284
        %2075 = vmatmul.mubr.bf16.gmra.mrb[0].mxu0 %v1283
        %v2076 = vpop.f32.mrb[0].mxu0
        %v2077 = vadd.f32 %v1788, %v2076
        %v2078 = vpop.f32.mrb[0].mxu0
        %v2079 = vpop.f32.mrb[0].mxu0
        %v2080 = vadd.f32 %v1791, %v2079
        %v2081 = vpop.f32.mrb[0].mxu0
        %2082 = vmatprep.mubr.bf16.mxu0 %v1288
        %2083 = vmatmul.mubr.bf16.gmra.mrb[0].mxu0 %v1287
        %v2084 = vpop.f32.mrb[0].mxu0
        %v2085 = vadd.f32 %v1796, %v2084
        %v2086 = vpop.f32.mrb[0].mxu0
        %v2087 = vpop.f32.mrb[0].mxu0
        %v2088 = vadd.f32 %v1799, %v2087
        %v2089 = vpop.f32.mrb[0].mxu0
        %2090 = vmatprep.mubr.bf16.mxu0 %v1292
        %2091 = vmatmul.mubr.bf16.gmra.mrb[0].mxu0 %v1291
        %v2092 = vpop.f32.mrb[0].mxu0
        %v2093 = vadd.f32 %v1804, %v2092
        %v2094 = vpop.f32.mrb[0].mxu0
        %v2095 = vpop.f32.mrb[0].mxu0
        %v2096 = vadd.f32 %v1807, %v2095
        %v2097 = vpop.f32.mrb[0].mxu0
        %2098 = vmatprep.mubr.bf16.mxu0 %v1296
        %2099 = vmatmul.mubr.bf16.gmra.mrb[0].mxu0 %v1295
        %v2100 = vpop.f32.mrb[0].mxu0
        %v2101 = vadd.f32 %v1812, %v2100
        %v2102 = vpop.f32.mrb[0].mxu0
        %v2103 = vpop.f32.mrb[0].mxu0
        %v2104 = vadd.f32 %v1815, %v2103
        %v2105 = vpop.f32.mrb[0].mxu0
        %2106 = vmatprep.mubr.bf16.mxu0 %v1300
        %2107 = vmatmul.mubr.bf16.gmra.mrb[0].mxu0 %v1299
        %v2108 = vpop.f32.mrb[0].mxu0
        %v2109 = vadd.f32 %v1820, %v2108
        %v2110 = vpop.f32.mrb[0].mxu0
        %v2111 = vpop.f32.mrb[0].mxu0
        %v2112 = vadd.f32 %v1823, %v2111
        %v2113 = vpop.f32.mrb[0].mxu0
        %2114 = vmatprep.mubr.bf16.mxu0 %v1304
        %2115 = vmatmul.mubr.bf16.gmra.mrb[0].mxu0 %v1303
        %v2116 = vpop.f32.mrb[0].mxu0
        %v2117 = vadd.f32 %v1828, %v2116
        %v2118 = vpop.f32.mrb[0].mxu0
        %v2119 = vpop.f32.mrb[0].mxu0
        %v2120 = vadd.f32 %v1831, %v2119
        %v2121 = vpop.f32.mrb[0].mxu0
        %2122 = vmatprep.mubr.bf16.mxu0 %v1308
        %2123 = vmatmul.mubr.bf16.gmra.mrb[0].mxu0 %v1307
        %v2124 = vpop.f32.mrb[0].mxu0
        %v2125 = vadd.f32 %v1836, %v2124
        %v2126 = vpop.f32.mrb[0].mxu0
        %v2127 = vpop.f32.mrb[0].mxu0
        %v2128 = vadd.f32 %v1839, %v2127
        %v2129 = vpop.f32.mrb[0].mxu0
        %2130 = vmatprep.mubr.bf16.mxu0 %v1312
        %2131 = vmatmul.mubr.bf16.gmra.mrb[0].mxu0 %v1311
        %v2132 = vpop.f32.mrb[0].mxu0
        %v2133 = vadd.f32 %v1844, %v2132
        %v2134 = vpop.f32.mrb[0].mxu0
        %v2135 = vpop.f32.mrb[0].mxu0
        %v2136 = vadd.f32 %v1847, %v2135
        %v2137 = vpop.f32.mrb[0].mxu0
        %2138 = vmatprep.mubr.bf16.mxu0 %v1316
        %2139 = vmatmul.mubr.bf16.gmra.mrb[0].mxu0 %v1315
        %v2140 = vpop.f32.mrb[0].mxu0
        %v2141 = vadd.f32 %v1852, %v2140
        %v2142 = vpop.f32.mrb[0].mxu0
        %v2143 = vpop.f32.mrb[0].mxu0
        %v2144 = vadd.f32 %v1855, %v2143
        %v2145 = vpop.f32.mrb[0].mxu0
        %2146 = vmatprep.mubr.bf16.mxu0 %v1320
        %2147 = vmatmul.mubr.bf16.gmra.mrb[0].mxu0 %v1319
        %v2148 = vpop.f32.mrb[0].mxu0
        %v2149 = vadd.f32 %v1860, %v2148
        %v2150 = vpop.f32.mrb[0].mxu0
        %v2151 = vpop.f32.mrb[0].mxu0
        %v2152 = vadd.f32 %v1863, %v2151
        %v2153 = vpop.f32.mrb[0].mxu0
        %2154 = vmatprep.mubr.bf16.mxu0 %v1324
        %2155 = vmatmul.mubr.bf16.gmra.mrb[0].mxu0 %v1323
        %v2156 = vpop.f32.mrb[0].mxu0
        %v2157 = vadd.f32 %v1868, %v2156
        %v2158 = vpop.f32.mrb[0].mxu0
        %v2159 = vpop.f32.mrb[0].mxu0
        %v2160 = vadd.f32 %v1871, %v2159
        %v2161 = vpop.f32.mrb[0].mxu0
        %2162 = vmatprep.mubr.bf16.mxu0 %v1328
        %2163 = vmatmul.mubr.bf16.gmra.mrb[0].mxu0 %v1327
        %v2164 = vpop.f32.mrb[0].mxu0
        %v2165 = vadd.f32 %v1876, %v2164
        %v2166 = vpop.f32.mrb[0].mxu0
        %v2167 = vpop.f32.mrb[0].mxu0
        %v2168 = vadd.f32 %v1879, %v2167
        %v2169 = vpop.f32.mrb[0].mxu0
        %2170 = vmatprep.mubr.bf16.mxu0 %v1332
        %2171 = vmatmul.mubr.bf16.gmra.mrb[0].mxu0 %v1331
        %v2172 = vpop.f32.mrb[0].mxu0
        %v2173 = vadd.f32 %v1884, %v2172
        %v2174 = vpop.f32.mrb[0].mxu0
        %v2175 = vpop.f32.mrb[0].mxu0
        %v2176 = vadd.f32 %v1887, %v2175
        %v2177 = vpop.f32.mrb[0].mxu0
        %2178 = vmatprep.mubr.bf16.mxu0 %v1336
        %2179 = vmatmul.mubr.bf16.gmra.mrb[0].mxu0 %v1335
        %v2180 = vpop.f32.mrb[0].mxu0
        %v2181 = vadd.f32 %v1892, %v2180
        %v2182 = vpop.f32.mrb[0].mxu0
        %v2183 = vpop.f32.mrb[0].mxu0
        %v2184 = vadd.f32 %v1895, %v2183
        %v2185 = vpop.f32.mrb[0].mxu0
        %2186 = vmatprep.mubr.bf16.mxu0 %v1340
        %2187 = vmatmul.mubr.bf16.gmra.mrb[0].mxu0 %v1339
        %v2188 = vpop.f32.mrb[0].mxu0
        %v2189 = vadd.f32 %v1900, %v2188
        %v2190 = vpop.f32.mrb[0].mxu0
        %v2191 = vpop.f32.mrb[0].mxu0
        %v2192 = vadd.f32 %v1903, %v2191
        %v2193 = vpop.f32.mrb[0].mxu0
        %2194 = vmatprep.mubr.bf16.mxu0 %v1344
        %2195 = vmatmul.mubr.bf16.gmra.mrb[0].mxu0 %v1343
        %v2196 = vpop.f32.mrb[0].mxu0
        %v2197 = vadd.f32 %v1908, %v2196
        %v2198 = vpop.f32.mrb[0].mxu0
        %v2199 = vpop.f32.mrb[0].mxu0
        %v2200 = vadd.f32 %v1911, %v2199
        %v2201 = vpop.f32.mrb[0].mxu0
        %2202 = vmatprep.mubr.bf16.mxu0 %v1348
        %2203 = vmatmul.mubr.bf16.gmra.mrb[0].mxu0 %v1347
        %v2204 = vpop.f32.mrb[0].mxu0
        %v2205 = vadd.f32 %v1916, %v2204
        %v2206 = vpop.f32.mrb[0].mxu0
        %v2207 = vpop.f32.mrb[0].mxu0
        %v2208 = vadd.f32 %v1919, %v2207
        %v2209 = vpop.f32.mrb[0].mxu0
        %2210 = vmatprep.mubr.bf16.mxu0 %v1352
        %2211 = vmatmul.mubr.bf16.gmra.mrb[0].mxu0 %v1351
        %v2212 = vpop.f32.mrb[0].mxu0
        %v2213 = vadd.f32 %v1924, %v2212
        %v2214 = vpop.f32.mrb[0].mxu0
        %v2215 = vpop.f32.mrb[0].mxu0
        %v2216 = vadd.f32 %v1927, %v2215
        %v2217 = vpop.f32.mrb[0].mxu0
        %2218 = vmatprep.mubr.bf16.mxu0 %v1356
        %2219 = vmatmul.mubr.bf16.gmra.mrb[0].mxu0 %v1355
        %v2220 = vpop.f32.mrb[0].mxu0
        %v2221 = vadd.f32 %v1932, %v2220
        %v2222 = vpop.f32.mrb[0].mxu0
        %v2223 = vpop.f32.mrb[0].mxu0
        %v2224 = vadd.f32 %v1935, %v2223
        %v2225 = vpop.f32.mrb[0].mxu0
        %2226 = vmatprep.mubr.bf16.mxu0 %v1360
        %2227 = vmatmul.mubr.bf16.gmra.mrb[0].mxu0 %v1359
        %v2228 = vpop.f32.mrb[0].mxu0
        %v2229 = vadd.f32 %v1940, %v2228
        %v2230 = vpop.f32.mrb[0].mxu0
        %v2231 = vpop.f32.mrb[0].mxu0
        %v2232 = vadd.f32 %v1943, %v2231
        %v2233 = vpop.f32.mrb[0].mxu0
        %2234 = vmatprep.mubr.bf16.mxu0 %v1364
        %2235 = vmatmul.mubr.bf16.gmra.mrb[0].mxu0 %v1363
        %v2236 = vpop.f32.mrb[0].mxu0
        %v2237 = vadd.f32 %v1948, %v2236
        %v2238 = vpop.f32.mrb[0].mxu0
        %v2239 = vpop.f32.mrb[0].mxu0
        %v2240 = vadd.f32 %v1951, %v2239
        %v2241 = vpop.f32.mrb[0].mxu0
        %2242 = vmatprep.mubr.bf16.mxu0 %v1368
        %2243 = vmatmul.mubr.bf16.gmra.mrb[0].mxu0 %v1367
        %v2244 = vpop.f32.mrb[0].mxu0
        %v2245 = vadd.f32 %v1956, %v2244
        %v2246 = vpop.f32.mrb[0].mxu0
        %v2247 = vpop.f32.mrb[0].mxu0
        %v2248 = vadd.f32 %v1959, %v2247
        %v2249 = vpop.f32.mrb[0].mxu0
        %2250 = vmatprep.mubr.bf16.mxu0 %v1372
        %2251 = vmatmul.mubr.bf16.gmra.mrb[0].mxu0 %v1371
        %v2252 = vpop.f32.mrb[0].mxu0
        %v2253 = vadd.f32 %v1964, %v2252
        %v2254 = vpop.f32.mrb[0].mxu0
        %v2255 = vpop.f32.mrb[0].mxu0
        %v2256 = vadd.f32 %v1967, %v2255
        %v2257 = vpop.f32.mrb[0].mxu0
        %2258 = vmatprep.mubr.bf16.mxu0 %v1376
        %2259 = vmatmul.mubr.bf16.gmra.mrb[0].mxu0 %v1375
        %v2260 = vpop.f32.mrb[0].mxu0
        %v2261 = vadd.f32 %v1972, %v2260
        %v2262 = vpop.f32.mrb[0].mxu0
        %v2263 = vpop.f32.mrb[0].mxu0
        %v2264 = vadd.f32 %v1975, %v2263
        %v2265 = vpop.f32.mrb[0].mxu0
        %2266 = vmatprep.mubr.bf16.mxu0 %v1380
        %2267 = vmatmul.mubr.bf16.gmra.mrb[0].mxu0 %v1379
        %v2268 = vpop.f32.mrb[0].mxu0
        %v2269 = vadd.f32 %v1980, %v2268
        %v2270 = vpop.f32.mrb[0].mxu0
        %v2271 = vpop.f32.mrb[0].mxu0
        %v2272 = vadd.f32 %v1983, %v2271
        %v2273 = vpop.f32.mrb[0].mxu0
        %2274 = vmatprep.mubr.bf16.mxu0 %v1384
        %2275 = vmatmul.mubr.bf16.gmra.mrb[0].mxu0 %v1383
        %v2276 = vpop.f32.mrb[0].mxu0
        %v2277 = vadd.f32 %v1988, %v2276
        %v2278 = vpop.f32.mrb[0].mxu0
        %v2279 = vpop.f32.mrb[0].mxu0
        %v2280 = vadd.f32 %v1991, %v2279
        %v2281 = vpop.f32.mrb[0].mxu0
        %2282 = vdwg.mxu0
        %v2283 = vadd.f32 %v617, %v2029
        %v2284 = vadd.f32 %v618, %v2032
        %v2285 = vadd.f32 %v619, %v2037
        %v2286 = vadd.f32 %v620, %v2040
        %v2287 = vadd.f32 %v621, %v2045
        %v2288 = vadd.f32 %v622, %v2048
        %v2289 = vadd.f32 %v623, %v2053
        %v2290 = vadd.f32 %v624, %v2056
        %v2291 = vadd.f32 %v625, %v2061
        %v2292 = vadd.f32 %v626, %v2064
        %v2293 = vadd.f32 %v627, %v2069
        %v2294 = vadd.f32 %v628, %v2072
        %v2295 = vadd.f32 %v629, %v2077
        %v2296 = vadd.f32 %v630, %v2080
        %v2297 = vadd.f32 %v631, %v2085
        %v2298 = vadd.f32 %v632, %v2088
        %v2299 = vadd.f32 %v633, %v2093
        %v2300 = vadd.f32 %v634, %v2096
        %v2301 = vadd.f32 %v635, %v2101
        %v2302 = vadd.f32 %v636, %v2104
        %v2303 = vadd.f32 %v637, %v2109
        %v2304 = vadd.f32 %v638, %v2112
        %v2305 = vadd.f32 %v639, %v2117
        %v2306 = vadd.f32 %v640, %v2120
        %v2307 = vadd.f32 %v641, %v2125
        %v2308 = vadd.f32 %v642, %v2128
        %v2309 = vadd.f32 %v643, %v2133
        %v2310 = vadd.f32 %v644, %v2136
        %v2311 = vadd.f32 %v645, %v2141
        %v2312 = vadd.f32 %v646, %v2144
        %v2313 = vadd.f32 %v647, %v2149
        %v2314 = vadd.f32 %v648, %v2152
        %v2315 = vadd.f32 %v649, %v2157
        %v2316 = vadd.f32 %v650, %v2160
        %v2317 = vadd.f32 %v651, %v2165
        %v2318 = vadd.f32 %v652, %v2168
        %v2319 = vadd.f32 %v653, %v2173
        %v2320 = vadd.f32 %v654, %v2176
        %v2321 = vadd.f32 %v655, %v2181
        %v2322 = vadd.f32 %v656, %v2184
        %v2323 = vadd.f32 %v657, %v2189
        %v2324 = vadd.f32 %v658, %v2192
        %v2325 = vadd.f32 %v659, %v2197
        %v2326 = vadd.f32 %v660, %v2200
        %v2327 = vadd.f32 %v661, %v2205
        %v2328 = vadd.f32 %v662, %v2208
        %v2329 = vadd.f32 %v663, %v2213
        %v2330 = vadd.f32 %v664, %v2216
        %v2331 = vadd.f32 %v665, %v2221
        %v2332 = vadd.f32 %v666, %v2224
        %v2333 = vadd.f32 %v667, %v2229
        %v2334 = vadd.f32 %v668, %v2232
        %v2335 = vadd.f32 %v669, %v2237
        %v2336 = vadd.f32 %v670, %v2240
        %v2337 = vadd.f32 %v671, %v2245
        %v2338 = vadd.f32 %v672, %v2248
        %v2339 = vadd.f32 %v673, %v2253
        %v2340 = vadd.f32 %v674, %v2256
        %v2341 = vadd.f32 %v675, %v2261
        %v2342 = vadd.f32 %v676, %v2264
        %v2343 = vadd.f32 %v677, %v2269
        %v2344 = vadd.f32 %v678, %v2272
        %v2345 = vadd.f32 %v679, %v2277
        %v2346 = vadd.f32 %v680, %v2280
        %2347 = vst [vmem:[#allocation2] sm:$0xff] %v2283
        %2348 = vst [vmem:[#allocation2 + $0x8] sm:$0xff] %v2284
        %2349 = vst [vmem:[#allocation2 + $0x10] sm:$0xff] %v2285
        %2350 = vst [vmem:[#allocation2 + $0x18] sm:$0xff] %v2286
        %2351 = vst [vmem:[#allocation2 + $0x20] sm:$0xff] %v2287
        %2352 = vst [vmem:[#allocation2 + $0x28] sm:$0xff] %v2288
        %2353 = vst [vmem:[#allocation2 + $0x30] sm:$0xff] %v2289
        %2354 = vst [vmem:[#allocation2 + $0x38] sm:$0xff] %v2290
        %2355 = vst [vmem:[#allocation2 + $0x40] sm:$0xff] %v2291
        %2356 = vst [vmem:[#allocation2 + $0x48] sm:$0xff] %v2292
        %2357 = vst [vmem:[#allocation2 + $0x50] sm:$0xff] %v2293
        %2358 = vst [vmem:[#allocation2 + $0x58] sm:$0xff] %v2294
        %2359 = vst [vmem:[#allocation2 + $0x60] sm:$0xff] %v2295
        %2360 = vst [vmem:[#allocation2 + $0x68] sm:$0xff] %v2296
        %2361 = vst [vmem:[#allocation2 + $0x70] sm:$0xff] %v2297
        %2362 = vst [vmem:[#allocation2 + $0x78] sm:$0xff] %v2298
        %2363 = vst [vmem:[#allocation2 + $0x80] sm:$0xff] %v2299
        %2364 = vst [vmem:[#allocation2 + $0x88] sm:$0xff] %v2300
        %2365 = vst [vmem:[#allocation2 + $0x90] sm:$0xff] %v2301
        %2366 = vst [vmem:[#allocation2 + $0x98] sm:$0xff] %v2302
        %2367 = vst [vmem:[#allocation2 + $0xa0] sm:$0xff] %v2303
        %2368 = vst [vmem:[#allocation2 + $0xa8] sm:$0xff] %v2304
        %2369 = vst [vmem:[#allocation2 + $0xb0] sm:$0xff] %v2305
        %2370 = vst [vmem:[#allocation2 + $0xb8] sm:$0xff] %v2306
        %2371 = vst [vmem:[#allocation2 + $0xc0] sm:$0xff] %v2307
        %2372 = vst [vmem:[#allocation2 + $0xc8] sm:$0xff] %v2308
        %2373 = vst [vmem:[#allocation2 + $0xd0] sm:$0xff] %v2309
        %2374 = vst [vmem:[#allocation2 + $0xd8] sm:$0xff] %v2310
        %2375 = vst [vmem:[#allocation2 + $0xe0] sm:$0xff] %v2311
        %2376 = vst [vmem:[#allocation2 + $0xe8] sm:$0xff] %v2312
        %2377 = vst [vmem:[#allocation2 + $0xf0] sm:$0xff] %v2313
        %2378 = vst [vmem:[#allocation2 + $0xf8] sm:$0xff] %v2314
        %2379 = vst [vmem:[#allocation2 + $0x100] sm:$0xff] %v2315
        %2380 = vst [vmem:[#allocation2 + $0x108] sm:$0xff] %v2316
        %2381 = vst [vmem:[#allocation2 + $0x110] sm:$0xff] %v2317
        %2382 = vst [vmem:[#allocation2 + $0x118] sm:$0xff] %v2318
        %2383 = vst [vmem:[#allocation2 + $0x120] sm:$0xff] %v2319
        %2384 = vst [vmem:[#allocation2 + $0x128] sm:$0xff] %v2320
        %2385 = vst [vmem:[#allocation2 + $0x130] sm:$0xff] %v2321
        %2386 = vst [vmem:[#allocation2 + $0x138] sm:$0xff] %v2322
        %2387 = vst [vmem:[#allocation2 + $0x140] sm:$0xff] %v2323
        %2388 = vst [vmem:[#allocation2 + $0x148] sm:$0xff] %v2324
        %2389 = vst [vmem:[#allocation2 + $0x150] sm:$0xff] %v2325
        %2390 = vst [vmem:[#allocation2 + $0x158] sm:$0xff] %v2326
        %2391 = vst [vmem:[#allocation2 + $0x160] sm:$0xff] %v2327
        %2392 = vst [vmem:[#allocation2 + $0x168] sm:$0xff] %v2328
        %2393 = vst [vmem:[#allocation2 + $0x170] sm:$0xff] %v2329
        %2394 = vst [vmem:[#allocation2 + $0x178] sm:$0xff] %v2330
        %2395 = vst [vmem:[#allocation2 + $0x180] sm:$0xff] %v2331
        %2396 = vst [vmem:[#allocation2 + $0x188] sm:$0xff] %v2332
        %2397 = vst [vmem:[#allocation2 + $0x190] sm:$0xff] %v2333
        %2398 = vst [vmem:[#allocation2 + $0x198] sm:$0xff] %v2334
        %2399 = vst [vmem:[#allocation2 + $0x1a0] sm:$0xff] %v2335
        %2400 = vst [vmem:[#allocation2 + $0x1a8] sm:$0xff] %v2336
        %2401 = vst [vmem:[#allocation2 + $0x1b0] sm:$0xff] %v2337
        %2402 = vst [vmem:[#allocation2 + $0x1b8] sm:$0xff] %v2338
        %2403 = vst [vmem:[#allocation2 + $0x1c0] sm:$0xff] %v2339
        %2404 = vst [vmem:[#allocation2 + $0x1c8] sm:$0xff] %v2340
        %2405 = vst [vmem:[#allocation2 + $0x1d0] sm:$0xff] %v2341
        %2406 = vst [vmem:[#allocation2 + $0x1d8] sm:$0xff] %v2342
        %2407 = vst [vmem:[#allocation2 + $0x1e0] sm:$0xff] %v2343
        %2408 = vst [vmem:[#allocation2 + $0x1e8] sm:$0xff] %v2344
        %2409 = vst [vmem:[#allocation2 + $0x1f0] sm:$0xff] %v2345
        %2410 = vst [vmem:[#allocation2 + $0x1f8] sm:$0xff] %v2346
        %p2411 = scmp.eq.s32.totalorder %s36, 1
        // Predicated region
        $region89: #{tpu_custom_call.1} parent=67 // pred_check
          %p2412 = pneg %p2411
        $region90: #{tpu_custom_call.1} parent=67 // pred_check_branch
          %2414 = sbr.rel (%p2412) target = $region92
        $region91: #{tpu_custom_call.1} parent=67 // pred_region
          %v2415 = vld [vmem:[#allocation2] sm:$0xff]
          %v2416 = vld [vmem:[#allocation2 + $0x8] sm:$0xff]
          %v2417 = vld [vmem:[#allocation2 + $0x10] sm:$0xff]
          %v2418 = vld [vmem:[#allocation2 + $0x18] sm:$0xff]
          %v2419 = vld [vmem:[#allocation2 + $0x20] sm:$0xff]
          %v2420 = vld [vmem:[#allocation2 + $0x28] sm:$0xff]
          %v2421 = vld [vmem:[#allocation2 + $0x30] sm:$0xff]
          %v2422 = vld [vmem:[#allocation2 + $0x38] sm:$0xff]
          %v2423 = vld [vmem:[#allocation2 + $0x40] sm:$0xff]
          %v2424 = vld [vmem:[#allocation2 + $0x48] sm:$0xff]
          %v2425 = vld [vmem:[#allocation2 + $0x50] sm:$0xff]
          %v2426 = vld [vmem:[#allocation2 + $0x58] sm:$0xff]
          %v2427 = vld [vmem:[#allocation2 + $0x60] sm:$0xff]
          %v2428 = vld [vmem:[#allocation2 + $0x68] sm:$0xff]
          %v2429 = vld [vmem:[#allocation2 + $0x70] sm:$0xff]
          %v2430 = vld [vmem:[#allocation2 + $0x78] sm:$0xff]
          %v2431 = vld [vmem:[#allocation2 + $0x80] sm:$0xff]
          %v2432 = vld [vmem:[#allocation2 + $0x88] sm:$0xff]
          %v2433 = vld [vmem:[#allocation2 + $0x90] sm:$0xff]
          %v2434 = vld [vmem:[#allocation2 + $0x98] sm:$0xff]
          %v2435 = vld [vmem:[#allocation2 + $0xa0] sm:$0xff]
          %v2436 = vld [vmem:[#allocation2 + $0xa8] sm:$0xff]
          %v2437 = vld [vmem:[#allocation2 + $0xb0] sm:$0xff]
          %v2438 = vld [vmem:[#allocation2 + $0xb8] sm:$0xff]
          %v2439 = vld [vmem:[#allocation2 + $0xc0] sm:$0xff]
          %v2440 = vld [vmem:[#allocation2 + $0xc8] sm:$0xff]
          %v2441 = vld [vmem:[#allocation2 + $0xd0] sm:$0xff]
          %v2442 = vld [vmem:[#allocation2 + $0xd8] sm:$0xff]
          %v2443 = vld [vmem:[#allocation2 + $0xe0] sm:$0xff]
          %v2444 = vld [vmem:[#allocation2 + $0xe8] sm:$0xff]
          %v2445 = vld [vmem:[#allocation2 + $0xf0] sm:$0xff]
          %v2446 = vld [vmem:[#allocation2 + $0xf8] sm:$0xff]
          %v2447 = vld [vmem:[#allocation2 + $0x100] sm:$0xff]
          %v2448 = vld [vmem:[#allocation2 + $0x108] sm:$0xff]
          %v2449 = vld [vmem:[#allocation2 + $0x110] sm:$0xff]
          %v2450 = vld [vmem:[#allocation2 + $0x118] sm:$0xff]
          %v2451 = vld [vmem:[#allocation2 + $0x120] sm:$0xff]
          %v2452 = vld [vmem:[#allocation2 + $0x128] sm:$0xff]
          %v2453 = vld [vmem:[#allocation2 + $0x130] sm:$0xff]
          %v2454 = vld [vmem:[#allocation2 + $0x138] sm:$0xff]
          %v2455 = vld [vmem:[#allocation2 + $0x140] sm:$0xff]
          %v2456 = vld [vmem:[#allocation2 + $0x148] sm:$0xff]
          %v2457 = vld [vmem:[#allocation2 + $0x150] sm:$0xff]
          %v2458 = vld [vmem:[#allocation2 + $0x158] sm:$0xff]
          %v2459 = vld [vmem:[#allocation2 + $0x160] sm:$0xff]
          %v2460 = vld [vmem:[#allocation2 + $0x168] sm:$0xff]
          %v2461 = vld [vmem:[#allocation2 + $0x170] sm:$0xff]
          %v2462 = vld [vmem:[#allocation2 + $0x178] sm:$0xff]
          %v2463 = vld [vmem:[#allocation2 + $0x180] sm:$0xff]
          %v2464 = vld [vmem:[#allocation2 + $0x188] sm:$0xff]
          %v2465 = vld [vmem:[#allocation2 + $0x190] sm:$0xff]
          %v2466 = vld [vmem:[#allocation2 + $0x198] sm:$0xff]
          %v2467 = vld [vmem:[#allocation2 + $0x1a0] sm:$0xff]
          %v2468 = vld [vmem:[#allocation2 + $0x1a8] sm:$0xff]
          %v2469 = vld [vmem:[#allocation2 + $0x1b0] sm:$0xff]
          %v2470 = vld [vmem:[#allocation2 + $0x1b8] sm:$0xff]
          %v2471 = vld [vmem:[#allocation2 + $0x1c0] sm:$0xff]
          %v2472 = vld [vmem:[#allocation2 + $0x1c8] sm:$0xff]
          %v2473 = vld [vmem:[#allocation2 + $0x1d0] sm:$0xff]
          %v2474 = vld [vmem:[#allocation2 + $0x1d8] sm:$0xff]
          %v2475 = vld [vmem:[#allocation2 + $0x1e0] sm:$0xff]
          %v2476 = vld [vmem:[#allocation2 + $0x1e8] sm:$0xff]
          %v2477 = vld [vmem:[#allocation2 + $0x1f0] sm:$0xff]
          %v2478 = vld [vmem:[#allocation2 + $0x1f8] sm:$0xff]
          %v2479 = vld [vmem:[%s2] sm:$0xff]
          %v2480 = vld [vmem:[%s2 + $0x8] sm:$0xff]
          %v2481 = vld [vmem:[%s2 + $0x10] sm:$0xff]
          %v2482 = vld [vmem:[%s2 + $0x18] sm:$0xff]
          %v2483 = vld [vmem:[%s2 + $0x20] sm:$0xff]
          %v2484 = vld [vmem:[%s2 + $0x28] sm:$0xff]
          %v2485 = vld [vmem:[%s2 + $0x30] sm:$0xff]
          %v2486 = vld [vmem:[%s2 + $0x38] sm:$0xff]
          %v2487 = vld [vmem:[%s2 + $0x40] sm:$0xff]
          %v2488 = vld [vmem:[%s2 + $0x48] sm:$0xff]
          %v2489 = vld [vmem:[%s2 + $0x50] sm:$0xff]
          %v2490 = vld [vmem:[%s2 + $0x58] sm:$0xff]
          %v2491 = vld [vmem:[%s2 + $0x60] sm:$0xff]
          %v2492 = vld [vmem:[%s2 + $0x68] sm:$0xff]
          %v2493 = vld [vmem:[%s2 + $0x70] sm:$0xff]
          %v2494 = vld [vmem:[%s2 + $0x78] sm:$0xff]
          %v2495 = vld [vmem:[%s2 + $0x80] sm:$0xff]
          %v2496 = vld [vmem:[%s2 + $0x88] sm:$0xff]
          %v2497 = vld [vmem:[%s2 + $0x90] sm:$0xff]
          %v2498 = vld [vmem:[%s2 + $0x98] sm:$0xff]
          %v2499 = vld [vmem:[%s2 + $0xa0] sm:$0xff]
          %v2500 = vld [vmem:[%s2 + $0xa8] sm:$0xff]
          %v2501 = vld [vmem:[%s2 + $0xb0] sm:$0xff]
          %v2502 = vld [vmem:[%s2 + $0xb8] sm:$0xff]
          %v2503 = vld [vmem:[%s2 + $0xc0] sm:$0xff]
          %v2504 = vld [vmem:[%s2 + $0xc8] sm:$0xff]
          %v2505 = vld [vmem:[%s2 + $0xd0] sm:$0xff]
          %v2506 = vld [vmem:[%s2 + $0xd8] sm:$0xff]
          %v2507 = vld [vmem:[%s2 + $0xe0] sm:$0xff]
          %v2508 = vld [vmem:[%s2 + $0xe8] sm:$0xff]
          %v2509 = vld [vmem:[%s2 + $0xf0] sm:$0xff]
          %v2510 = vld [vmem:[%s2 + $0xf8] sm:$0xff]
          %v2511 = vld [vmem:[%s2 + $0x100] sm:$0xff]
          %v2512 = vld [vmem:[%s2 + $0x108] sm:$0xff]
          %v2513 = vld [vmem:[%s2 + $0x110] sm:$0xff]
          %v2514 = vld [vmem:[%s2 + $0x118] sm:$0xff]
          %v2515 = vld [vmem:[%s2 + $0x120] sm:$0xff]
          %v2516 = vld [vmem:[%s2 + $0x128] sm:$0xff]
          %v2517 = vld [vmem:[%s2 + $0x130] sm:$0xff]
          %v2518 = vld [vmem:[%s2 + $0x138] sm:$0xff]
          %v2519 = vld [vmem:[%s2 + $0x140] sm:$0xff]
          %v2520 = vld [vmem:[%s2 + $0x148] sm:$0xff]
          %v2521 = vld [vmem:[%s2 + $0x150] sm:$0xff]
          %v2522 = vld [vmem:[%s2 + $0x158] sm:$0xff]
          %v2523 = vld [vmem:[%s2 + $0x160] sm:$0xff]
          %v2524 = vld [vmem:[%s2 + $0x168] sm:$0xff]
          %v2525 = vld [vmem:[%s2 + $0x170] sm:$0xff]
          %v2526 = vld [vmem:[%s2 + $0x178] sm:$0xff]
          %v2527 = vld [vmem:[%s2 + $0x180] sm:$0xff]
          %v2528 = vld [vmem:[%s2 + $0x188] sm:$0xff]
          %v2529 = vld [vmem:[%s2 + $0x190] sm:$0xff]
          %v2530 = vld [vmem:[%s2 + $0x198] sm:$0xff]
          %v2531 = vld [vmem:[%s2 + $0x1a0] sm:$0xff]
          %v2532 = vld [vmem:[%s2 + $0x1a8] sm:$0xff]
          %v2533 = vld [vmem:[%s2 + $0x1b0] sm:$0xff]
          %v2534 = vld [vmem:[%s2 + $0x1b8] sm:$0xff]
          %v2535 = vld [vmem:[%s2 + $0x1c0] sm:$0xff]
          %v2536 = vld [vmem:[%s2 + $0x1c8] sm:$0xff]
          %v2537 = vld [vmem:[%s2 + $0x1d0] sm:$0xff]
          %v2538 = vld [vmem:[%s2 + $0x1d8] sm:$0xff]
          %v2539 = vld [vmem:[%s2 + $0x1e0] sm:$0xff]
          %v2540 = vld [vmem:[%s2 + $0x1e8] sm:$0xff]
          %v2541 = vld [vmem:[%s2 + $0x1f0] sm:$0xff]
          %v2542 = vld [vmem:[%s2 + $0x1f8] sm:$0xff]
          %2544 = vset.pattern.permute.xlu0 0
          %2545 = vperm.xlu0 %2544, %v2479
          %v2546 = vpop.permute.xlu0 %2545
          %2549 = vset.pattern.permute.xlu0 0
          %2550 = vperm.xlu0 %2549, %v2480
          %v2551 = vpop.permute.xlu0 %2550
          %2554 = vset.pattern.permute.xlu0 0
          %2555 = vperm.xlu0 %2554, %v2481
          %v2556 = vpop.permute.xlu0 %2555
          %2559 = vset.pattern.permute.xlu0 0
          %2560 = vperm.xlu0 %2559, %v2482
          %v2561 = vpop.permute.xlu0 %2560
          %2564 = vset.pattern.permute.xlu0 0
          %2565 = vperm.xlu0 %2564, %v2483
          %v2566 = vpop.permute.xlu0 %2565
          %2569 = vset.pattern.permute.xlu0 0
          %2570 = vperm.xlu0 %2569, %v2484
          %v2571 = vpop.permute.xlu0 %2570
          %2574 = vset.pattern.permute.xlu0 0
          %2575 = vperm.xlu0 %2574, %v2485
          %v2576 = vpop.permute.xlu0 %2575
          %2579 = vset.pattern.permute.xlu0 0
          %2580 = vperm.xlu0 %2579, %v2486
          %v2581 = vpop.permute.xlu0 %2580
          %2584 = vset.pattern.permute.xlu0 0
          %2585 = vperm.xlu0 %2584, %v2487
          %v2586 = vpop.permute.xlu0 %2585
          %2589 = vset.pattern.permute.xlu0 0
          %2590 = vperm.xlu0 %2589, %v2488
          %v2591 = vpop.permute.xlu0 %2590
          %2594 = vset.pattern.permute.xlu0 0
          %2595 = vperm.xlu0 %2594, %v2489
          %v2596 = vpop.permute.xlu0 %2595
          %2599 = vset.pattern.permute.xlu0 0
          %2600 = vperm.xlu0 %2599, %v2490
          %v2601 = vpop.permute.xlu0 %2600
          %2604 = vset.pattern.permute.xlu0 0
          %2605 = vperm.xlu0 %2604, %v2491
          %v2606 = vpop.permute.xlu0 %2605
          %2609 = vset.pattern.permute.xlu0 0
          %2610 = vperm.xlu0 %2609, %v2492
          %v2611 = vpop.permute.xlu0 %2610
          %2614 = vset.pattern.permute.xlu0 0
          %2615 = vperm.xlu0 %2614, %v2493
          %v2616 = vpop.permute.xlu0 %2615
          %2619 = vset.pattern.permute.xlu0 0
          %2620 = vperm.xlu0 %2619, %v2494
          %v2621 = vpop.permute.xlu0 %2620
          %2624 = vset.pattern.permute.xlu0 0
          %2625 = vperm.xlu0 %2624, %v2495
          %v2626 = vpop.permute.xlu0 %2625
          %2629 = vset.pattern.permute.xlu0 0
          %2630 = vperm.xlu0 %2629, %v2496
          %v2631 = vpop.permute.xlu0 %2630
          %2634 = vset.pattern.permute.xlu0 0
          %2635 = vperm.xlu0 %2634, %v2497
          %v2636 = vpop.permute.xlu0 %2635
          %2639 = vset.pattern.permute.xlu0 0
          %2640 = vperm.xlu0 %2639, %v2498
          %v2641 = vpop.permute.xlu0 %2640
          %2644 = vset.pattern.permute.xlu0 0
          %2645 = vperm.xlu0 %2644, %v2499
          %v2646 = vpop.permute.xlu0 %2645
          %2649 = vset.pattern.permute.xlu0 0
          %2650 = vperm.xlu0 %2649, %v2500
          %v2651 = vpop.permute.xlu0 %2650
          %2654 = vset.pattern.permute.xlu0 0
          %2655 = vperm.xlu0 %2654, %v2501
          %v2656 = vpop.permute.xlu0 %2655
          %2659 = vset.pattern.permute.xlu0 0
          %2660 = vperm.xlu0 %2659, %v2502
          %v2661 = vpop.permute.xlu0 %2660
          %2664 = vset.pattern.permute.xlu0 0
          %2665 = vperm.xlu0 %2664, %v2503
          %v2666 = vpop.permute.xlu0 %2665
          %2669 = vset.pattern.permute.xlu0 0
          %2670 = vperm.xlu0 %2669, %v2504
          %v2671 = vpop.permute.xlu0 %2670
          %2674 = vset.pattern.permute.xlu0 0
          %2675 = vperm.xlu0 %2674, %v2505
          %v2676 = vpop.permute.xlu0 %2675
          %2679 = vset.pattern.permute.xlu0 0
          %2680 = vperm.xlu0 %2679, %v2506
          %v2681 = vpop.permute.xlu0 %2680
          %2684 = vset.pattern.permute.xlu0 0
          %2685 = vperm.xlu0 %2684, %v2507
          %v2686 = vpop.permute.xlu0 %2685
          %2689 = vset.pattern.permute.xlu0 0
          %2690 = vperm.xlu0 %2689, %v2508
          %v2691 = vpop.permute.xlu0 %2690
          %2694 = vset.pattern.permute.xlu0 0
          %2695 = vperm.xlu0 %2694, %v2509
          %v2696 = vpop.permute.xlu0 %2695
          %2699 = vset.pattern.permute.xlu0 0
          %2700 = vperm.xlu0 %2699, %v2510
          %v2701 = vpop.permute.xlu0 %2700
          %2704 = vset.pattern.permute.xlu0 0
          %2705 = vperm.xlu0 %2704, %v2511
          %v2706 = vpop.permute.xlu0 %2705
          %2709 = vset.pattern.permute.xlu0 0
          %2710 = vperm.xlu0 %2709, %v2512
          %v2711 = vpop.permute.xlu0 %2710
          %2714 = vset.pattern.permute.xlu0 0
          %2715 = vperm.xlu0 %2714, %v2513
          %v2716 = vpop.permute.xlu0 %2715
          %2719 = vset.pattern.permute.xlu0 0
          %2720 = vperm.xlu0 %2719, %v2514
          %v2721 = vpop.permute.xlu0 %2720
          %2724 = vset.pattern.permute.xlu0 0
          %2725 = vperm.xlu0 %2724, %v2515
          %v2726 = vpop.permute.xlu0 %2725
          %2729 = vset.pattern.permute.xlu0 0
          %2730 = vperm.xlu0 %2729, %v2516
          %v2731 = vpop.permute.xlu0 %2730
          %2734 = vset.pattern.permute.xlu0 0
          %2735 = vperm.xlu0 %2734, %v2517
          %v2736 = vpop.permute.xlu0 %2735
          %2739 = vset.pattern.permute.xlu0 0
          %2740 = vperm.xlu0 %2739, %v2518
          %v2741 = vpop.permute.xlu0 %2740
          %2744 = vset.pattern.permute.xlu0 0
          %2745 = vperm.xlu0 %2744, %v2519
          %v2746 = vpop.permute.xlu0 %2745
          %2749 = vset.pattern.permute.xlu0 0
          %2750 = vperm.xlu0 %2749, %v2520
          %v2751 = vpop.permute.xlu0 %2750
          %2754 = vset.pattern.permute.xlu0 0
          %2755 = vperm.xlu0 %2754, %v2521
          %v2756 = vpop.permute.xlu0 %2755
          %2759 = vset.pattern.permute.xlu0 0
          %2760 = vperm.xlu0 %2759, %v2522
          %v2761 = vpop.permute.xlu0 %2760
          %2764 = vset.pattern.permute.xlu0 0
          %2765 = vperm.xlu0 %2764, %v2523
          %v2766 = vpop.permute.xlu0 %2765
          %2769 = vset.pattern.permute.xlu0 0
          %2770 = vperm.xlu0 %2769, %v2524
          %v2771 = vpop.permute.xlu0 %2770
          %2774 = vset.pattern.permute.xlu0 0
          %2775 = vperm.xlu0 %2774, %v2525
          %v2776 = vpop.permute.xlu0 %2775
          %2779 = vset.pattern.permute.xlu0 0
          %2780 = vperm.xlu0 %2779, %v2526
          %v2781 = vpop.permute.xlu0 %2780
          %2784 = vset.pattern.permute.xlu0 0
          %2785 = vperm.xlu0 %2784, %v2527
          %v2786 = vpop.permute.xlu0 %2785
          %2789 = vset.pattern.permute.xlu0 0
          %2790 = vperm.xlu0 %2789, %v2528
          %v2791 = vpop.permute.xlu0 %2790
          %2794 = vset.pattern.permute.xlu0 0
          %2795 = vperm.xlu0 %2794, %v2529
          %v2796 = vpop.permute.xlu0 %2795
          %2799 = vset.pattern.permute.xlu0 0
          %2800 = vperm.xlu0 %2799, %v2530
          %v2801 = vpop.permute.xlu0 %2800
          %2804 = vset.pattern.permute.xlu0 0
          %2805 = vperm.xlu0 %2804, %v2531
          %v2806 = vpop.permute.xlu0 %2805
          %2809 = vset.pattern.permute.xlu0 0
          %2810 = vperm.xlu0 %2809, %v2532
          %v2811 = vpop.permute.xlu0 %2810
          %2814 = vset.pattern.permute.xlu0 0
          %2815 = vperm.xlu0 %2814, %v2533
          %v2816 = vpop.permute.xlu0 %2815
          %2819 = vset.pattern.permute.xlu0 0
          %2820 = vperm.xlu0 %2819, %v2534
          %v2821 = vpop.permute.xlu0 %2820
          %2824 = vset.pattern.permute.xlu0 0
          %2825 = vperm.xlu0 %2824, %v2535
          %v2826 = vpop.permute.xlu0 %2825
          %2829 = vset.pattern.permute.xlu0 0
          %2830 = vperm.xlu0 %2829, %v2536
          %v2831 = vpop.permute.xlu0 %2830
          %2834 = vset.pattern.permute.xlu0 0
          %2835 = vperm.xlu0 %2834, %v2537
          %v2836 = vpop.permute.xlu0 %2835
          %2839 = vset.pattern.permute.xlu0 0
          %2840 = vperm.xlu0 %2839, %v2538
          %v2841 = vpop.permute.xlu0 %2840
          %2844 = vset.pattern.permute.xlu0 0
          %2845 = vperm.xlu0 %2844, %v2539
          %v2846 = vpop.permute.xlu0 %2845
          %2849 = vset.pattern.permute.xlu0 0
          %2850 = vperm.xlu0 %2849, %v2540
          %v2851 = vpop.permute.xlu0 %2850
          %2854 = vset.pattern.permute.xlu0 0
          %2855 = vperm.xlu0 %2854, %v2541
          %v2856 = vpop.permute.xlu0 %2855
          %2859 = vset.pattern.permute.xlu0 0
          %2860 = vperm.xlu0 %2859, %v2542
          %v2861 = vpop.permute.xlu0 %2860
          %v2863 = vadd.f32 %v2415, %v2546
          %v2864 = vadd.f32 %v2416, %v2551
          %v2865 = vadd.f32 %v2417, %v2556
          %v2866 = vadd.f32 %v2418, %v2561
          %v2867 = vadd.f32 %v2419, %v2566
          %v2868 = vadd.f32 %v2420, %v2571
          %v2869 = vadd.f32 %v2421, %v2576
          %v2870 = vadd.f32 %v2422, %v2581
          %v2871 = vadd.f32 %v2423, %v2586
          %v2872 = vadd.f32 %v2424, %v2591
          %v2873 = vadd.f32 %v2425, %v2596
          %v2874 = vadd.f32 %v2426, %v2601
          %v2875 = vadd.f32 %v2427, %v2606
          %v2876 = vadd.f32 %v2428, %v2611
          %v2877 = vadd.f32 %v2429, %v2616
          %v2878 = vadd.f32 %v2430, %v2621
          %v2879 = vadd.f32 %v2431, %v2626
          %v2880 = vadd.f32 %v2432, %v2631
          %v2881 = vadd.f32 %v2433, %v2636
          %v2882 = vadd.f32 %v2434, %v2641
          %v2883 = vadd.f32 %v2435, %v2646
          %v2884 = vadd.f32 %v2436, %v2651
          %v2885 = vadd.f32 %v2437, %v2656
          %v2886 = vadd.f32 %v2438, %v2661
          %v2887 = vadd.f32 %v2439, %v2666
          %v2888 = vadd.f32 %v2440, %v2671
          %v2889 = vadd.f32 %v2441, %v2676
          %v2890 = vadd.f32 %v2442, %v2681
          %v2891 = vadd.f32 %v2443, %v2686
          %v2892 = vadd.f32 %v2444, %v2691
          %v2893 = vadd.f32 %v2445, %v2696
          %v2894 = vadd.f32 %v2446, %v2701
          %v2895 = vadd.f32 %v2447, %v2706
          %v2896 = vadd.f32 %v2448, %v2711
          %v2897 = vadd.f32 %v2449, %v2716
          %v2898 = vadd.f32 %v2450, %v2721
          %v2899 = vadd.f32 %v2451, %v2726
          %v2900 = vadd.f32 %v2452, %v2731
          %v2901 = vadd.f32 %v2453, %v2736
          %v2902 = vadd.f32 %v2454, %v2741
          %v2903 = vadd.f32 %v2455, %v2746
          %v2904 = vadd.f32 %v2456, %v2751
          %v2905 = vadd.f32 %v2457, %v2756
          %v2906 = vadd.f32 %v2458, %v2761
          %v2907 = vadd.f32 %v2459, %v2766
          %v2908 = vadd.f32 %v2460, %v2771
          %v2909 = vadd.f32 %v2461, %v2776
          %v2910 = vadd.f32 %v2462, %v2781
          %v2911 = vadd.f32 %v2463, %v2786
          %v2912 = vadd.f32 %v2464, %v2791
          %v2913 = vadd.f32 %v2465, %v2796
          %v2914 = vadd.f32 %v2466, %v2801
          %v2915 = vadd.f32 %v2467, %v2806
          %v2916 = vadd.f32 %v2468, %v2811
          %v2917 = vadd.f32 %v2469, %v2816
          %v2918 = vadd.f32 %v2470, %v2821
          %v2919 = vadd.f32 %v2471, %v2826
          %v2920 = vadd.f32 %v2472, %v2831
          %v2921 = vadd.f32 %v2473, %v2836
          %v2922 = vadd.f32 %v2474, %v2841
          %v2923 = vadd.f32 %v2475, %v2846
          %v2924 = vadd.f32 %v2476, %v2851
          %v2925 = vadd.f32 %v2477, %v2856
          %v2926 = vadd.f32 %v2478, %v2861
          %vm2927 = vcmp.ge.f32.partialorder %v2863, 0.0
          %vm2928 = vcmp.ge.f32.partialorder %v2864, 0.0
          %vm2929 = vcmp.ge.f32.partialorder %v2865, 0.0
          %vm2930 = vcmp.ge.f32.partialorder %v2866, 0.0
          %vm2931 = vcmp.ge.f32.partialorder %v2867, 0.0
          %vm2932 = vcmp.ge.f32.partialorder %v2868, 0.0
          %vm2933 = vcmp.ge.f32.partialorder %v2869, 0.0
          %vm2934 = vcmp.ge.f32.partialorder %v2870, 0.0
          %vm2935 = vcmp.ge.f32.partialorder %v2871, 0.0
          %vm2936 = vcmp.ge.f32.partialorder %v2872, 0.0
          %vm2937 = vcmp.ge.f32.partialorder %v2873, 0.0
          %vm2938 = vcmp.ge.f32.partialorder %v2874, 0.0
          %vm2939 = vcmp.ge.f32.partialorder %v2875, 0.0
          %vm2940 = vcmp.ge.f32.partialorder %v2876, 0.0
          %vm2941 = vcmp.ge.f32.partialorder %v2877, 0.0
          %vm2942 = vcmp.ge.f32.partialorder %v2878, 0.0
          %vm2943 = vcmp.ge.f32.partialorder %v2879, 0.0
          %vm2944 = vcmp.ge.f32.partialorder %v2880, 0.0
          %vm2945 = vcmp.ge.f32.partialorder %v2881, 0.0
          %vm2946 = vcmp.ge.f32.partialorder %v2882, 0.0
          %vm2947 = vcmp.ge.f32.partialorder %v2883, 0.0
          %vm2948 = vcmp.ge.f32.partialorder %v2884, 0.0
          %vm2949 = vcmp.ge.f32.partialorder %v2885, 0.0
          %vm2950 = vcmp.ge.f32.partialorder %v2886, 0.0
          %vm2951 = vcmp.ge.f32.partialorder %v2887, 0.0
          %vm2952 = vcmp.ge.f32.partialorder %v2888, 0.0
          %vm2953 = vcmp.ge.f32.partialorder %v2889, 0.0
          %vm2954 = vcmp.ge.f32.partialorder %v2890, 0.0
          %vm2955 = vcmp.ge.f32.partialorder %v2891, 0.0
          %vm2956 = vcmp.ge.f32.partialorder %v2892, 0.0
          %vm2957 = vcmp.ge.f32.partialorder %v2893, 0.0
          %vm2958 = vcmp.ge.f32.partialorder %v2894, 0.0
          %vm2959 = vcmp.ge.f32.partialorder %v2895, 0.0
          %vm2960 = vcmp.ge.f32.partialorder %v2896, 0.0
          %vm2961 = vcmp.ge.f32.partialorder %v2897, 0.0
          %vm2962 = vcmp.ge.f32.partialorder %v2898, 0.0
          %vm2963 = vcmp.ge.f32.partialorder %v2899, 0.0
          %vm2964 = vcmp.ge.f32.partialorder %v2900, 0.0
          %vm2965 = vcmp.ge.f32.partialorder %v2901, 0.0
          %vm2966 = vcmp.ge.f32.partialorder %v2902, 0.0
          %vm2967 = vcmp.ge.f32.partialorder %v2903, 0.0
          %vm2968 = vcmp.ge.f32.partialorder %v2904, 0.0
          %vm2969 = vcmp.ge.f32.partialorder %v2905, 0.0
          %vm2970 = vcmp.ge.f32.partialorder %v2906, 0.0
          %vm2971 = vcmp.ge.f32.partialorder %v2907, 0.0
          %vm2972 = vcmp.ge.f32.partialorder %v2908, 0.0
          %vm2973 = vcmp.ge.f32.partialorder %v2909, 0.0
          %vm2974 = vcmp.ge.f32.partialorder %v2910, 0.0
          %vm2975 = vcmp.ge.f32.partialorder %v2911, 0.0
          %vm2976 = vcmp.ge.f32.partialorder %v2912, 0.0
          %vm2977 = vcmp.ge.f32.partialorder %v2913, 0.0
          %vm2978 = vcmp.ge.f32.partialorder %v2914, 0.0
          %vm2979 = vcmp.ge.f32.partialorder %v2915, 0.0
          %vm2980 = vcmp.ge.f32.partialorder %v2916, 0.0
          %vm2981 = vcmp.ge.f32.partialorder %v2917, 0.0
          %vm2982 = vcmp.ge.f32.partialorder %v2918, 0.0
          %vm2983 = vcmp.ge.f32.partialorder %v2919, 0.0
          %vm2984 = vcmp.ge.f32.partialorder %v2920, 0.0
          %vm2985 = vcmp.ge.f32.partialorder %v2921, 0.0
          %vm2986 = vcmp.ge.f32.partialorder %v2922, 0.0
          %vm2987 = vcmp.ge.f32.partialorder %v2923, 0.0
          %vm2988 = vcmp.ge.f32.partialorder %v2924, 0.0
          %vm2989 = vcmp.ge.f32.partialorder %v2925, 0.0
          %vm2990 = vcmp.ge.f32.partialorder %v2926, 0.0
          %v2991 = vmul.f32 %v2863, 0.2
          %v2992 = vmul.f32 %v2864, 0.2
          %v2993 = vmul.f32 %v2865, 0.2
          %v2994 = vmul.f32 %v2866, 0.2
          %v2995 = vmul.f32 %v2867, 0.2
          %v2996 = vmul.f32 %v2868, 0.2
          %v2997 = vmul.f32 %v2869, 0.2
          %v2998 = vmul.f32 %v2870, 0.2
          %v2999 = vmul.f32 %v2871, 0.2
          %v3000 = vmul.f32 %v2872, 0.2
          %v3001 = vmul.f32 %v2873, 0.2
          %v3002 = vmul.f32 %v2874, 0.2
          %v3003 = vmul.f32 %v2875, 0.2
          %v3004 = vmul.f32 %v2876, 0.2
          %v3005 = vmul.f32 %v2877, 0.2
          %v3006 = vmul.f32 %v2878, 0.2
          %v3007 = vmul.f32 %v2879, 0.2
          %v3008 = vmul.f32 %v2880, 0.2
          %v3009 = vmul.f32 %v2881, 0.2
          %v3010 = vmul.f32 %v2882, 0.2
          %v3011 = vmul.f32 %v2883, 0.2
          %v3012 = vmul.f32 %v2884, 0.2
          %v3013 = vmul.f32 %v2885, 0.2
          %v3014 = vmul.f32 %v2886, 0.2
          %v3015 = vmul.f32 %v2887, 0.2
          %v3016 = vmul.f32 %v2888, 0.2
          %v3017 = vmul.f32 %v2889, 0.2
          %v3018 = vmul.f32 %v2890, 0.2
          %v3019 = vmul.f32 %v2891, 0.2
          %v3020 = vmul.f32 %v2892, 0.2
          %v3021 = vmul.f32 %v2893, 0.2
          %v3022 = vmul.f32 %v2894, 0.2
          %v3023 = vmul.f32 %v2895, 0.2
          %v3024 = vmul.f32 %v2896, 0.2
          %v3025 = vmul.f32 %v2897, 0.2
          %v3026 = vmul.f32 %v2898, 0.2
          %v3027 = vmul.f32 %v2899, 0.2
          %v3028 = vmul.f32 %v2900, 0.2
          %v3029 = vmul.f32 %v2901, 0.2
          %v3030 = vmul.f32 %v2902, 0.2
          %v3031 = vmul.f32 %v2903, 0.2
          %v3032 = vmul.f32 %v2904, 0.2
          %v3033 = vmul.f32 %v2905, 0.2
          %v3034 = vmul.f32 %v2906, 0.2
          %v3035 = vmul.f32 %v2907, 0.2
          %v3036 = vmul.f32 %v2908, 0.2
          %v3037 = vmul.f32 %v2909, 0.2
          %v3038 = vmul.f32 %v2910, 0.2
          %v3039 = vmul.f32 %v2911, 0.2
          %v3040 = vmul.f32 %v2912, 0.2
          %v3041 = vmul.f32 %v2913, 0.2
          %v3042 = vmul.f32 %v2914, 0.2
          %v3043 = vmul.f32 %v2915, 0.2
          %v3044 = vmul.f32 %v2916, 0.2
          %v3045 = vmul.f32 %v2917, 0.2
          %v3046 = vmul.f32 %v2918, 0.2
          %v3047 = vmul.f32 %v2919, 0.2
          %v3048 = vmul.f32 %v2920, 0.2
          %v3049 = vmul.f32 %v2921, 0.2
          %v3050 = vmul.f32 %v2922, 0.2
          %v3051 = vmul.f32 %v2923, 0.2
          %v3052 = vmul.f32 %v2924, 0.2
          %v3053 = vmul.f32 %v2925, 0.2
          %v3054 = vmul.f32 %v2926, 0.2
          %v3055 = vsel %vm2927, %v2863, %v2991
          %v3056 = vsel %vm2928, %v2864, %v2992
          %v3057 = vsel %vm2929, %v2865, %v2993
          %v3058 = vsel %vm2930, %v2866, %v2994
          %v3059 = vsel %vm2931, %v2867, %v2995
          %v3060 = vsel %vm2932, %v2868, %v2996
          %v3061 = vsel %vm2933, %v2869, %v2997
          %v3062 = vsel %vm2934, %v2870, %v2998
          %v3063 = vsel %vm2935, %v2871, %v2999
          %v3064 = vsel %vm2936, %v2872, %v3000
          %v3065 = vsel %vm2937, %v2873, %v3001
          %v3066 = vsel %vm2938, %v2874, %v3002
          %v3067 = vsel %vm2939, %v2875, %v3003
          %v3068 = vsel %vm2940, %v2876, %v3004
          %v3069 = vsel %vm2941, %v2877, %v3005
          %v3070 = vsel %vm2942, %v2878, %v3006
          %v3071 = vsel %vm2943, %v2879, %v3007
          %v3072 = vsel %vm2944, %v2880, %v3008
          %v3073 = vsel %vm2945, %v2881, %v3009
          %v3074 = vsel %vm2946, %v2882, %v3010
          %v3075 = vsel %vm2947, %v2883, %v3011
          %v3076 = vsel %vm2948, %v2884, %v3012
          %v3077 = vsel %vm2949, %v2885, %v3013
          %v3078 = vsel %vm2950, %v2886, %v3014
          %v3079 = vsel %vm2951, %v2887, %v3015
          %v3080 = vsel %vm2952, %v2888, %v3016
          %v3081 = vsel %vm2953, %v2889, %v3017
          %v3082 = vsel %vm2954, %v2890, %v3018
          %v3083 = vsel %vm2955, %v2891, %v3019
          %v3084 = vsel %vm2956, %v2892, %v3020
          %v3085 = vsel %vm2957, %v2893, %v3021
          %v3086 = vsel %vm2958, %v2894, %v3022
          %v3087 = vsel %vm2959, %v2895, %v3023
          %v3088 = vsel %vm2960, %v2896, %v3024
          %v3089 = vsel %vm2961, %v2897, %v3025
          %v3090 = vsel %vm2962, %v2898, %v3026
          %v3091 = vsel %vm2963, %v2899, %v3027
          %v3092 = vsel %vm2964, %v2900, %v3028
          %v3093 = vsel %vm2965, %v2901, %v3029
          %v3094 = vsel %vm2966, %v2902, %v3030
          %v3095 = vsel %vm2967, %v2903, %v3031
          %v3096 = vsel %vm2968, %v2904, %v3032
          %v3097 = vsel %vm2969, %v2905, %v3033
          %v3098 = vsel %vm2970, %v2906, %v3034
          %v3099 = vsel %vm2971, %v2907, %v3035
          %v3100 = vsel %vm2972, %v2908, %v3036
          %v3101 = vsel %vm2973, %v2909, %v3037
          %v3102 = vsel %vm2974, %v2910, %v3038
          %v3103 = vsel %vm2975, %v2911, %v3039
          %v3104 = vsel %vm2976, %v2912, %v3040
          %v3105 = vsel %vm2977, %v2913, %v3041
          %v3106 = vsel %vm2978, %v2914, %v3042
          %v3107 = vsel %vm2979, %v2915, %v3043
          %v3108 = vsel %vm2980, %v2916, %v3044
          %v3109 = vsel %vm2981, %v2917, %v3045
          %v3110 = vsel %vm2982, %v2918, %v3046
          %v3111 = vsel %vm2983, %v2919, %v3047
          %v3112 = vsel %vm2984, %v2920, %v3048
          %v3113 = vsel %vm2985, %v2921, %v3049
          %v3114 = vsel %vm2986, %v2922, %v3050
          %v3115 = vsel %vm2987, %v2923, %v3051
          %v3116 = vsel %vm2988, %v2924, %v3052
          %v3117 = vsel %vm2989, %v2925, %v3053
          %v3118 = vsel %vm2990, %v2926, %v3054
          %v3119 = vld [vmem:[#allocation9] sm:$0xff]
          %v3120 = vld [vmem:[#allocation9 + $0x8] sm:$0xff]
          %v3121 = vld [vmem:[#allocation9 + $0x10] sm:$0xff]
          %v3122 = vld [vmem:[#allocation9 + $0x18] sm:$0xff]
          %v3123 = vld [vmem:[#allocation9 + $0x20] sm:$0xff]
          %v3124 = vld [vmem:[#allocation9 + $0x28] sm:$0xff]
          %v3125 = vld [vmem:[#allocation9 + $0x30] sm:$0xff]
          %v3126 = vld [vmem:[#allocation9 + $0x38] sm:$0xff]
          %v3127 = vld [vmem:[#allocation9 + $0x40] sm:$0xff]
          %v3128 = vld [vmem:[#allocation9 + $0x48] sm:$0xff]
          %v3129 = vld [vmem:[#allocation9 + $0x50] sm:$0xff]
          %v3130 = vld [vmem:[#allocation9 + $0x58] sm:$0xff]
          %v3131 = vld [vmem:[#allocation9 + $0x60] sm:$0xff]
          %v3132 = vld [vmem:[#allocation9 + $0x68] sm:$0xff]
          %v3133 = vld [vmem:[#allocation9 + $0x70] sm:$0xff]
          %v3134 = vld [vmem:[#allocation9 + $0x78] sm:$0xff]
          %v3135 = vld [vmem:[#allocation9 + $0x80] sm:$0xff]
          %v3136 = vld [vmem:[#allocation9 + $0x88] sm:$0xff]
          %v3137 = vld [vmem:[#allocation9 + $0x90] sm:$0xff]
          %v3138 = vld [vmem:[#allocation9 + $0x98] sm:$0xff]
          %v3139 = vld [vmem:[#allocation9 + $0xa0] sm:$0xff]
          %v3140 = vld [vmem:[#allocation9 + $0xa8] sm:$0xff]
          %v3141 = vld [vmem:[#allocation9 + $0xb0] sm:$0xff]
          %v3142 = vld [vmem:[#allocation9 + $0xb8] sm:$0xff]
          %v3143 = vld [vmem:[#allocation9 + $0xc0] sm:$0xff]
          %v3144 = vld [vmem:[#allocation9 + $0xc8] sm:$0xff]
          %v3145 = vld [vmem:[#allocation9 + $0xd0] sm:$0xff]
          %v3146 = vld [vmem:[#allocation9 + $0xd8] sm:$0xff]
          %v3147 = vld [vmem:[#allocation9 + $0xe0] sm:$0xff]
          %v3148 = vld [vmem:[#allocation9 + $0xe8] sm:$0xff]
          %v3149 = vld [vmem:[#allocation9 + $0xf0] sm:$0xff]
          %v3150 = vld [vmem:[#allocation9 + $0xf8] sm:$0xff]
          %v3151 = vld [vmem:[#allocation9 + $0x100] sm:$0xff]
          %v3152 = vld [vmem:[#allocation9 + $0x108] sm:$0xff]
          %v3153 = vld [vmem:[#allocation9 + $0x110] sm:$0xff]
          %v3154 = vld [vmem:[#allocation9 + $0x118] sm:$0xff]
          %v3155 = vld [vmem:[#allocation9 + $0x120] sm:$0xff]
          %v3156 = vld [vmem:[#allocation9 + $0x128] sm:$0xff]
          %v3157 = vld [vmem:[#allocation9 + $0x130] sm:$0xff]
          %v3158 = vld [vmem:[#allocation9 + $0x138] sm:$0xff]
          %v3159 = vld [vmem:[#allocation9 + $0x140] sm:$0xff]
          %v3160 = vld [vmem:[#allocation9 + $0x148] sm:$0xff]
          %v3161 = vld [vmem:[#allocation9 + $0x150] sm:$0xff]
          %v3162 = vld [vmem:[#allocation9 + $0x158] sm:$0xff]
          %v3163 = vld [vmem:[#allocation9 + $0x160] sm:$0xff]
          %v3164 = vld [vmem:[#allocation9 + $0x168] sm:$0xff]
          %v3165 = vld [vmem:[#allocation9 + $0x170] sm:$0xff]
          %v3166 = vld [vmem:[#allocation9 + $0x178] sm:$0xff]
          %v3167 = vld [vmem:[#allocation9 + $0x180] sm:$0xff]
          %v3168 = vld [vmem:[#allocation9 + $0x188] sm:$0xff]
          %v3169 = vld [vmem:[#allocation9 + $0x190] sm:$0xff]
          %v3170 = vld [vmem:[#allocation9 + $0x198] sm:$0xff]
          %v3171 = vld [vmem:[#allocation9 + $0x1a0] sm:$0xff]
          %v3172 = vld [vmem:[#allocation9 + $0x1a8] sm:$0xff]
          %v3173 = vld [vmem:[#allocation9 + $0x1b0] sm:$0xff]
          %v3174 = vld [vmem:[#allocation9 + $0x1b8] sm:$0xff]
          %v3175 = vld [vmem:[#allocation9 + $0x1c0] sm:$0xff]
          %v3176 = vld [vmem:[#allocation9 + $0x1c8] sm:$0xff]
          %v3177 = vld [vmem:[#allocation9 + $0x1d0] sm:$0xff]
          %v3178 = vld [vmem:[#allocation9 + $0x1d8] sm:$0xff]
          %v3179 = vld [vmem:[#allocation9 + $0x1e0] sm:$0xff]
          %v3180 = vld [vmem:[#allocation9 + $0x1e8] sm:$0xff]
          %v3181 = vld [vmem:[#allocation9 + $0x1f0] sm:$0xff]
          %v3182 = vld [vmem:[#allocation9 + $0x1f8] sm:$0xff]
          %v3183 = vmul.f32 %v3055, %v3119
          %v3184 = vmul.f32 %v3056, %v3120
          %v3185 = vmul.f32 %v3057, %v3121
          %v3186 = vmul.f32 %v3058, %v3122
          %v3187 = vmul.f32 %v3059, %v3123
          %v3188 = vmul.f32 %v3060, %v3124
          %v3189 = vmul.f32 %v3061, %v3125
          %v3190 = vmul.f32 %v3062, %v3126
          %v3191 = vmul.f32 %v3063, %v3127
          %v3192 = vmul.f32 %v3064, %v3128
          %v3193 = vmul.f32 %v3065, %v3129
          %v3194 = vmul.f32 %v3066, %v3130
          %v3195 = vmul.f32 %v3067, %v3131
          %v3196 = vmul.f32 %v3068, %v3132
          %v3197 = vmul.f32 %v3069, %v3133
          %v3198 = vmul.f32 %v3070, %v3134
          %v3199 = vmul.f32 %v3071, %v3135
          %v3200 = vmul.f32 %v3072, %v3136
          %v3201 = vmul.f32 %v3073, %v3137
          %v3202 = vmul.f32 %v3074, %v3138
          %v3203 = vmul.f32 %v3075, %v3139
          %v3204 = vmul.f32 %v3076, %v3140
          %v3205 = vmul.f32 %v3077, %v3141
          %v3206 = vmul.f32 %v3078, %v3142
          %v3207 = vmul.f32 %v3079, %v3143
          %v3208 = vmul.f32 %v3080, %v3144
          %v3209 = vmul.f32 %v3081, %v3145
          %v3210 = vmul.f32 %v3082, %v3146
          %v3211 = vmul.f32 %v3083, %v3147
          %v3212 = vmul.f32 %v3084, %v3148
          %v3213 = vmul.f32 %v3085, %v3149
          %v3214 = vmul.f32 %v3086, %v3150
          %v3215 = vmul.f32 %v3087, %v3151
          %v3216 = vmul.f32 %v3088, %v3152
          %v3217 = vmul.f32 %v3089, %v3153
          %v3218 = vmul.f32 %v3090, %v3154
          %v3219 = vmul.f32 %v3091, %v3155
          %v3220 = vmul.f32 %v3092, %v3156
          %v3221 = vmul.f32 %v3093, %v3157
          %v3222 = vmul.f32 %v3094, %v3158
          %v3223 = vmul.f32 %v3095, %v3159
          %v3224 = vmul.f32 %v3096, %v3160
          %v3225 = vmul.f32 %v3097, %v3161
          %v3226 = vmul.f32 %v3098, %v3162
          %v3227 = vmul.f32 %v3099, %v3163
          %v3228 = vmul.f32 %v3100, %v3164
          %v3229 = vmul.f32 %v3101, %v3165
          %v3230 = vmul.f32 %v3102, %v3166
          %v3231 = vmul.f32 %v3103, %v3167
          %v3232 = vmul.f32 %v3104, %v3168
          %v3233 = vmul.f32 %v3105, %v3169
          %v3234 = vmul.f32 %v3106, %v3170
          %v3235 = vmul.f32 %v3107, %v3171
          %v3236 = vmul.f32 %v3108, %v3172
          %v3237 = vmul.f32 %v3109, %v3173
          %v3238 = vmul.f32 %v3110, %v3174
          %v3239 = vmul.f32 %v3111, %v3175
          %v3240 = vmul.f32 %v3112, %v3176
          %v3241 = vmul.f32 %v3113, %v3177
          %v3242 = vmul.f32 %v3114, %v3178
          %v3243 = vmul.f32 %v3115, %v3179
          %v3244 = vmul.f32 %v3116, %v3180
          %v3245 = vmul.f32 %v3117, %v3181
          %v3246 = vmul.f32 %v3118, %v3182
          %v3247 = vld [vmem:[#allocation7] sm:$0xff]
          %v3248 = vld [vmem:[#allocation7 + $0x8] sm:$0xff]
          %v3249 = vld [vmem:[#allocation7 + $0x10] sm:$0xff]
          %v3250 = vld [vmem:[#allocation7 + $0x18] sm:$0xff]
          %v3251 = vld [vmem:[#allocation7 + $0x20] sm:$0xff]
          %v3252 = vld [vmem:[#allocation7 + $0x28] sm:$0xff]
          %v3253 = vld [vmem:[#allocation7 + $0x30] sm:$0xff]
          %v3254 = vld [vmem:[#allocation7 + $0x38] sm:$0xff]
          %v3255 = vld [vmem:[#allocation7 + $0x40] sm:$0xff]
          %v3256 = vld [vmem:[#allocation7 + $0x48] sm:$0xff]
          %v3257 = vld [vmem:[#allocation7 + $0x50] sm:$0xff]
          %v3258 = vld [vmem:[#allocation7 + $0x58] sm:$0xff]
          %v3259 = vld [vmem:[#allocation7 + $0x60] sm:$0xff]
          %v3260 = vld [vmem:[#allocation7 + $0x68] sm:$0xff]
          %v3261 = vld [vmem:[#allocation7 + $0x70] sm:$0xff]
          %v3262 = vld [vmem:[#allocation7 + $0x78] sm:$0xff]
          %v3263 = vld [vmem:[#allocation7 + $0x80] sm:$0xff]
          %v3264 = vld [vmem:[#allocation7 + $0x88] sm:$0xff]
          %v3265 = vld [vmem:[#allocation7 + $0x90] sm:$0xff]
          %v3266 = vld [vmem:[#allocation7 + $0x98] sm:$0xff]
          %v3267 = vld [vmem:[#allocation7 + $0xa0] sm:$0xff]
          %v3268 = vld [vmem:[#allocation7 + $0xa8] sm:$0xff]
          %v3269 = vld [vmem:[#allocation7 + $0xb0] sm:$0xff]
          %v3270 = vld [vmem:[#allocation7 + $0xb8] sm:$0xff]
          %v3271 = vld [vmem:[#allocation7 + $0xc0] sm:$0xff]
          %v3272 = vld [vmem:[#allocation7 + $0xc8] sm:$0xff]
          %v3273 = vld [vmem:[#allocation7 + $0xd0] sm:$0xff]
          %v3274 = vld [vmem:[#allocation7 + $0xd8] sm:$0xff]
          %v3275 = vld [vmem:[#allocation7 + $0xe0] sm:$0xff]
          %v3276 = vld [vmem:[#allocation7 + $0xe8] sm:$0xff]
          %v3277 = vld [vmem:[#allocation7 + $0xf0] sm:$0xff]
          %v3278 = vld [vmem:[#allocation7 + $0xf8] sm:$0xff]
          %v3279 = vld [vmem:[#allocation7 + $0x100] sm:$0xff]
          %v3280 = vld [vmem:[#allocation7 + $0x108] sm:$0xff]
          %v3281 = vld [vmem:[#allocation7 + $0x110] sm:$0xff]
          %v3282 = vld [vmem:[#allocation7 + $0x118] sm:$0xff]
          %v3283 = vld [vmem:[#allocation7 + $0x120] sm:$0xff]
          %v3284 = vld [vmem:[#allocation7 + $0x128] sm:$0xff]
          %v3285 = vld [vmem:[#allocation7 + $0x130] sm:$0xff]
          %v3286 = vld [vmem:[#allocation7 + $0x138] sm:$0xff]
          %v3287 = vld [vmem:[#allocation7 + $0x140] sm:$0xff]
          %v3288 = vld [vmem:[#allocation7 + $0x148] sm:$0xff]
          %v3289 = vld [vmem:[#allocation7 + $0x150] sm:$0xff]
          %v3290 = vld [vmem:[#allocation7 + $0x158] sm:$0xff]
          %v3291 = vld [vmem:[#allocation7 + $0x160] sm:$0xff]
          %v3292 = vld [vmem:[#allocation7 + $0x168] sm:$0xff]
          %v3293 = vld [vmem:[#allocation7 + $0x170] sm:$0xff]
          %v3294 = vld [vmem:[#allocation7 + $0x178] sm:$0xff]
          %v3295 = vld [vmem:[#allocation7 + $0x180] sm:$0xff]
          %v3296 = vld [vmem:[#allocation7 + $0x188] sm:$0xff]
          %v3297 = vld [vmem:[#allocation7 + $0x190] sm:$0xff]
          %v3298 = vld [vmem:[#allocation7 + $0x198] sm:$0xff]
          %v3299 = vld [vmem:[#allocation7 + $0x1a0] sm:$0xff]
          %v3300 = vld [vmem:[#allocation7 + $0x1a8] sm:$0xff]
          %v3301 = vld [vmem:[#allocation7 + $0x1b0] sm:$0xff]
          %v3302 = vld [vmem:[#allocation7 + $0x1b8] sm:$0xff]
          %v3303 = vld [vmem:[#allocation7 + $0x1c0] sm:$0xff]
          %v3304 = vld [vmem:[#allocation7 + $0x1c8] sm:$0xff]
          %v3305 = vld [vmem:[#allocation7 + $0x1d0] sm:$0xff]
          %v3306 = vld [vmem:[#allocation7 + $0x1d8] sm:$0xff]
          %v3307 = vld [vmem:[#allocation7 + $0x1e0] sm:$0xff]
          %v3308 = vld [vmem:[#allocation7 + $0x1e8] sm:$0xff]
          %v3309 = vld [vmem:[#allocation7 + $0x1f0] sm:$0xff]
          %v3310 = vld [vmem:[#allocation7 + $0x1f8] sm:$0xff]
          %v3311 = vpack.c.bf16 %v3184, %v3183
          %v3312 = vpack.c.bf16 %v3186, %v3185
          %v3313 = vpack.c.bf16 %v3188, %v3187
          %v3314 = vpack.c.bf16 %v3190, %v3189
          %v3315 = vpack.c.bf16 %v3192, %v3191
          %v3316 = vpack.c.bf16 %v3194, %v3193
          %v3317 = vpack.c.bf16 %v3196, %v3195
          %v3318 = vpack.c.bf16 %v3198, %v3197
          %v3319 = vpack.c.bf16 %v3200, %v3199
          %v3320 = vpack.c.bf16 %v3202, %v3201
          %v3321 = vpack.c.bf16 %v3204, %v3203
          %v3322 = vpack.c.bf16 %v3206, %v3205
          %v3323 = vpack.c.bf16 %v3208, %v3207
          %v3324 = vpack.c.bf16 %v3210, %v3209
          %v3325 = vpack.c.bf16 %v3212, %v3211
          %v3326 = vpack.c.bf16 %v3214, %v3213
          %v3327 = vpack.c.bf16 %v3216, %v3215
          %v3328 = vpack.c.bf16 %v3218, %v3217
          %v3329 = vpack.c.bf16 %v3220, %v3219
          %v3330 = vpack.c.bf16 %v3222, %v3221
          %v3331 = vpack.c.bf16 %v3224, %v3223
          %v3332 = vpack.c.bf16 %v3226, %v3225
          %v3333 = vpack.c.bf16 %v3228, %v3227
          %v3334 = vpack.c.bf16 %v3230, %v3229
          %v3335 = vpack.c.bf16 %v3232, %v3231
          %v3336 = vpack.c.bf16 %v3234, %v3233
          %v3337 = vpack.c.bf16 %v3236, %v3235
          %v3338 = vpack.c.bf16 %v3238, %v3237
          %v3339 = vpack.c.bf16 %v3240, %v3239
          %v3340 = vpack.c.bf16 %v3242, %v3241
          %v3341 = vpack.c.bf16 %v3244, %v3243
          %v3342 = vpack.c.bf16 %v3246, %v3245
          %v3343 = vld [vmem:[%s4] sm:$0xff]
          %v3344 = vld [vmem:[%s4 + $0x8] sm:$0xff]
          %v3345 = vld [vmem:[%s4 + $0x10] sm:$0xff]
          %v3346 = vld [vmem:[%s4 + $0x18] sm:$0xff]
          %v3347 = vld [vmem:[%s4 + $0x20] sm:$0xff]
          %v3348 = vld [vmem:[%s4 + $0x28] sm:$0xff]
          %v3349 = vld [vmem:[%s4 + $0x30] sm:$0xff]
          %v3350 = vld [vmem:[%s4 + $0x38] sm:$0xff]
          %v3351 = vld [vmem:[%s4 + $0x40] sm:$0xff]
          %v3352 = vld [vmem:[%s4 + $0x48] sm:$0xff]
          %v3353 = vld [vmem:[%s4 + $0x50] sm:$0xff]
          %v3354 = vld [vmem:[%s4 + $0x58] sm:$0xff]
          %v3355 = vld [vmem:[%s4 + $0x60] sm:$0xff]
          %v3356 = vld [vmem:[%s4 + $0x68] sm:$0xff]
          %v3357 = vld [vmem:[%s4 + $0x70] sm:$0xff]
          %v3358 = vld [vmem:[%s4 + $0x78] sm:$0xff]
          %v3359 = vld [vmem:[%s4 + $0x80] sm:$0xff]
          %v3360 = vld [vmem:[%s4 + $0x88] sm:$0xff]
          %v3361 = vld [vmem:[%s4 + $0x90] sm:$0xff]
          %v3362 = vld [vmem:[%s4 + $0x98] sm:$0xff]
          %v3363 = vld [vmem:[%s4 + $0xa0] sm:$0xff]
          %v3364 = vld [vmem:[%s4 + $0xa8] sm:$0xff]
          %v3365 = vld [vmem:[%s4 + $0xb0] sm:$0xff]
          %v3366 = vld [vmem:[%s4 + $0xb8] sm:$0xff]
          %v3367 = vld [vmem:[%s4 + $0xc0] sm:$0xff]
          %v3368 = vld [vmem:[%s4 + $0xc8] sm:$0xff]
          %v3369 = vld [vmem:[%s4 + $0xd0] sm:$0xff]
          %v3370 = vld [vmem:[%s4 + $0xd8] sm:$0xff]
          %v3371 = vld [vmem:[%s4 + $0xe0] sm:$0xff]
          %v3372 = vld [vmem:[%s4 + $0xe8] sm:$0xff]
          %v3373 = vld [vmem:[%s4 + $0xf0] sm:$0xff]
          %v3374 = vld [vmem:[%s4 + $0xf8] sm:$0xff]
          %3376 = vset.pattern.permute.xlu0 0
          %3377 = vperm.xlu0 %3376, %v3343
          %v3378 = vpop.permute.xlu0 %3377
          %3381 = vset.pattern.permute.xlu0 0
          %3382 = vperm.xlu0 %3381, %v3344
          %v3383 = vpop.permute.xlu0 %3382
          %3386 = vset.pattern.permute.xlu0 0
          %3387 = vperm.xlu0 %3386, %v3345
          %v3388 = vpop.permute.xlu0 %3387
          %3391 = vset.pattern.permute.xlu0 0
          %3392 = vperm.xlu0 %3391, %v3346
          %v3393 = vpop.permute.xlu0 %3392
          %3396 = vset.pattern.permute.xlu0 0
          %3397 = vperm.xlu0 %3396, %v3347
          %v3398 = vpop.permute.xlu0 %3397
          %3401 = vset.pattern.permute.xlu0 0
          %3402 = vperm.xlu0 %3401, %v3348
          %v3403 = vpop.permute.xlu0 %3402
          %3406 = vset.pattern.permute.xlu0 0
          %3407 = vperm.xlu0 %3406, %v3349
          %v3408 = vpop.permute.xlu0 %3407
          %3411 = vset.pattern.permute.xlu0 0
          %3412 = vperm.xlu0 %3411, %v3350
          %v3413 = vpop.permute.xlu0 %3412
          %3416 = vset.pattern.permute.xlu0 0
          %3417 = vperm.xlu0 %3416, %v3351
          %v3418 = vpop.permute.xlu0 %3417
          %3421 = vset.pattern.permute.xlu0 0
          %3422 = vperm.xlu0 %3421, %v3352
          %v3423 = vpop.permute.xlu0 %3422
          %3426 = vset.pattern.permute.xlu0 0
          %3427 = vperm.xlu0 %3426, %v3353
          %v3428 = vpop.permute.xlu0 %3427
          %3431 = vset.pattern.permute.xlu0 0
          %3432 = vperm.xlu0 %3431, %v3354
          %v3433 = vpop.permute.xlu0 %3432
          %3436 = vset.pattern.permute.xlu0 0
          %3437 = vperm.xlu0 %3436, %v3355
          %v3438 = vpop.permute.xlu0 %3437
          %3441 = vset.pattern.permute.xlu0 0
          %3442 = vperm.xlu0 %3441, %v3356
          %v3443 = vpop.permute.xlu0 %3442
          %3446 = vset.pattern.permute.xlu0 0
          %3447 = vperm.xlu0 %3446, %v3357
          %v3448 = vpop.permute.xlu0 %3447
          %3451 = vset.pattern.permute.xlu0 0
          %3452 = vperm.xlu0 %3451, %v3358
          %v3453 = vpop.permute.xlu0 %3452
          %3456 = vset.pattern.permute.xlu0 0
          %3457 = vperm.xlu0 %3456, %v3359
          %v3458 = vpop.permute.xlu0 %3457
          %3461 = vset.pattern.permute.xlu0 0
          %3462 = vperm.xlu0 %3461, %v3360
          %v3463 = vpop.permute.xlu0 %3462
          %3466 = vset.pattern.permute.xlu0 0
          %3467 = vperm.xlu0 %3466, %v3361
          %v3468 = vpop.permute.xlu0 %3467
          %3471 = vset.pattern.permute.xlu0 0
          %3472 = vperm.xlu0 %3471, %v3362
          %v3473 = vpop.permute.xlu0 %3472
          %3476 = vset.pattern.permute.xlu0 0
          %3477 = vperm.xlu0 %3476, %v3363
          %v3478 = vpop.permute.xlu0 %3477
          %3481 = vset.pattern.permute.xlu0 0
          %3482 = vperm.xlu0 %3481, %v3364
          %v3483 = vpop.permute.xlu0 %3482
          %3486 = vset.pattern.permute.xlu0 0
          %3487 = vperm.xlu0 %3486, %v3365
          %v3488 = vpop.permute.xlu0 %3487
          %3491 = vset.pattern.permute.xlu0 0
          %3492 = vperm.xlu0 %3491, %v3366
          %v3493 = vpop.permute.xlu0 %3492
          %3496 = vset.pattern.permute.xlu0 0
          %3497 = vperm.xlu0 %3496, %v3367
          %v3498 = vpop.permute.xlu0 %3497
          %3501 = vset.pattern.permute.xlu0 0
          %3502 = vperm.xlu0 %3501, %v3368
          %v3503 = vpop.permute.xlu0 %3502
          %3506 = vset.pattern.permute.xlu0 0
          %3507 = vperm.xlu0 %3506, %v3369
          %v3508 = vpop.permute.xlu0 %3507
          %3511 = vset.pattern.permute.xlu0 0
          %3512 = vperm.xlu0 %3511, %v3370
          %v3513 = vpop.permute.xlu0 %3512
          %3516 = vset.pattern.permute.xlu0 0
          %3517 = vperm.xlu0 %3516, %v3371
          %v3518 = vpop.permute.xlu0 %3517
          %3521 = vset.pattern.permute.xlu0 0
          %3522 = vperm.xlu0 %3521, %v3372
          %v3523 = vpop.permute.xlu0 %3522
          %3526 = vset.pattern.permute.xlu0 0
          %3527 = vperm.xlu0 %3526, %v3373
          %v3528 = vpop.permute.xlu0 %3527
          %3531 = vset.pattern.permute.xlu0 0
          %3532 = vperm.xlu0 %3531, %v3374
          %v3533 = vpop.permute.xlu0 %3532
          %v3599 = vunpack.c.l.b16 %v3247
          %v3600 = vunpack.c.h.b16 %v3247
          %v3601 = vunpack.c.l.b16 %v3248
          %v3602 = vunpack.c.h.b16 %v3248
          %v3603 = vunpack.c.l.b16 %v3249
          %v3604 = vunpack.c.h.b16 %v3249
          %v3605 = vunpack.c.l.b16 %v3250
          %v3606 = vunpack.c.h.b16 %v3250
          %v3607 = vunpack.c.l.b16 %v3251
          %v3608 = vunpack.c.h.b16 %v3251
          %v3609 = vunpack.c.l.b16 %v3252
          %v3610 = vunpack.c.h.b16 %v3252
          %v3611 = vunpack.c.l.b16 %v3253
          %v3612 = vunpack.c.h.b16 %v3253
          %v3613 = vunpack.c.l.b16 %v3254
          %v3614 = vunpack.c.h.b16 %v3254
          %v3615 = vunpack.c.l.b16 %v3255
          %v3616 = vunpack.c.h.b16 %v3255
          %v3617 = vunpack.c.l.b16 %v3256
          %v3618 = vunpack.c.h.b16 %v3256
          %v3619 = vunpack.c.l.b16 %v3257
          %v3620 = vunpack.c.h.b16 %v3257
          %v3621 = vunpack.c.l.b16 %v3258
          %v3622 = vunpack.c.h.b16 %v3258
          %v3623 = vunpack.c.l.b16 %v3259
          %v3624 = vunpack.c.h.b16 %v3259
          %v3625 = vunpack.c.l.b16 %v3260
          %v3626 = vunpack.c.h.b16 %v3260
          %v3627 = vunpack.c.l.b16 %v3261
          %v3628 = vunpack.c.h.b16 %v3261
          %v3629 = vunpack.c.l.b16 %v3262
          %v3630 = vunpack.c.h.b16 %v3262
          %v3631 = vunpack.c.l.b16 %v3263
          %v3632 = vunpack.c.h.b16 %v3263
          %v3633 = vunpack.c.l.b16 %v3264
          %v3634 = vunpack.c.h.b16 %v3264
          %v3635 = vunpack.c.l.b16 %v3265
          %v3636 = vunpack.c.h.b16 %v3265
          %v3637 = vunpack.c.l.b16 %v3266
          %v3638 = vunpack.c.h.b16 %v3266
          %v3639 = vunpack.c.l.b16 %v3267
          %v3640 = vunpack.c.h.b16 %v3267
          %v3641 = vunpack.c.l.b16 %v3268
          %v3642 = vunpack.c.h.b16 %v3268
          %v3643 = vunpack.c.l.b16 %v3269
          %v3644 = vunpack.c.h.b16 %v3269
          %v3645 = vunpack.c.l.b16 %v3270
          %v3646 = vunpack.c.h.b16 %v3270
          %v3647 = vunpack.c.l.b16 %v3271
          %v3648 = vunpack.c.h.b16 %v3271
          %v3649 = vunpack.c.l.b16 %v3272
          %v3650 = vunpack.c.h.b16 %v3272
          %v3651 = vunpack.c.l.b16 %v3273
          %v3652 = vunpack.c.h.b16 %v3273
          %v3653 = vunpack.c.l.b16 %v3274
          %v3654 = vunpack.c.h.b16 %v3274
          %v3655 = vunpack.c.l.b16 %v3275
          %v3656 = vunpack.c.h.b16 %v3275
          %v3657 = vunpack.c.l.b16 %v3276
          %v3658 = vunpack.c.h.b16 %v3276
          %v3659 = vunpack.c.l.b16 %v3277
          %v3660 = vunpack.c.h.b16 %v3277
          %v3661 = vunpack.c.l.b16 %v3278
          %v3662 = vunpack.c.h.b16 %v3278
          %v3663 = vunpack.c.l.b16 %v3279
          %v3664 = vunpack.c.h.b16 %v3279
          %v3665 = vunpack.c.l.b16 %v3280
          %v3666 = vunpack.c.h.b16 %v3280
          %v3667 = vunpack.c.l.b16 %v3281
          %v3668 = vunpack.c.h.b16 %v3281
          %v3669 = vunpack.c.l.b16 %v3282
          %v3670 = vunpack.c.h.b16 %v3282
          %v3671 = vunpack.c.l.b16 %v3283
          %v3672 = vunpack.c.h.b16 %v3283
          %v3673 = vunpack.c.l.b16 %v3284
          %v3674 = vunpack.c.h.b16 %v3284
          %v3675 = vunpack.c.l.b16 %v3285
          %v3676 = vunpack.c.h.b16 %v3285
          %v3677 = vunpack.c.l.b16 %v3286
          %v3678 = vunpack.c.h.b16 %v3286
          %v3679 = vunpack.c.l.b16 %v3287
          %v3680 = vunpack.c.h.b16 %v3287
          %v3681 = vunpack.c.l.b16 %v3288
          %v3682 = vunpack.c.h.b16 %v3288
          %v3683 = vunpack.c.l.b16 %v3289
          %v3684 = vunpack.c.h.b16 %v3289
          %v3685 = vunpack.c.l.b16 %v3290
          %v3686 = vunpack.c.h.b16 %v3290
          %v3687 = vunpack.c.l.b16 %v3291
          %v3688 = vunpack.c.h.b16 %v3291
          %v3689 = vunpack.c.l.b16 %v3292
          %v3690 = vunpack.c.h.b16 %v3292
          %v3691 = vunpack.c.l.b16 %v3293
          %v3692 = vunpack.c.h.b16 %v3293
          %v3693 = vunpack.c.l.b16 %v3294
          %v3694 = vunpack.c.h.b16 %v3294
          %v3695 = vunpack.c.l.b16 %v3295
          %v3696 = vunpack.c.h.b16 %v3295
          %v3697 = vunpack.c.l.b16 %v3296
          %v3698 = vunpack.c.h.b16 %v3296
          %v3699 = vunpack.c.l.b16 %v3297
          %v3700 = vunpack.c.h.b16 %v3297
          %v3701 = vunpack.c.l.b16 %v3298
          %v3702 = vunpack.c.h.b16 %v3298
          %v3703 = vunpack.c.l.b16 %v3299
          %v3704 = vunpack.c.h.b16 %v3299
          %v3705 = vunpack.c.l.b16 %v3300
          %v3706 = vunpack.c.h.b16 %v3300
          %v3707 = vunpack.c.l.b16 %v3301
          %v3708 = vunpack.c.h.b16 %v3301
          %v3709 = vunpack.c.l.b16 %v3302
          %v3710 = vunpack.c.h.b16 %v3302
          %v3711 = vunpack.c.l.b16 %v3303
          %v3712 = vunpack.c.h.b16 %v3303
          %v3713 = vunpack.c.l.b16 %v3304
          %v3714 = vunpack.c.h.b16 %v3304
          %v3715 = vunpack.c.l.b16 %v3305
          %v3716 = vunpack.c.h.b16 %v3305
          %v3717 = vunpack.c.l.b16 %v3306
          %v3718 = vunpack.c.h.b16 %v3306
          %v3719 = vunpack.c.l.b16 %v3307
          %v3720 = vunpack.c.h.b16 %v3307
          %v3721 = vunpack.c.l.b16 %v3308
          %v3722 = vunpack.c.h.b16 %v3308
          %v3723 = vunpack.c.l.b16 %v3309
          %v3724 = vunpack.c.h.b16 %v3309
          %v3725 = vunpack.c.l.b16 %v3310
          %v3726 = vunpack.c.h.b16 %v3310
          %v3727 = vpack.c.b16 %v3603, %v3599
          %v3728 = vpack.c.b16 %v3604, %v3600
          %v3729 = vpack.c.b16 %v3605, %v3601
          %v3730 = vpack.c.b16 %v3606, %v3602
          %v3731 = vpack.c.b16 %v3611, %v3607
          %v3732 = vpack.c.b16 %v3612, %v3608
          %v3733 = vpack.c.b16 %v3613, %v3609
          %v3734 = vpack.c.b16 %v3614, %v3610
          %v3735 = vpack.c.b16 %v3619, %v3615
          %v3736 = vpack.c.b16 %v3620, %v3616
          %v3737 = vpack.c.b16 %v3621, %v3617
          %v3738 = vpack.c.b16 %v3622, %v3618
          %v3739 = vpack.c.b16 %v3627, %v3623
          %v3740 = vpack.c.b16 %v3628, %v3624
          %v3741 = vpack.c.b16 %v3629, %v3625
          %v3742 = vpack.c.b16 %v3630, %v3626
          %v3743 = vpack.c.b16 %v3635, %v3631
          %v3744 = vpack.c.b16 %v3636, %v3632
          %v3745 = vpack.c.b16 %v3637, %v3633
          %v3746 = vpack.c.b16 %v3638, %v3634
          %v3747 = vpack.c.b16 %v3643, %v3639
          %v3748 = vpack.c.b16 %v3644, %v3640
          %v3749 = vpack.c.b16 %v3645, %v3641
          %v3750 = vpack.c.b16 %v3646, %v3642
          %v3751 = vpack.c.b16 %v3651, %v3647
          %v3752 = vpack.c.b16 %v3652, %v3648
          %v3753 = vpack.c.b16 %v3653, %v3649
          %v3754 = vpack.c.b16 %v3654, %v3650
          %v3755 = vpack.c.b16 %v3659, %v3655
          %v3756 = vpack.c.b16 %v3660, %v3656
          %v3757 = vpack.c.b16 %v3661, %v3657
          %v3758 = vpack.c.b16 %v3662, %v3658
          %v3759 = vpack.c.b16 %v3667, %v3663
          %v3760 = vpack.c.b16 %v3668, %v3664
          %v3761 = vpack.c.b16 %v3669, %v3665
          %v3762 = vpack.c.b16 %v3670, %v3666
          %v3763 = vpack.c.b16 %v3675, %v3671
          %v3764 = vpack.c.b16 %v3676, %v3672
          %v3765 = vpack.c.b16 %v3677, %v3673
          %v3766 = vpack.c.b16 %v3678, %v3674
          %v3767 = vpack.c.b16 %v3683, %v3679
          %v3768 = vpack.c.b16 %v3684, %v3680
          %v3769 = vpack.c.b16 %v3685, %v3681
          %v3770 = vpack.c.b16 %v3686, %v3682
          %v3771 = vpack.c.b16 %v3691, %v3687
          %v3772 = vpack.c.b16 %v3692, %v3688
          %v3773 = vpack.c.b16 %v3693, %v3689
          %v3774 = vpack.c.b16 %v3694, %v3690
          %v3775 = vpack.c.b16 %v3699, %v3695
          %v3776 = vpack.c.b16 %v3700, %v3696
          %v3777 = vpack.c.b16 %v3701, %v3697
          %v3778 = vpack.c.b16 %v3702, %v3698
          %v3779 = vpack.c.b16 %v3707, %v3703
          %v3780 = vpack.c.b16 %v3708, %v3704
          %v3781 = vpack.c.b16 %v3709, %v3705
          %v3782 = vpack.c.b16 %v3710, %v3706
          %v3783 = vpack.c.b16 %v3715, %v3711
          %v3784 = vpack.c.b16 %v3716, %v3712
          %v3785 = vpack.c.b16 %v3717, %v3713
          %v3786 = vpack.c.b16 %v3718, %v3714
          %v3787 = vpack.c.b16 %v3723, %v3719
          %v3788 = vpack.c.b16 %v3724, %v3720
          %v3789 = vpack.c.b16 %v3725, %v3721
          %v3790 = vpack.c.b16 %v3726, %v3722
          %3855 = vmatprep.subr.bf16.mxu0 0
          %3856 = vmatpush1.bf16.msra.mxu0 %v3311
          %3857 = vmatprep.subr.bf16.mxu0 0
          %3858 = vmatpush1.bf16.msra.mxu0 %v3312
          %3859 = vmatprep.subr.bf16.mxu0 0
          %3860 = vmatpush1.bf16.msra.mxu0 %v3313
          %3861 = vmatprep.subr.bf16.mxu0 0
          %3862 = vmatpush1.bf16.msra.mxu0 %v3314
          %3863 = vmatprep.subr.bf16.mxu0 0
          %3864 = vmatpush1.bf16.msra.mxu0 %v3315
          %3865 = vmatprep.subr.bf16.mxu0 0
          %3866 = vmatpush1.bf16.msra.mxu0 %v3316
          %3867 = vmatprep.subr.bf16.mxu0 0
          %3868 = vmatpush1.bf16.msra.mxu0 %v3317
          %3869 = vmatprep.subr.bf16.mxu0 0
          %3870 = vmatpush1.bf16.msra.mxu0 %v3318
          %3871 = vmatprep.subr.bf16.mxu0 0
          %3872 = vmatpush1.bf16.msra.mxu0 %v3319
          %3873 = vmatprep.subr.bf16.mxu0 0
          %3874 = vmatpush1.bf16.msra.mxu0 %v3320
          %3875 = vmatprep.subr.bf16.mxu0 0
          %3876 = vmatpush1.bf16.msra.mxu0 %v3321
          %3877 = vmatprep.subr.bf16.mxu0 0
          %3878 = vmatpush1.bf16.msra.mxu0 %v3322
          %3879 = vmatprep.subr.bf16.mxu0 0
          %3880 = vmatpush1.bf16.msra.mxu0 %v3323
          %3881 = vmatprep.subr.bf16.mxu0 0
          %3882 = vmatpush1.bf16.msra.mxu0 %v3324
          %3883 = vmatprep.subr.bf16.mxu0 0
          %3884 = vmatpush1.bf16.msra.mxu0 %v3325
          %3885 = vmatprep.subr.bf16.mxu0 0
          %3886 = vmatpush1.bf16.msra.mxu0 %v3326
          %3887 = vmatprep.mubr.bf16.mxu0 %v3728
          %3888 = vmatmul.mubr.bf16.gmra.mrb[0].mxu0 %v3727
          %v3889 = vpop.f32.mrb[0].mxu0
          %v3890 = vadd.f32 %v3378, %v3889
          %v3891 = vpop.f32.mrb[0].mxu0
          %v3892 = vpop.f32.mrb[0].mxu0
          %v3893 = vadd.f32 %v3383, %v3892
          %v3894 = vpop.f32.mrb[0].mxu0
          %3895 = vmatprep.mubr.bf16.mxu0 %v3732
          %3896 = vmatmul.mubr.bf16.gmra.mrb[0].mxu0 %v3731
          %v3897 = vpop.f32.mrb[0].mxu0
          %v3898 = vadd.f32 %v3388, %v3897
          %v3899 = vpop.f32.mrb[0].mxu0
          %v3900 = vpop.f32.mrb[0].mxu0
          %v3901 = vadd.f32 %v3393, %v3900
          %v3902 = vpop.f32.mrb[0].mxu0
          %3903 = vmatprep.mubr.bf16.mxu0 %v3736
          %3904 = vmatmul.mubr.bf16.gmra.mrb[0].mxu0 %v3735
          %v3905 = vpop.f32.mrb[0].mxu0
          %v3906 = vadd.f32 %v3398, %v3905
          %v3907 = vpop.f32.mrb[0].mxu0
          %v3908 = vpop.f32.mrb[0].mxu0
          %v3909 = vadd.f32 %v3403, %v3908
          %v3910 = vpop.f32.mrb[0].mxu0
          %3911 = vmatprep.mubr.bf16.mxu0 %v3740
          %3912 = vmatmul.mubr.bf16.gmra.mrb[0].mxu0 %v3739
          %v3913 = vpop.f32.mrb[0].mxu0
          %v3914 = vadd.f32 %v3408, %v3913
          %v3915 = vpop.f32.mrb[0].mxu0
          %v3916 = vpop.f32.mrb[0].mxu0
          %v3917 = vadd.f32 %v3413, %v3916
          %v3918 = vpop.f32.mrb[0].mxu0
          %3919 = vmatprep.mubr.bf16.mxu0 %v3744
          %3920 = vmatmul.mubr.bf16.gmra.mrb[0].mxu0 %v3743
          %v3921 = vpop.f32.mrb[0].mxu0
          %v3922 = vadd.f32 %v3418, %v3921
          %v3923 = vpop.f32.mrb[0].mxu0
          %v3924 = vpop.f32.mrb[0].mxu0
          %v3925 = vadd.f32 %v3423, %v3924
          %v3926 = vpop.f32.mrb[0].mxu0
          %3927 = vmatprep.mubr.bf16.mxu0 %v3748
          %3928 = vmatmul.mubr.bf16.gmra.mrb[0].mxu0 %v3747
          %v3929 = vpop.f32.mrb[0].mxu0
          %v3930 = vadd.f32 %v3428, %v3929
          %v3931 = vpop.f32.mrb[0].mxu0
          %v3932 = vpop.f32.mrb[0].mxu0
          %v3933 = vadd.f32 %v3433, %v3932
          %v3934 = vpop.f32.mrb[0].mxu0
          %3935 = vmatprep.mubr.bf16.mxu0 %v3752
          %3936 = vmatmul.mubr.bf16.gmra.mrb[0].mxu0 %v3751
          %v3937 = vpop.f32.mrb[0].mxu0
          %v3938 = vadd.f32 %v3438, %v3937
          %v3939 = vpop.f32.mrb[0].mxu0
          %v3940 = vpop.f32.mrb[0].mxu0
          %v3941 = vadd.f32 %v3443, %v3940
          %v3942 = vpop.f32.mrb[0].mxu0
          %3943 = vmatprep.mubr.bf16.mxu0 %v3756
          %3944 = vmatmul.mubr.bf16.gmra.mrb[0].mxu0 %v3755
          %v3945 = vpop.f32.mrb[0].mxu0
          %v3946 = vadd.f32 %v3448, %v3945
          %v3947 = vpop.f32.mrb[0].mxu0
          %v3948 = vpop.f32.mrb[0].mxu0
          %v3949 = vadd.f32 %v3453, %v3948
          %v3950 = vpop.f32.mrb[0].mxu0
          %3951 = vmatprep.mubr.bf16.mxu0 %v3760
          %3952 = vmatmul.mubr.bf16.gmra.mrb[0].mxu0 %v3759
          %v3953 = vpop.f32.mrb[0].mxu0
          %v3954 = vadd.f32 %v3458, %v3953
          %v3955 = vpop.f32.mrb[0].mxu0
          %v3956 = vpop.f32.mrb[0].mxu0
          %v3957 = vadd.f32 %v3463, %v3956
          %v3958 = vpop.f32.mrb[0].mxu0
          %3959 = vmatprep.mubr.bf16.mxu0 %v3764
          %3960 = vmatmul.mubr.bf16.gmra.mrb[0].mxu0 %v3763
          %v3961 = vpop.f32.mrb[0].mxu0
          %v3962 = vadd.f32 %v3468, %v3961
          %v3963 = vpop.f32.mrb[0].mxu0
          %v3964 = vpop.f32.mrb[0].mxu0
          %v3965 = vadd.f32 %v3473, %v3964
          %v3966 = vpop.f32.mrb[0].mxu0
          %3967 = vmatprep.mubr.bf16.mxu0 %v3768
          %3968 = vmatmul.mubr.bf16.gmra.mrb[0].mxu0 %v3767
          %v3969 = vpop.f32.mrb[0].mxu0
          %v3970 = vadd.f32 %v3478, %v3969
          %v3971 = vpop.f32.mrb[0].mxu0
          %v3972 = vpop.f32.mrb[0].mxu0
          %v3973 = vadd.f32 %v3483, %v3972
          %v3974 = vpop.f32.mrb[0].mxu0
          %3975 = vmatprep.mubr.bf16.mxu0 %v3772
          %3976 = vmatmul.mubr.bf16.gmra.mrb[0].mxu0 %v3771
          %v3977 = vpop.f32.mrb[0].mxu0
          %v3978 = vadd.f32 %v3488, %v3977
          %v3979 = vpop.f32.mrb[0].mxu0
          %v3980 = vpop.f32.mrb[0].mxu0
          %v3981 = vadd.f32 %v3493, %v3980
          %v3982 = vpop.f32.mrb[0].mxu0
          %3983 = vmatprep.mubr.bf16.mxu0 %v3776
          %3984 = vmatmul.mubr.bf16.gmra.mrb[0].mxu0 %v3775
          %v3985 = vpop.f32.mrb[0].mxu0
          %v3986 = vadd.f32 %v3498, %v3985
          %v3987 = vpop.f32.mrb[0].mxu0
          %v3988 = vpop.f32.mrb[0].mxu0
          %v3989 = vadd.f32 %v3503, %v3988
          %v3990 = vpop.f32.mrb[0].mxu0
          %3991 = vmatprep.mubr.bf16.mxu0 %v3780
          %3992 = vmatmul.mubr.bf16.gmra.mrb[0].mxu0 %v3779
          %v3993 = vpop.f32.mrb[0].mxu0
          %v3994 = vadd.f32 %v3508, %v3993
          %v3995 = vpop.f32.mrb[0].mxu0
          %v3996 = vpop.f32.mrb[0].mxu0
          %v3997 = vadd.f32 %v3513, %v3996
          %v3998 = vpop.f32.mrb[0].mxu0
          %3999 = vmatprep.mubr.bf16.mxu0 %v3784
          %4000 = vmatmul.mubr.bf16.gmra.mrb[0].mxu0 %v3783
          %v4001 = vpop.f32.mrb[0].mxu0
          %v4002 = vadd.f32 %v3518, %v4001
          %v4003 = vpop.f32.mrb[0].mxu0
          %v4004 = vpop.f32.mrb[0].mxu0
          %v4005 = vadd.f32 %v3523, %v4004
          %v4006 = vpop.f32.mrb[0].mxu0
          %4007 = vmatprep.mubr.bf16.mxu0 %v3788
          %4008 = vmatmul.mubr.bf16.gmra.mrb[0].mxu0 %v3787
          %v4009 = vpop.f32.mrb[0].mxu0
          %v4010 = vadd.f32 %v3528, %v4009
          %v4011 = vpop.f32.mrb[0].mxu0
          %v4012 = vpop.f32.mrb[0].mxu0
          %v4013 = vadd.f32 %v3533, %v4012
          %v4014 = vpop.f32.mrb[0].mxu0
          %4015 = vdwg.mxu0
          %4016 = vmatprep.subr.bf16.mxu0 0
          %4017 = vmatpush1.bf16.msra.mxu0 %v3327
          %4018 = vmatprep.subr.bf16.mxu0 0
          %4019 = vmatpush1.bf16.msra.mxu0 %v3328
          %4020 = vmatprep.subr.bf16.mxu0 0
          %4021 = vmatpush1.bf16.msra.mxu0 %v3329
          %4022 = vmatprep.subr.bf16.mxu0 0
          %4023 = vmatpush1.bf16.msra.mxu0 %v3330
          %4024 = vmatprep.subr.bf16.mxu0 0
          %4025 = vmatpush1.bf16.msra.mxu0 %v3331
          %4026 = vmatprep.subr.bf16.mxu0 0
          %4027 = vmatpush1.bf16.msra.mxu0 %v3332
          %4028 = vmatprep.subr.bf16.mxu0 0
          %4029 = vmatpush1.bf16.msra.mxu0 %v3333
          %4030 = vmatprep.subr.bf16.mxu0 0
          %4031 = vmatpush1.bf16.msra.mxu0 %v3334
          %4032 = vmatprep.subr.bf16.mxu0 0
          %4033 = vmatpush1.bf16.msra.mxu0 %v3335
          %4034 = vmatprep.subr.bf16.mxu0 0
          %4035 = vmatpush1.bf16.msra.mxu0 %v3336
          %4036 = vmatprep.subr.bf16.mxu0 0
          %4037 = vmatpush1.bf16.msra.mxu0 %v3337
          %4038 = vmatprep.subr.bf16.mxu0 0
          %4039 = vmatpush1.bf16.msra.mxu0 %v3338
          %4040 = vmatprep.subr.bf16.mxu0 0
          %4041 = vmatpush1.bf16.msra.mxu0 %v3339
          %4042 = vmatprep.subr.bf16.mxu0 0
          %4043 = vmatpush1.bf16.msra.mxu0 %v3340
          %4044 = vmatprep.subr.bf16.mxu0 0
          %4045 = vmatpush1.bf16.msra.mxu0 %v3341
          %4046 = vmatprep.subr.bf16.mxu0 0
          %4047 = vmatpush1.bf16.msra.mxu0 %v3342
          %4048 = vmatprep.mubr.bf16.mxu0 %v3730
          %4049 = vmatmul.mubr.bf16.gmra.mrb[0].mxu0 %v3729
          %v4050 = vpop.f32.mrb[0].mxu0
          %v4051 = vadd.f32 %v3890, %v4050
          %v4052 = vpop.f32.mrb[0].mxu0
          %v4053 = vpop.f32.mrb[0].mxu0
          %v4054 = vadd.f32 %v3893, %v4053
          %v4055 = vpop.f32.mrb[0].mxu0
          %4056 = vmatprep.mubr.bf16.mxu0 %v3734
          %4057 = vmatmul.mubr.bf16.gmra.mrb[0].mxu0 %v3733
          %v4058 = vpop.f32.mrb[0].mxu0
          %v4059 = vadd.f32 %v3898, %v4058
          %v4060 = vpop.f32.mrb[0].mxu0
          %v4061 = vpop.f32.mrb[0].mxu0
          %v4062 = vadd.f32 %v3901, %v4061
          %v4063 = vpop.f32.mrb[0].mxu0
          %4064 = vmatprep.mubr.bf16.mxu0 %v3738
          %4065 = vmatmul.mubr.bf16.gmra.mrb[0].mxu0 %v3737
          %v4066 = vpop.f32.mrb[0].mxu0
          %v4067 = vadd.f32 %v3906, %v4066
          %v4068 = vpop.f32.mrb[0].mxu0
          %v4069 = vpop.f32.mrb[0].mxu0
          %v4070 = vadd.f32 %v3909, %v4069
          %v4071 = vpop.f32.mrb[0].mxu0
          %4072 = vmatprep.mubr.bf16.mxu0 %v3742
          %4073 = vmatmul.mubr.bf16.gmra.mrb[0].mxu0 %v3741
          %v4074 = vpop.f32.mrb[0].mxu0
          %v4075 = vadd.f32 %v3914, %v4074
          %v4076 = vpop.f32.mrb[0].mxu0
          %v4077 = vpop.f32.mrb[0].mxu0
          %v4078 = vadd.f32 %v3917, %v4077
          %v4079 = vpop.f32.mrb[0].mxu0
          %4080 = vmatprep.mubr.bf16.mxu0 %v3746
          %4081 = vmatmul.mubr.bf16.gmra.mrb[0].mxu0 %v3745
          %v4082 = vpop.f32.mrb[0].mxu0
          %v4083 = vadd.f32 %v3922, %v4082
          %v4084 = vpop.f32.mrb[0].mxu0
          %v4085 = vpop.f32.mrb[0].mxu0
          %v4086 = vadd.f32 %v3925, %v4085
          %v4087 = vpop.f32.mrb[0].mxu0
          %4088 = vmatprep.mubr.bf16.mxu0 %v3750
          %4089 = vmatmul.mubr.bf16.gmra.mrb[0].mxu0 %v3749
          %v4090 = vpop.f32.mrb[0].mxu0
          %v4091 = vadd.f32 %v3930, %v4090
          %v4092 = vpop.f32.mrb[0].mxu0
          %v4093 = vpop.f32.mrb[0].mxu0
          %v4094 = vadd.f32 %v3933, %v4093
          %v4095 = vpop.f32.mrb[0].mxu0
          %4096 = vmatprep.mubr.bf16.mxu0 %v3754
          %4097 = vmatmul.mubr.bf16.gmra.mrb[0].mxu0 %v3753
          %v4098 = vpop.f32.mrb[0].mxu0
          %v4099 = vadd.f32 %v3938, %v4098
          %v4100 = vpop.f32.mrb[0].mxu0
          %v4101 = vpop.f32.mrb[0].mxu0
          %v4102 = vadd.f32 %v3941, %v4101
          %v4103 = vpop.f32.mrb[0].mxu0
          %4104 = vmatprep.mubr.bf16.mxu0 %v3758
          %4105 = vmatmul.mubr.bf16.gmra.mrb[0].mxu0 %v3757
          %v4106 = vpop.f32.mrb[0].mxu0
          %v4107 = vadd.f32 %v3946, %v4106
          %v4108 = vpop.f32.mrb[0].mxu0
          %v4109 = vpop.f32.mrb[0].mxu0
          %v4110 = vadd.f32 %v3949, %v4109
          %v4111 = vpop.f32.mrb[0].mxu0
          %4112 = vmatprep.mubr.bf16.mxu0 %v3762
          %4113 = vmatmul.mubr.bf16.gmra.mrb[0].mxu0 %v3761
          %v4114 = vpop.f32.mrb[0].mxu0
          %v4115 = vadd.f32 %v3954, %v4114
          %v4116 = vpop.f32.mrb[0].mxu0
          %v4117 = vpop.f32.mrb[0].mxu0
          %v4118 = vadd.f32 %v3957, %v4117
          %v4119 = vpop.f32.mrb[0].mxu0
          %4120 = vmatprep.mubr.bf16.mxu0 %v3766
          %4121 = vmatmul.mubr.bf16.gmra.mrb[0].mxu0 %v3765
          %v4122 = vpop.f32.mrb[0].mxu0
          %v4123 = vadd.f32 %v3962, %v4122
          %v4124 = vpop.f32.mrb[0].mxu0
          %v4125 = vpop.f32.mrb[0].mxu0
          %v4126 = vadd.f32 %v3965, %v4125
          %v4127 = vpop.f32.mrb[0].mxu0
          %4128 = vmatprep.mubr.bf16.mxu0 %v3770
          %4129 = vmatmul.mubr.bf16.gmra.mrb[0].mxu0 %v3769
          %v4130 = vpop.f32.mrb[0].mxu0
          %v4131 = vadd.f32 %v3970, %v4130
          %v4132 = vpop.f32.mrb[0].mxu0
          %v4133 = vpop.f32.mrb[0].mxu0
          %v4134 = vadd.f32 %v3973, %v4133
          %v4135 = vpop.f32.mrb[0].mxu0
          %4136 = vmatprep.mubr.bf16.mxu0 %v3774
          %4137 = vmatmul.mubr.bf16.gmra.mrb[0].mxu0 %v3773
          %v4138 = vpop.f32.mrb[0].mxu0
          %v4139 = vadd.f32 %v3978, %v4138
          %v4140 = vpop.f32.mrb[0].mxu0
          %v4141 = vpop.f32.mrb[0].mxu0
          %v4142 = vadd.f32 %v3981, %v4141
          %v4143 = vpop.f32.mrb[0].mxu0
          %4144 = vmatprep.mubr.bf16.mxu0 %v3778
          %4145 = vmatmul.mubr.bf16.gmra.mrb[0].mxu0 %v3777
          %v4146 = vpop.f32.mrb[0].mxu0
          %v4147 = vadd.f32 %v3986, %v4146
          %v4148 = vpop.f32.mrb[0].mxu0
          %v4149 = vpop.f32.mrb[0].mxu0
          %v4150 = vadd.f32 %v3989, %v4149
          %v4151 = vpop.f32.mrb[0].mxu0
          %4152 = vmatprep.mubr.bf16.mxu0 %v3782
          %4153 = vmatmul.mubr.bf16.gmra.mrb[0].mxu0 %v3781
          %v4154 = vpop.f32.mrb[0].mxu0
          %v4155 = vadd.f32 %v3994, %v4154
          %v4156 = vpop.f32.mrb[0].mxu0
          %v4157 = vpop.f32.mrb[0].mxu0
          %v4158 = vadd.f32 %v3997, %v4157
          %v4159 = vpop.f32.mrb[0].mxu0
          %4160 = vmatprep.mubr.bf16.mxu0 %v3786
          %4161 = vmatmul.mubr.bf16.gmra.mrb[0].mxu0 %v3785
          %v4162 = vpop.f32.mrb[0].mxu0
          %v4163 = vadd.f32 %v4002, %v4162
          %v4164 = vpop.f32.mrb[0].mxu0
          %v4165 = vpop.f32.mrb[0].mxu0
          %v4166 = vadd.f32 %v4005, %v4165
          %v4167 = vpop.f32.mrb[0].mxu0
          %4168 = vmatprep.mubr.bf16.mxu0 %v3790
          %4169 = vmatmul.mubr.bf16.gmra.mrb[0].mxu0 %v3789
          %v4170 = vpop.f32.mrb[0].mxu0
          %v4171 = vadd.f32 %v4010, %v4170
          %v4172 = vpop.f32.mrb[0].mxu0
          %v4173 = vpop.f32.mrb[0].mxu0
          %v4174 = vadd.f32 %v4013, %v4173
          %v4175 = vpop.f32.mrb[0].mxu0
          %4176 = vdwg.mxu0
          %vm4177 = vcmp.ge.f32.partialorder %v4051, 0.0
          %vm4178 = vcmp.ge.f32.partialorder %v4054, 0.0
          %vm4179 = vcmp.ge.f32.partialorder %v4059, 0.0
          %vm4180 = vcmp.ge.f32.partialorder %v4062, 0.0
          %vm4181 = vcmp.ge.f32.partialorder %v4067, 0.0
          %vm4182 = vcmp.ge.f32.partialorder %v4070, 0.0
          %vm4183 = vcmp.ge.f32.partialorder %v4075, 0.0
          %vm4184 = vcmp.ge.f32.partialorder %v4078, 0.0
          %vm4185 = vcmp.ge.f32.partialorder %v4083, 0.0
          %vm4186 = vcmp.ge.f32.partialorder %v4086, 0.0
          %vm4187 = vcmp.ge.f32.partialorder %v4091, 0.0
          %vm4188 = vcmp.ge.f32.partialorder %v4094, 0.0
          %vm4189 = vcmp.ge.f32.partialorder %v4099, 0.0
          %vm4190 = vcmp.ge.f32.partialorder %v4102, 0.0
          %vm4191 = vcmp.ge.f32.partialorder %v4107, 0.0
          %vm4192 = vcmp.ge.f32.partialorder %v4110, 0.0
          %vm4193 = vcmp.ge.f32.partialorder %v4115, 0.0
          %vm4194 = vcmp.ge.f32.partialorder %v4118, 0.0
          %vm4195 = vcmp.ge.f32.partialorder %v4123, 0.0
          %vm4196 = vcmp.ge.f32.partialorder %v4126, 0.0
          %vm4197 = vcmp.ge.f32.partialorder %v4131, 0.0
          %vm4198 = vcmp.ge.f32.partialorder %v4134, 0.0
          %vm4199 = vcmp.ge.f32.partialorder %v4139, 0.0
          %vm4200 = vcmp.ge.f32.partialorder %v4142, 0.0
          %vm4201 = vcmp.ge.f32.partialorder %v4147, 0.0
          %vm4202 = vcmp.ge.f32.partialorder %v4150, 0.0
          %vm4203 = vcmp.ge.f32.partialorder %v4155, 0.0
          %vm4204 = vcmp.ge.f32.partialorder %v4158, 0.0
          %vm4205 = vcmp.ge.f32.partialorder %v4163, 0.0
          %vm4206 = vcmp.ge.f32.partialorder %v4166, 0.0
          %vm4207 = vcmp.ge.f32.partialorder %v4171, 0.0
          %vm4208 = vcmp.ge.f32.partialorder %v4174, 0.0
          %v4209 = vmul.f32 %v4051, 0.2
          %v4210 = vmul.f32 %v4054, 0.2
          %v4211 = vmul.f32 %v4059, 0.2
          %v4212 = vmul.f32 %v4062, 0.2
          %v4213 = vmul.f32 %v4067, 0.2
          %v4214 = vmul.f32 %v4070, 0.2
          %v4215 = vmul.f32 %v4075, 0.2
          %v4216 = vmul.f32 %v4078, 0.2
          %v4217 = vmul.f32 %v4083, 0.2
          %v4218 = vmul.f32 %v4086, 0.2
          %v4219 = vmul.f32 %v4091, 0.2
          %v4220 = vmul.f32 %v4094, 0.2
          %v4221 = vmul.f32 %v4099, 0.2
          %v4222 = vmul.f32 %v4102, 0.2
          %v4223 = vmul.f32 %v4107, 0.2
          %v4224 = vmul.f32 %v4110, 0.2
          %v4225 = vmul.f32 %v4115, 0.2
          %v4226 = vmul.f32 %v4118, 0.2
          %v4227 = vmul.f32 %v4123, 0.2
          %v4228 = vmul.f32 %v4126, 0.2
          %v4229 = vmul.f32 %v4131, 0.2
          %v4230 = vmul.f32 %v4134, 0.2
          %v4231 = vmul.f32 %v4139, 0.2
          %v4232 = vmul.f32 %v4142, 0.2
          %v4233 = vmul.f32 %v4147, 0.2
          %v4234 = vmul.f32 %v4150, 0.2
          %v4235 = vmul.f32 %v4155, 0.2
          %v4236 = vmul.f32 %v4158, 0.2
          %v4237 = vmul.f32 %v4163, 0.2
          %v4238 = vmul.f32 %v4166, 0.2
          %v4239 = vmul.f32 %v4171, 0.2
          %v4240 = vmul.f32 %v4174, 0.2
          %v4241 = vsel %vm4177, %v4051, %v4209
          %v4242 = vsel %vm4178, %v4054, %v4210
          %v4243 = vsel %vm4179, %v4059, %v4211
          %v4244 = vsel %vm4180, %v4062, %v4212
          %v4245 = vsel %vm4181, %v4067, %v4213
          %v4246 = vsel %vm4182, %v4070, %v4214
          %v4247 = vsel %vm4183, %v4075, %v4215
          %v4248 = vsel %vm4184, %v4078, %v4216
          %v4249 = vsel %vm4185, %v4083, %v4217
          %v4250 = vsel %vm4186, %v4086, %v4218
          %v4251 = vsel %vm4187, %v4091, %v4219
          %v4252 = vsel %vm4188, %v4094, %v4220
          %v4253 = vsel %vm4189, %v4099, %v4221
          %v4254 = vsel %vm4190, %v4102, %v4222
          %v4255 = vsel %vm4191, %v4107, %v4223
          %v4256 = vsel %vm4192, %v4110, %v4224
          %v4257 = vsel %vm4193, %v4115, %v4225
          %v4258 = vsel %vm4194, %v4118, %v4226
          %v4259 = vsel %vm4195, %v4123, %v4227
          %v4260 = vsel %vm4196, %v4126, %v4228
          %v4261 = vsel %vm4197, %v4131, %v4229
          %v4262 = vsel %vm4198, %v4134, %v4230
          %v4263 = vsel %vm4199, %v4139, %v4231
          %v4264 = vsel %vm4200, %v4142, %v4232
          %v4265 = vsel %vm4201, %v4147, %v4233
          %v4266 = vsel %vm4202, %v4150, %v4234
          %v4267 = vsel %vm4203, %v4155, %v4235
          %v4268 = vsel %vm4204, %v4158, %v4236
          %v4269 = vsel %vm4205, %v4163, %v4237
          %v4270 = vsel %vm4206, %v4166, %v4238
          %v4271 = vsel %vm4207, %v4171, %v4239
          %v4272 = vsel %vm4208, %v4174, %v4240
          %v4273 = vld [vmem:[%s547] sm:$0xff]
          %v4274 = vld [vmem:[%s547 + $0x8] sm:$0xff]
          %v4275 = vld [vmem:[%s547 + $0x10] sm:$0xff]
          %v4276 = vld [vmem:[%s547 + $0x18] sm:$0xff]
          %v4277 = vld [vmem:[%s547 + $0x20] sm:$0xff]
          %v4278 = vld [vmem:[%s547 + $0x28] sm:$0xff]
          %v4279 = vld [vmem:[%s547 + $0x30] sm:$0xff]
          %v4280 = vld [vmem:[%s547 + $0x38] sm:$0xff]
          %v4281 = vld [vmem:[%s547 + $0x40] sm:$0xff]
          %v4282 = vld [vmem:[%s547 + $0x48] sm:$0xff]
          %v4283 = vld [vmem:[%s547 + $0x50] sm:$0xff]
          %v4284 = vld [vmem:[%s547 + $0x58] sm:$0xff]
          %v4285 = vld [vmem:[%s547 + $0x60] sm:$0xff]
          %v4286 = vld [vmem:[%s547 + $0x68] sm:$0xff]
          %v4287 = vld [vmem:[%s547 + $0x70] sm:$0xff]
          %v4288 = vld [vmem:[%s547 + $0x78] sm:$0xff]
          %v4289 = vld [vmem:[%s547 + $0x80] sm:$0xff]
          %v4290 = vld [vmem:[%s547 + $0x88] sm:$0xff]
          %v4291 = vld [vmem:[%s547 + $0x90] sm:$0xff]
          %v4292 = vld [vmem:[%s547 + $0x98] sm:$0xff]
          %v4293 = vld [vmem:[%s547 + $0xa0] sm:$0xff]
          %v4294 = vld [vmem:[%s547 + $0xa8] sm:$0xff]
          %v4295 = vld [vmem:[%s547 + $0xb0] sm:$0xff]
          %v4296 = vld [vmem:[%s547 + $0xb8] sm:$0xff]
          %v4297 = vld [vmem:[%s547 + $0xc0] sm:$0xff]
          %v4298 = vld [vmem:[%s547 + $0xc8] sm:$0xff]
          %v4299 = vld [vmem:[%s547 + $0xd0] sm:$0xff]
          %v4300 = vld [vmem:[%s547 + $0xd8] sm:$0xff]
          %v4301 = vld [vmem:[%s547 + $0xe0] sm:$0xff]
          %v4302 = vld [vmem:[%s547 + $0xe8] sm:$0xff]
          %v4303 = vld [vmem:[%s547 + $0xf0] sm:$0xff]
          %v4304 = vld [vmem:[%s547 + $0xf8] sm:$0xff]
          %v4305 = vmul.f32 %v4241, %v4273
          %v4306 = vmul.f32 %v4242, %v4274
          %v4307 = vmul.f32 %v4243, %v4275
          %v4308 = vmul.f32 %v4244, %v4276
          %v4309 = vmul.f32 %v4245, %v4277
          %v4310 = vmul.f32 %v4246, %v4278
          %v4311 = vmul.f32 %v4247, %v4279
          %v4312 = vmul.f32 %v4248, %v4280
          %v4313 = vmul.f32 %v4249, %v4281
          %v4314 = vmul.f32 %v4250, %v4282
          %v4315 = vmul.f32 %v4251, %v4283
          %v4316 = vmul.f32 %v4252, %v4284
          %v4317 = vmul.f32 %v4253, %v4285
          %v4318 = vmul.f32 %v4254, %v4286
          %v4319 = vmul.f32 %v4255, %v4287
          %v4320 = vmul.f32 %v4256, %v4288
          %v4321 = vmul.f32 %v4257, %v4289
          %v4322 = vmul.f32 %v4258, %v4290
          %v4323 = vmul.f32 %v4259, %v4291
          %v4324 = vmul.f32 %v4260, %v4292
          %v4325 = vmul.f32 %v4261, %v4293
          %v4326 = vmul.f32 %v4262, %v4294
          %v4327 = vmul.f32 %v4263, %v4295
          %v4328 = vmul.f32 %v4264, %v4296
          %v4329 = vmul.f32 %v4265, %v4297
          %v4330 = vmul.f32 %v4266, %v4298
          %v4331 = vmul.f32 %v4267, %v4299
          %v4332 = vmul.f32 %v4268, %v4300
          %v4333 = vmul.f32 %v4269, %v4301
          %v4334 = vmul.f32 %v4270, %v4302
          %v4335 = vmul.f32 %v4271, %v4303
          %v4336 = vmul.f32 %v4272, %v4304
          %v4337 = vld [vmem:[%s5] sm:$0xff]
          %v4338 = vld [vmem:[%s5 + $0x8] sm:$0xff]
          %v4339 = vld [vmem:[%s5 + $0x10] sm:$0xff]
          %v4340 = vld [vmem:[%s5 + $0x18] sm:$0xff]
          %v4341 = vld [vmem:[%s5 + $0x20] sm:$0xff]
          %v4342 = vld [vmem:[%s5 + $0x28] sm:$0xff]
          %v4343 = vld [vmem:[%s5 + $0x30] sm:$0xff]
          %v4344 = vld [vmem:[%s5 + $0x38] sm:$0xff]
          %v4345 = vld [vmem:[%s5 + $0x40] sm:$0xff]
          %v4346 = vld [vmem:[%s5 + $0x48] sm:$0xff]
          %v4347 = vld [vmem:[%s5 + $0x50] sm:$0xff]
          %v4348 = vld [vmem:[%s5 + $0x58] sm:$0xff]
          %v4349 = vld [vmem:[%s5 + $0x60] sm:$0xff]
          %v4350 = vld [vmem:[%s5 + $0x68] sm:$0xff]
          %v4351 = vld [vmem:[%s5 + $0x70] sm:$0xff]
          %v4352 = vld [vmem:[%s5 + $0x78] sm:$0xff]
          %v4353 = vpack.c.bf16 %v4306, %v4305
          %v4354 = vpack.c.bf16 %v4308, %v4307
          %v4355 = vpack.c.bf16 %v4310, %v4309
          %v4356 = vpack.c.bf16 %v4312, %v4311
          %v4357 = vpack.c.bf16 %v4314, %v4313
          %v4358 = vpack.c.bf16 %v4316, %v4315
          %v4359 = vpack.c.bf16 %v4318, %v4317
          %v4360 = vpack.c.bf16 %v4320, %v4319
          %v4361 = vpack.c.bf16 %v4322, %v4321
          %v4362 = vpack.c.bf16 %v4324, %v4323
          %v4363 = vpack.c.bf16 %v4326, %v4325
          %v4364 = vpack.c.bf16 %v4328, %v4327
          %v4365 = vpack.c.bf16 %v4330, %v4329
          %v4366 = vpack.c.bf16 %v4332, %v4331
          %v4367 = vpack.c.bf16 %v4334, %v4333
          %v4368 = vpack.c.bf16 %v4336, %v4335
          %v4369 = vld [vmem:[%s6] sm:$0xff]
          %v4370 = vld [vmem:[%s6 + $0x8] sm:$0xff]
          %v4371 = vld [vmem:[%s6 + $0x10] sm:$0xff]
          %v4372 = vld [vmem:[%s6 + $0x18] sm:$0xff]
          %v4373 = vld [vmem:[%s6 + $0x20] sm:$0xff]
          %v4374 = vld [vmem:[%s6 + $0x28] sm:$0xff]
          %v4375 = vld [vmem:[%s6 + $0x30] sm:$0xff]
          %v4376 = vld [vmem:[%s6 + $0x38] sm:$0xff]
          %v4377 = vld [vmem:[%s6 + $0x40] sm:$0xff]
          %v4378 = vld [vmem:[%s6 + $0x48] sm:$0xff]
          %v4379 = vld [vmem:[%s6 + $0x50] sm:$0xff]
          %v4380 = vld [vmem:[%s6 + $0x58] sm:$0xff]
          %v4381 = vld [vmem:[%s6 + $0x60] sm:$0xff]
          %v4382 = vld [vmem:[%s6 + $0x68] sm:$0xff]
          %v4383 = vld [vmem:[%s6 + $0x70] sm:$0xff]
          %v4384 = vld [vmem:[%s6 + $0x78] sm:$0xff]
          %4386 = vset.pattern.permute.xlu0 0
          %4387 = vperm.xlu0 %4386, %v4369
          %v4388 = vpop.permute.xlu0 %4387
          %4391 = vset.pattern.permute.xlu0 0
          %4392 = vperm.xlu0 %4391, %v4370
          %v4393 = vpop.permute.xlu0 %4392
          %4396 = vset.pattern.permute.xlu0 0
          %4397 = vperm.xlu0 %4396, %v4371
          %v4398 = vpop.permute.xlu0 %4397
          %4401 = vset.pattern.permute.xlu0 0
          %4402 = vperm.xlu0 %4401, %v4372
          %v4403 = vpop.permute.xlu0 %4402
          %4406 = vset.pattern.permute.xlu0 0
          %4407 = vperm.xlu0 %4406, %v4373
          %v4408 = vpop.permute.xlu0 %4407
          %4411 = vset.pattern.permute.xlu0 0
          %4412 = vperm.xlu0 %4411, %v4374
          %v4413 = vpop.permute.xlu0 %4412
          %4416 = vset.pattern.permute.xlu0 0
          %4417 = vperm.xlu0 %4416, %v4375
          %v4418 = vpop.permute.xlu0 %4417
          %4421 = vset.pattern.permute.xlu0 0
          %4422 = vperm.xlu0 %4421, %v4376
          %v4423 = vpop.permute.xlu0 %4422
          %4426 = vset.pattern.permute.xlu0 0
          %4427 = vperm.xlu0 %4426, %v4377
          %v4428 = vpop.permute.xlu0 %4427
          %4431 = vset.pattern.permute.xlu0 0
          %4432 = vperm.xlu0 %4431, %v4378
          %v4433 = vpop.permute.xlu0 %4432
          %4436 = vset.pattern.permute.xlu0 0
          %4437 = vperm.xlu0 %4436, %v4379
          %v4438 = vpop.permute.xlu0 %4437
          %4441 = vset.pattern.permute.xlu0 0
          %4442 = vperm.xlu0 %4441, %v4380
          %v4443 = vpop.permute.xlu0 %4442
          %4446 = vset.pattern.permute.xlu0 0
          %4447 = vperm.xlu0 %4446, %v4381
          %v4448 = vpop.permute.xlu0 %4447
          %4451 = vset.pattern.permute.xlu0 0
          %4452 = vperm.xlu0 %4451, %v4382
          %v4453 = vpop.permute.xlu0 %4452
          %4456 = vset.pattern.permute.xlu0 0
          %4457 = vperm.xlu0 %4456, %v4383
          %v4458 = vpop.permute.xlu0 %4457
          %4461 = vset.pattern.permute.xlu0 0
          %4462 = vperm.xlu0 %4461, %v4384
          %v4463 = vpop.permute.xlu0 %4462
          %v4481 = vunpack.c.l.b16 %v4337
          %v4482 = vunpack.c.h.b16 %v4337
          %v4483 = vunpack.c.l.b16 %v4338
          %v4484 = vunpack.c.h.b16 %v4338
          %v4485 = vunpack.c.l.b16 %v4339
          %v4486 = vunpack.c.h.b16 %v4339
          %v4487 = vunpack.c.l.b16 %v4340
          %v4488 = vunpack.c.h.b16 %v4340
          %v4489 = vunpack.c.l.b16 %v4341
          %v4490 = vunpack.c.h.b16 %v4341
          %v4491 = vunpack.c.l.b16 %v4342
          %v4492 = vunpack.c.h.b16 %v4342
          %v4493 = vunpack.c.l.b16 %v4343
          %v4494 = vunpack.c.h.b16 %v4343
          %v4495 = vunpack.c.l.b16 %v4344
          %v4496 = vunpack.c.h.b16 %v4344
          %v4497 = vunpack.c.l.b16 %v4345
          %v4498 = vunpack.c.h.b16 %v4345
          %v4499 = vunpack.c.l.b16 %v4346
          %v4500 = vunpack.c.h.b16 %v4346
          %v4501 = vunpack.c.l.b16 %v4347
          %v4502 = vunpack.c.h.b16 %v4347
          %v4503 = vunpack.c.l.b16 %v4348
          %v4504 = vunpack.c.h.b16 %v4348
          %v4505 = vunpack.c.l.b16 %v4349
          %v4506 = vunpack.c.h.b16 %v4349
          %v4507 = vunpack.c.l.b16 %v4350
          %v4508 = vunpack.c.h.b16 %v4350
          %v4509 = vunpack.c.l.b16 %v4351
          %v4510 = vunpack.c.h.b16 %v4351
          %v4511 = vunpack.c.l.b16 %v4352
          %v4512 = vunpack.c.h.b16 %v4352
          %v4513 = vpack.c.b16 %v4483, %v4481
          %v4514 = vpack.c.b16 %v4484, %v4482
          %v4515 = vpack.c.b16 %v4487, %v4485
          %v4516 = vpack.c.b16 %v4488, %v4486
          %v4517 = vpack.c.b16 %v4491, %v4489
          %v4518 = vpack.c.b16 %v4492, %v4490
          %v4519 = vpack.c.b16 %v4495, %v4493
          %v4520 = vpack.c.b16 %v4496, %v4494
          %v4521 = vpack.c.b16 %v4499, %v4497
          %v4522 = vpack.c.b16 %v4500, %v4498
          %v4523 = vpack.c.b16 %v4503, %v4501
          %v4524 = vpack.c.b16 %v4504, %v4502
          %v4525 = vpack.c.b16 %v4507, %v4505
          %v4526 = vpack.c.b16 %v4508, %v4506
          %v4527 = vpack.c.b16 %v4511, %v4509
          %v4528 = vpack.c.b16 %v4512, %v4510
          %4545 = vmatprep.subr.bf16.mxu0 0
          %4546 = vmatpush1.bf16.msra.mxu0 %v4353
          %4547 = vmatprep.subr.bf16.mxu0 0
          %4548 = vmatpush1.bf16.msra.mxu0 %v4354
          %4549 = vmatprep.subr.bf16.mxu0 0
          %4550 = vmatpush1.bf16.msra.mxu0 %v4355
          %4551 = vmatprep.subr.bf16.mxu0 0
          %4552 = vmatpush1.bf16.msra.mxu0 %v4356
          %4553 = vmatprep.subr.bf16.mxu0 0
          %4554 = vmatpush1.bf16.msra.mxu0 %v4357
          %4555 = vmatprep.subr.bf16.mxu0 0
          %4556 = vmatpush1.bf16.msra.mxu0 %v4358
          %4557 = vmatprep.subr.bf16.mxu0 0
          %4558 = vmatpush1.bf16.msra.mxu0 %v4359
          %4559 = vmatprep.subr.bf16.mxu0 0
          %4560 = vmatpush1.bf16.msra.mxu0 %v4360
          %4561 = vmatprep.subr.bf16.mxu0 0
          %4562 = vmatpush1.bf16.msra.mxu0 %v4361
          %4563 = vmatprep.subr.bf16.mxu0 0
          %4564 = vmatpush1.bf16.msra.mxu0 %v4362
          %4565 = vmatprep.subr.bf16.mxu0 0
          %4566 = vmatpush1.bf16.msra.mxu0 %v4363
          %4567 = vmatprep.subr.bf16.mxu0 0
          %4568 = vmatpush1.bf16.msra.mxu0 %v4364
          %4569 = vmatprep.subr.bf16.mxu0 0
          %4570 = vmatpush1.bf16.msra.mxu0 %v4365
          %4571 = vmatprep.subr.bf16.mxu0 0
          %4572 = vmatpush1.bf16.msra.mxu0 %v4366
          %4573 = vmatprep.subr.bf16.mxu0 0
          %4574 = vmatpush1.bf16.msra.mxu0 %v4367
          %4575 = vmatprep.subr.bf16.mxu0 0
          %4576 = vmatpush1.bf16.msra.mxu0 %v4368
          %4577 = vmatprep.mubr.bf16.mxu0 %v4514
          %4578 = vmatmul.mubr.bf16.gmra.mrb[0].mxu0 %v4513
          %v4579 = vpop.f32.mrb[0].mxu0
          %v4580 = vadd.f32 %v4388, %v4579
          %v4581 = vpop.f32.mrb[0].mxu0
          %v4582 = vpop.f32.mrb[0].mxu0
          %v4583 = vadd.f32 %v4393, %v4582
          %v4584 = vpop.f32.mrb[0].mxu0
          %4585 = vmatprep.mubr.bf16.mxu0 %v4516
          %4586 = vmatmul.mubr.bf16.gmra.mrb[0].mxu0 %v4515
          %v4587 = vpop.f32.mrb[0].mxu0
          %v4588 = vadd.f32 %v4398, %v4587
          %v4589 = vpop.f32.mrb[0].mxu0
          %v4590 = vpop.f32.mrb[0].mxu0
          %v4591 = vadd.f32 %v4403, %v4590
          %v4592 = vpop.f32.mrb[0].mxu0
          %4593 = vmatprep.mubr.bf16.mxu0 %v4518
          %4594 = vmatmul.mubr.bf16.gmra.mrb[0].mxu0 %v4517
          %v4595 = vpop.f32.mrb[0].mxu0
          %v4596 = vadd.f32 %v4408, %v4595
          %v4597 = vpop.f32.mrb[0].mxu0
          %v4598 = vpop.f32.mrb[0].mxu0
          %v4599 = vadd.f32 %v4413, %v4598
          %v4600 = vpop.f32.mrb[0].mxu0
          %4601 = vmatprep.mubr.bf16.mxu0 %v4520
          %4602 = vmatmul.mubr.bf16.gmra.mrb[0].mxu0 %v4519
          %v4603 = vpop.f32.mrb[0].mxu0
          %v4604 = vadd.f32 %v4418, %v4603
          %v4605 = vpop.f32.mrb[0].mxu0
          %v4606 = vpop.f32.mrb[0].mxu0
          %v4607 = vadd.f32 %v4423, %v4606
          %v4608 = vpop.f32.mrb[0].mxu0
          %4609 = vmatprep.mubr.bf16.mxu0 %v4522
          %4610 = vmatmul.mubr.bf16.gmra.mrb[0].mxu0 %v4521
          %v4611 = vpop.f32.mrb[0].mxu0
          %v4612 = vadd.f32 %v4428, %v4611
          %v4613 = vpop.f32.mrb[0].mxu0
          %v4614 = vpop.f32.mrb[0].mxu0
          %v4615 = vadd.f32 %v4433, %v4614
          %v4616 = vpop.f32.mrb[0].mxu0
          %4617 = vmatprep.mubr.bf16.mxu0 %v4524
          %4618 = vmatmul.mubr.bf16.gmra.mrb[0].mxu0 %v4523
          %v4619 = vpop.f32.mrb[0].mxu0
          %v4620 = vadd.f32 %v4438, %v4619
          %v4621 = vpop.f32.mrb[0].mxu0
          %v4622 = vpop.f32.mrb[0].mxu0
          %v4623 = vadd.f32 %v4443, %v4622
          %v4624 = vpop.f32.mrb[0].mxu0
          %4625 = vmatprep.mubr.bf16.mxu0 %v4526
          %4626 = vmatmul.mubr.bf16.gmra.mrb[0].mxu0 %v4525
          %v4627 = vpop.f32.mrb[0].mxu0
          %v4628 = vadd.f32 %v4448, %v4627
          %v4629 = vpop.f32.mrb[0].mxu0
          %v4630 = vpop.f32.mrb[0].mxu0
          %v4631 = vadd.f32 %v4453, %v4630
          %v4632 = vpop.f32.mrb[0].mxu0
          %4633 = vmatprep.mubr.bf16.mxu0 %v4528
          %4634 = vmatmul.mubr.bf16.gmra.mrb[0].mxu0 %v4527
          %v4635 = vpop.f32.mrb[0].mxu0
          %v4636 = vadd.f32 %v4458, %v4635
          %v4637 = vpop.f32.mrb[0].mxu0
          %v4638 = vpop.f32.mrb[0].mxu0
          %v4639 = vadd.f32 %v4463, %v4638
          %v4640 = vpop.f32.mrb[0].mxu0
          %4641 = vdwg.mxu0
          %vm4642 = vcmp.ge.f32.partialorder %v4580, 0.0
          %vm4643 = vcmp.ge.f32.partialorder %v4583, 0.0
          %vm4644 = vcmp.ge.f32.partialorder %v4588, 0.0
          %vm4645 = vcmp.ge.f32.partialorder %v4591, 0.0
          %vm4646 = vcmp.ge.f32.partialorder %v4596, 0.0
          %vm4647 = vcmp.ge.f32.partialorder %v4599, 0.0
          %vm4648 = vcmp.ge.f32.partialorder %v4604, 0.0
          %vm4649 = vcmp.ge.f32.partialorder %v4607, 0.0
          %vm4650 = vcmp.ge.f32.partialorder %v4612, 0.0
          %vm4651 = vcmp.ge.f32.partialorder %v4615, 0.0
          %vm4652 = vcmp.ge.f32.partialorder %v4620, 0.0
          %vm4653 = vcmp.ge.f32.partialorder %v4623, 0.0
          %vm4654 = vcmp.ge.f32.partialorder %v4628, 0.0
          %vm4655 = vcmp.ge.f32.partialorder %v4631, 0.0
          %vm4656 = vcmp.ge.f32.partialorder %v4636, 0.0
          %vm4657 = vcmp.ge.f32.partialorder %v4639, 0.0
          %v4658 = vmul.f32 %v4580, 0.2
          %v4659 = vmul.f32 %v4583, 0.2
          %v4660 = vmul.f32 %v4588, 0.2
          %v4661 = vmul.f32 %v4591, 0.2
          %v4662 = vmul.f32 %v4596, 0.2
          %v4663 = vmul.f32 %v4599, 0.2
          %v4664 = vmul.f32 %v4604, 0.2
          %v4665 = vmul.f32 %v4607, 0.2
          %v4666 = vmul.f32 %v4612, 0.2
          %v4667 = vmul.f32 %v4615, 0.2
          %v4668 = vmul.f32 %v4620, 0.2
          %v4669 = vmul.f32 %v4623, 0.2
          %v4670 = vmul.f32 %v4628, 0.2
          %v4671 = vmul.f32 %v4631, 0.2
          %v4672 = vmul.f32 %v4636, 0.2
          %v4673 = vmul.f32 %v4639, 0.2
          %v4674 = vsel %vm4642, %v4580, %v4658
          %v4675 = vsel %vm4643, %v4583, %v4659
          %v4676 = vsel %vm4644, %v4588, %v4660
          %v4677 = vsel %vm4645, %v4591, %v4661
          %v4678 = vsel %vm4646, %v4596, %v4662
          %v4679 = vsel %vm4647, %v4599, %v4663
          %v4680 = vsel %vm4648, %v4604, %v4664
          %v4681 = vsel %vm4649, %v4607, %v4665
          %v4682 = vsel %vm4650, %v4612, %v4666
          %v4683 = vsel %vm4651, %v4615, %v4667
          %v4684 = vsel %vm4652, %v4620, %v4668
          %v4685 = vsel %vm4653, %v4623, %v4669
          %v4686 = vsel %vm4654, %v4628, %v4670
          %v4687 = vsel %vm4655, %v4631, %v4671
          %v4688 = vsel %vm4656, %v4636, %v4672
          %v4689 = vsel %vm4657, %v4639, %v4673
          %v4690 = vld [vmem:[#allocation10] sm:$0xff]
          %v4691 = vld [vmem:[#allocation10 + $0x8] sm:$0xff]
          %v4692 = vld [vmem:[#allocation10 + $0x10] sm:$0xff]
          %v4693 = vld [vmem:[#allocation10 + $0x18] sm:$0xff]
          %v4694 = vld [vmem:[#allocation10 + $0x20] sm:$0xff]
          %v4695 = vld [vmem:[#allocation10 + $0x28] sm:$0xff]
          %v4696 = vld [vmem:[#allocation10 + $0x30] sm:$0xff]
          %v4697 = vld [vmem:[#allocation10 + $0x38] sm:$0xff]
          %v4698 = vld [vmem:[#allocation10 + $0x40] sm:$0xff]
          %v4699 = vld [vmem:[#allocation10 + $0x48] sm:$0xff]
          %v4700 = vld [vmem:[#allocation10 + $0x50] sm:$0xff]
          %v4701 = vld [vmem:[#allocation10 + $0x58] sm:$0xff]
          %v4702 = vld [vmem:[#allocation10 + $0x60] sm:$0xff]
          %v4703 = vld [vmem:[#allocation10 + $0x68] sm:$0xff]
          %v4704 = vld [vmem:[#allocation10 + $0x70] sm:$0xff]
          %v4705 = vld [vmem:[#allocation10 + $0x78] sm:$0xff]
          %v4706 = vmul.f32 %v4674, %v4690
          %v4707 = vmul.f32 %v4675, %v4691
          %v4708 = vmul.f32 %v4676, %v4692
          %v4709 = vmul.f32 %v4677, %v4693
          %v4710 = vmul.f32 %v4678, %v4694
          %v4711 = vmul.f32 %v4679, %v4695
          %v4712 = vmul.f32 %v4680, %v4696
          %v4713 = vmul.f32 %v4681, %v4697
          %v4714 = vmul.f32 %v4682, %v4698
          %v4715 = vmul.f32 %v4683, %v4699
          %v4716 = vmul.f32 %v4684, %v4700
          %v4717 = vmul.f32 %v4685, %v4701
          %v4718 = vmul.f32 %v4686, %v4702
          %v4719 = vmul.f32 %v4687, %v4703
          %v4720 = vmul.f32 %v4688, %v4704
          %v4721 = vmul.f32 %v4689, %v4705
          %v4722 = vld [vmem:[%s7] sm:$0x1]
          %v4723 = vpack.c.bf16 %v4707, %v4706
          %v4724 = vpack.c.bf16 %v4709, %v4708
          %v4725 = vpack.c.bf16 %v4711, %v4710
          %v4726 = vpack.c.bf16 %v4713, %v4712
          %v4727 = vpack.c.bf16 %v4715, %v4714
          %v4728 = vpack.c.bf16 %v4717, %v4716
          %v4729 = vpack.c.bf16 %v4719, %v4718
          %v4730 = vpack.c.bf16 %v4721, %v4720
          %v4731 = vld [vmem:[#allocation3] sm:$0x1]
          %4733 = vset.pattern.permute.xlu0 0
          %4734 = vperm.xlu0 %4733, %v4731
          %v4735 = vpop.permute.xlu0 %4734
          %v4737 = vlaneseq
          %v4738 = vshrl.u32 %v4737, 7
          %v4739 = vsub.s32 0, %v4738
          %v4740 = vrot.slane %v4735, %v4739
          %4741 = vmatprep.subr.bf16.mxu0 0
          %4742 = vmatpush1.bf16.msra.mxu0 %v4723
          %4743 = vmatprep.subr.bf16.mxu0 0
          %4744 = vmatpush1.bf16.msra.mxu0 %v4724
          %4745 = vmatprep.subr.bf16.mxu0 0
          %4746 = vmatpush1.bf16.msra.mxu0 %v4725
          %4747 = vmatprep.subr.bf16.mxu0 0
          %4748 = vmatpush1.bf16.msra.mxu0 %v4726
          %4749 = vmatprep.subr.bf16.mxu0 0
          %4750 = vmatpush1.bf16.msra.mxu0 %v4727
          %4751 = vmatprep.subr.bf16.mxu0 0
          %4752 = vmatpush1.bf16.msra.mxu0 %v4728
          %4753 = vmatprep.subr.bf16.mxu0 0
          %4754 = vmatpush1.bf16.msra.mxu0 %v4729
          %4755 = vmatprep.subr.bf16.mxu0 0
          %4756 = vmatpush1.bf16.msra.mxu0 %v4730
          %4757 = vmatprep.subr.bf16.mxu0 0
          %4758 = vmatpush1.bf16.msra.mxu0 0
          %4759 = vmatprep.subr.bf16.mxu0 0
          %4760 = vmatpush1.bf16.msra.mxu0 0
          %4761 = vmatprep.subr.bf16.mxu0 0
          %4762 = vmatpush1.bf16.msra.mxu0 0
          %4763 = vmatprep.subr.bf16.mxu0 0
          %4764 = vmatpush1.bf16.msra.mxu0 0
          %4765 = vmatprep.subr.bf16.mxu0 0
          %4766 = vmatpush1.bf16.msra.mxu0 0
          %4767 = vmatprep.subr.bf16.mxu0 0
          %4768 = vmatpush1.bf16.msra.mxu0 0
          %4769 = vmatprep.subr.bf16.mxu0 0
          %4770 = vmatpush1.bf16.msra.mxu0 0
          %4771 = vmatprep.subr.bf16.mxu0 0
          %4772 = vmatpush1.bf16.msra.mxu0 0
          %4773 = vmatprep.mubr.bf16.mxu0 0
          %4774 = vmatmul.mubr.bf16.gmra.mrb[0].mxu0 %v4722
          %v4775 = vpop.f32.mrb[0].mxu0
          %v4776 = vadd.f32 %v4740, %v4775
          %v4777 = vpop.f32.mrb[0].mxu0
          %v4778 = vpop.f32.mrb[0].mxu0
          %v4779 = vpop.f32.mrb[0].mxu0
          %4780 = vdwg.mxu0
          %v4781 = vxor.u32 %v4776, 2147483648
          %v4782 = vmul.f32 %v4781, 1.442695
          %v4783 = vpow.pop %v4782
          %v4784 = vadd.f32 %v4783, 1.0
          %v4785 = vrcp.pop %v4784
          %v4786 = vmul.f32 1.0, %v4785
          %4787 = vst [vmem:[#allocation12] sm:$0x1] %v4786
        $region92: #{tpu_custom_call.1} parent=67 // pred_fallthru
          _
        // Predicated region
        $region93: #{tpu_custom_call.1} parent=67 // pred_check
          %p4788 = pneg %p340
        $region94: #{tpu_custom_call.1} parent=67 // pred_check_branch
          %4790 = sbr.rel (%p4788) target = $region96
        $region95: #{tpu_custom_call.1} parent=67 // pred_region
          %s4792 = ssub.s32 16, 16
          %4793 = vsyncadd [#allocation6], %s4792
          %s4794 = smul.addr %s35, 16
          %s4795 = scalar_lea.hbm %s12, %s4794
          %s4797 = sshll.u32 [#allocation12], 4
          %s4798 = int_to_ptr.vmem [resolvable:$true] %s4797
          %4800 = dma.vmem_to_hbm [thread:$0]  %s4798, 16, %s4795, [#allocation6]
        $region96: #{tpu_custom_call.1} parent=67 // pred_fallthru
          _
        // Predicated region
        $region97: #{tpu_custom_call.1} parent=67 // pred_check
          %p4801 = pneg %p340
        $region98: #{tpu_custom_call.1} parent=67 // pred_check_branch
          %4803 = sbr.rel (%p4801) target = $region100
        $region99: #{tpu_custom_call.1} parent=67 // pred_region
          %4804 = dma.done [#allocation6], 16
        $region100: #{tpu_custom_call.1} parent=67 // pred_fallthru
          _
      $region68: #{tpu_custom_call.1} parent=5 // pred_fallthru
        _
      %p4805 = scmp.le.s32.totalorder 2, %s26
      // Predicated region
      $region101: #{tpu_custom_call.1} parent=5 // pred_check
        %p4806 = pneg %p4805
      $region102: #{tpu_custom_call.1} parent=5 // pred_check_branch
        %4808 = sbr.rel (%p4806) target = $region104
      $region103: #{tpu_custom_call.1} parent=5 // pred_region
        %s4809 = ssub.s32 %s26, 2
      $region104: #{tpu_custom_call.1} parent=5 // pred_fallthru
        _
    $region6: #{tpu_custom_call.1} parent=1 // loop_footer
      %s30 = sadd.s32 1, %s26
    $region7: #{tpu_custom_call.1} parent=1 // loop_footer_branch
      %25 = sbr.rel target = $region3
    $region8: #{tpu_custom_call.1} parent=1 // loop_exit
      _
    %4810 = vsyncpa [#allocation5], 1
    %s4811 = scalar_lea.sflag [#allocation5], 1
    %4812 = vsyncpa %s4811, 1
    %4813 = vsyncpa [#allocation8], 1
    %4814 = vsyncpa [#allocation11], 1
    %4815 = vsyncpa [#allocation6], 1
    %s4816 = scalar_lea.sflag [#allocation6], 1
    %4817 = vsyncpa %s4816, 1

</llo_original>
